<compile_context>
chip_gen: v7x
topology: tpu7x:2x2x1
jax: 0.10.0
libtpu: 0.0.40
codegen_flags: <defaults>
</compile_context>

<pallas_src>
import math
from functools import partial

import jax
import jax.numpy as jnp
from jax.experimental import pallas as pl
from jax.experimental.pallas import tpu as pltpu


def _conv_rows_kernel(x_ref, w_ref, b_ref, o_ref, *, w2, rows_out):
    """3x3 conv for one image, on the (upsampled, W-folded, H-padded,
    row-flattened) input: 3 accumulated MXU matmuls + fused bias.

    x_ref: ((H2+2)*W2, 3*C_in)  one image incl. its H halo rows
    w_ref: (3, 3*C_in, C_out)   folded conv weight (resident)
    b_ref: (1, C_out)
    o_ref: (H2*W2, C_out)
    """
    # H-tap ky needs padded rows [ky, ky + H2)  ==  flattened rows
    # [ky*W2, ky*W2 + H2*W2) — a contiguous, sublane-aligned slice.
    acc = jnp.dot(x_ref[0:rows_out, :], w_ref[0],
                  preferred_element_type=jnp.float32)
    acc = acc + jnp.dot(x_ref[w2:w2 + rows_out, :], w_ref[1],
                        preferred_element_type=jnp.float32)
    acc = acc + jnp.dot(x_ref[2 * w2:2 * w2 + rows_out, :], w_ref[2],
                        preferred_element_type=jnp.float32)
    o_ref[...] = (acc + b_ref[...]).astype(o_ref.dtype)


def upsampler_block(x, weight, bias):
    """UpsamplerBlock forward.

    x:      (N, C_in, H, W)
    weight: (C_out, C_in, 3, 3)   -- PyTorch Conv2d layout
    bias:   (C_out,)
    returns (N, C_out, 2H, 2W)
    """
    n, c_in, h, w = x.shape
    c_out = weight.shape[0]
    h2, w2 = 2 * h, 2 * w

    # ---------------- layout plumbing in JAX (memory only, no FLOPs) --------
    # NCHW -> NHWC (channels last => lane dim on TPU).
    x_nhwc = jnp.transpose(x, (0, 2, 3, 1))
    # Nearest 2x upsample == F.interpolate(mode='nearest', scale_factor=2).
    x_up = jnp.repeat(jnp.repeat(x_nhwc, 2, axis=1), 2, axis=2)       # (N,H2,W2,C)
    # Fold the 3 W-taps into channels (partial im2col):
    #   x_w[n, y, x, kx*C_in + c] = pad_W(x_up)[n, y, x + kx, c]
    x_pw = jnp.pad(x_up, ((0, 0), (0, 0), (1, 1), (0, 0)))
    x_w = jnp.concatenate([x_pw[:, :, kx:kx + w2, :] for kx in range(3)],
                          axis=-1)                                    # (N,H2,W2,3C)
    # Zero halo rows along H (conv padding=1), then flatten (H2+2, W2) -> rows.
    x_wp = jnp.pad(x_w, ((0, 0), (1, 1), (0, 0), (0, 0)))             # (N,H2+2,W2,3C)
    rows_in = (h2 + 2) * w2
    rows_out = h2 * w2
    x_flat = x_wp.reshape(n * rows_in, 3 * c_in)

    # Conv weight (C_out, C_in, ky, kx) -> (ky, kx*C_in + c, C_out).
    w_folded = jnp.transpose(weight, (2, 3, 1, 0)).reshape(3, 3 * c_in, c_out)
    b2 = bias.reshape(1, c_out)

    # (8,128) rule: the per-image row block must be a multiple of 8 sublanes.
    assert rows_in % 8 == 0 and rows_out % 8 == 0, (
        "per-image upsampled row count must be a multiple of 8; pad H/W")
    # TODO(synk): for very large images (v7x has 64 MiB VMEM/TC) the per-image
    # block should be row-tiled with a manual halo DMA instead of fully resident.

    kernel = partial(_conv_rows_kernel, w2=w2, rows_out=rows_out)

    out_flat = pl.pallas_call(
        kernel,
        out_shape=jax.ShapeDtypeStruct((n * rows_out, c_out), x.dtype),
        grid=(n,),
        in_specs=[
            # one image (plus its own H halo rows) per grid step
            pl.BlockSpec((rows_in, 3 * c_in), lambda i: (i, 0)),
            # fused/folded conv weight, resident across the grid
            pl.BlockSpec((3, 3 * c_in, c_out), lambda i: (0, 0, 0)),
            # bias, resident
            pl.BlockSpec((1, c_out), lambda i: (0, 0)),
        ],
        out_specs=pl.BlockSpec((rows_out, c_out), lambda i: (i, 0)),
        compiler_params=pltpu.CompilerParams(
            dimension_semantics=("parallel",),
            vmem_limit_bytes=48 * 1024 * 1024,
        ),
    )(x_flat, w_folded, b2)

    # rows -> NHWC -> NCHW (module's output layout).
    out = out_flat.reshape(n, h2, w2, c_out)
    return jnp.transpose(out, (0, 3, 1, 2))


if __name__ == "__main__":
    # Small shapes consistent with the module: batch=2, C_in=4, C_out=8, 16x16.
    batch, c_in, c_out, h, w = 2, 4, 8, 16, 16

    key = jax.random.PRNGKey(0)
    kx, kw, kb = jax.random.split(key, 3)

    # PyTorch-like Conv2d init: U(-1/sqrt(fan_in), 1/sqrt(fan_in)).
    fan_in = c_in * 3 * 3
    bound = 1.0 / math.sqrt(fan_in)
    weight = jax.random.uniform(kw, (c_out, c_in, 3, 3), jnp.float32, -bound, bound)
    bias = jax.random.uniform(kb, (c_out,), jnp.float32, -bound, bound)
    x = jax.random.normal(kx, (batch, c_in, h, w), jnp.float32)

    # Snap x / weight to bf16-representable values so the comparison is
    # insensitive to the MXU's / XLA conv's internal f32 pass decomposition.
    x = x.astype(jnp.bfloat16).astype(jnp.float32)
    weight = weight.astype(jnp.bfloat16).astype(jnp.float32)

    out = upsampler_block(x, weight, bias)
    out = jax.block_until_ready(out)

    # Pure-JAX reference: nearest 2x upsample + cross-correlation conv, pad=1.
    x_up_ref = jnp.repeat(jnp.repeat(x, 2, axis=2), 2, axis=3)
    ref = jax.lax.conv_general_dilated(
        x_up_ref, weight, window_strides=(1, 1), padding=((1, 1), (1, 1)),
        dimension_numbers=("NCHW", "OIHW", "NCHW"),
        precision=jax.lax.Precision.HIGHEST,
    ) + bias[None, :, None, None]

    assert out.shape == (batch, c_out, 2 * h, 2 * w)
    err = float(jnp.max(jnp.abs(out - ref)))
    assert jnp.allclose(out, ref, atol=1e-4, rtol=1e-4), err

    print("KERNEL_OK")
</pallas_src>

<mosaic_0001>
module attributes {stable_mosaic.version = 11 : i64} {
  func.func @_conv_rows_kernel(%arg0: i32, %arg1: memref<1088x12xf32, #tpu.memory_space<vmem>>, %arg2: memref<3x12x8xf32, #tpu.memory_space<vmem>>, %arg3: memref<1x8xf32, #tpu.memory_space<vmem>>, %arg4: memref<1024x8xf32, #tpu.memory_space<vmem>>) attributes {dimension_semantics = [#tpu.dimension_semantics<parallel>], iteration_bounds = array<i64: 2>, scalar_prefetch = 0 : i64, scratch_operands = 0 : i64, tpu.core_type = #tpu.core_type<tc>, window_params = [{transform_indices = @transform_0, window_bounds = array<i64: 1088, 12>}, {pipeline_mode = #tpu.pipeline_mode<synchronous>, transform_indices = @transform_1, window_bounds = array<i64: 3, 12, 8>}, {pipeline_mode = #tpu.pipeline_mode<synchronous>, transform_indices = @transform_2, window_bounds = array<i64: 1, 8>}, {transform_indices = @transform_3, window_bounds = array<i64: 1024, 8>}]} {
    %c0 = arith.constant 0 : index
    %c0_0 = arith.constant 0 : index
    %0 = vector.load %arg1[%c0, %c0_0] : memref<1088x12xf32, #tpu.memory_space<vmem>>, vector<1024x12xf32>
    %c0_1 = arith.constant 0 : index
    %c0_2 = arith.constant 0 : index
    %c0_3 = arith.constant 0 : index
    %1 = vector.load %arg2[%c0_1, %c0_2, %c0_3] : memref<3x12x8xf32, #tpu.memory_space<vmem>>, vector<1x12x8xf32>
    %2 = vector.shape_cast %1 : vector<1x12x8xf32> to vector<12x8xf32>
    %cst = arith.constant dense<0.000000e+00> : vector<1024x8xf32>
    %3 = tpu.matmul %0, %2, %cst {dimension_numbers = #tpu.dot_dimension_numbers<[1], [0], [0], [1], [0, 0, 1, 1], [], []>} : vector<1024x12xf32>, vector<12x8xf32>, vector<1024x8xf32> -> vector<1024x8xf32>
    %c32 = arith.constant 32 : index
    %c0_4 = arith.constant 0 : index
    %4 = vector.load %arg1[%c32, %c0_4] : memref<1088x12xf32, #tpu.memory_space<vmem>>, vector<1024x12xf32>
    %c1 = arith.constant 1 : index
    %c0_5 = arith.constant 0 : index
    %c0_6 = arith.constant 0 : index
    %5 = vector.load %arg2[%c1, %c0_5, %c0_6] : memref<3x12x8xf32, #tpu.memory_space<vmem>>, vector<1x12x8xf32>
    %6 = vector.shape_cast %5 : vector<1x12x8xf32> to vector<12x8xf32>
    %cst_7 = arith.constant dense<0.000000e+00> : vector<1024x8xf32>
    %7 = tpu.matmul %4, %6, %cst_7 {dimension_numbers = #tpu.dot_dimension_numbers<[1], [0], [0], [1], [0, 0, 1, 1], [], []>} : vector<1024x12xf32>, vector<12x8xf32>, vector<1024x8xf32> -> vector<1024x8xf32>
    %8 = arith.addf %3, %7 : vector<1024x8xf32>
    %c64 = arith.constant 64 : index
    %c0_8 = arith.constant 0 : index
    %9 = vector.load %arg1[%c64, %c0_8] : memref<1088x12xf32, #tpu.memory_space<vmem>>, vector<1024x12xf32>
    %c2 = arith.constant 2 : index
    %c0_9 = arith.constant 0 : index
    %c0_10 = arith.constant 0 : index
    %10 = vector.load %arg2[%c2, %c0_9, %c0_10] : memref<3x12x8xf32, #tpu.memory_space<vmem>>, vector<1x12x8xf32>
    %11 = vector.shape_cast %10 : vector<1x12x8xf32> to vector<12x8xf32>
    %cst_11 = arith.constant dense<0.000000e+00> : vector<1024x8xf32>
    %12 = tpu.matmul %9, %11, %cst_11 {dimension_numbers = #tpu.dot_dimension_numbers<[1], [0], [0], [1], [0, 0, 1, 1], [], []>} : vector<1024x12xf32>, vector<12x8xf32>, vector<1024x8xf32> -> vector<1024x8xf32>
    %13 = arith.addf %8, %12 : vector<1024x8xf32>
    %c0_12 = arith.constant 0 : index
    %c0_13 = arith.constant 0 : index
    %14 = vector.load %arg3[%c0_12, %c0_13] : memref<1x8xf32, #tpu.memory_space<vmem>>, vector<1x8xf32>
    %15 = vector.broadcast %14 : vector<1x8xf32> to vector<1024x8xf32>
    %16 = arith.addf %13, %15 : vector<1024x8xf32>
    %c0_14 = arith.constant 0 : index
    %c0_15 = arith.constant 0 : index
    %17 = vector.load %arg4[%c0_14, %c0_15] : memref<1024x8xf32, #tpu.memory_space<vmem>>, vector<1024x8xf32>
    tpu.vector_store %arg4[%c0_14, %c0_15], %16 {strides = array<i32>} : memref<1024x8xf32, #tpu.memory_space<vmem>>, vector<1024x8xf32>,
    return
  }
  func.func @transform_0(%arg0: i32) -> (i32, i32) {
    %c0_i32 = arith.constant 0 : i32
    %c0_i32_0 = arith.constant 0 : i32
    return %arg0, %c0_i32 : i32, i32
  }
  func.func @transform_1(%arg0: i32) -> (i32, i32, i32) {
    %c0_i32 = arith.constant 0 : i32
    %c0_i32_0 = arith.constant 0 : i32
    %c0_i32_1 = arith.constant 0 : i32
    %c0_i32_2 = arith.constant 0 : i32
    return %c0_i32, %c0_i32_0, %c0_i32_1 : i32, i32, i32
  }
  func.func @transform_2(%arg0: i32) -> (i32, i32) {
    %c0_i32 = arith.constant 0 : i32
    %c0_i32_0 = arith.constant 0 : i32
    %c0_i32_1 = arith.constant 0 : i32
    return %c0_i32, %c0_i32_0 : i32, i32
  }
  func.func @transform_3(%arg0: i32) -> (i32, i32) {
    %c0_i32 = arith.constant 0 : i32
    %c0_i32_0 = arith.constant 0 : i32
    return %arg0, %c0_i32 : i32, i32
  }
}

</mosaic_0001>

<llo_original>
// kernel: tpu_custom_call.1
$region0: #{tpu_custom_call.1}
  #allocation0 [shape = 'u32[]', space=smem, size = 0x4, offset = 0x4, fixed_abs, tag = 'smem constant byte address 0x4 - core index']
  #allocation1 [shape = 'u32[144,128]{1,0:T(1,128)}', space=vmem, size = 0x12000, scoped, tag = 'internal scratch']
  %s0 = inlined_call_operand.vmem [shape: f32[2176,12], index: 0, kind: input, shape index: {}]
  %s1 = inlined_call_operand.vmem [shape: f32[3,12,8], index: 1, kind: input, shape index: {}]
  %s2 = inlined_call_operand.vmem [shape: f32[1,8], index: 2, kind: input, shape index: {}]
  %s3 = inlined_call_operand.vmem [shape: f32[2048,8], index: 3, kind: output, shape index: {}]
  %s4 = sld [smem:[#allocation0]]
  $region45: #{tpu_custom_call.1} parent=0
    _
  %s6 = ssub.s32 1, %s4
  %s7 = scalar_select 0, %s6, %s4
  loop: start=0, step=1, limit=4
  $region2: #{tpu_custom_call.1} parent=0 // loop_pre_header
    _
  $region3: #{tpu_custom_call.1} parent=0 // loop_header
    %s9 = sphi 0, %s13
    %p10 = scmp.ge.s32.totalorder %s9, 4
    %s19 = sphi 0, %s21
    %s22 = sphi 0, %s19
    %s23 = sphi 0, %s22
    %s39 = sphi 0, %s23
    %s43 = sphi 0, %s43
    %s45 = sphi 0, %s43
    %s46 = sphi 0, %s45
    %s60 = sphi 0, %s46
    %s64 = sphi 0, %s64
    %s66 = sphi 0, %s64
    %s67 = sphi 0, %s66
    %s81 = sphi 0, %s67
    %s87 = sphi 0, %s89
    %s90 = sphi 0, %s87
    %s91 = sphi 0, %s90
    %s107 = sphi 0, %s91
  $region4: #{tpu_custom_call.1} parent=0 // loop_header_branch
    %12 = sbr.rel (%p10) target = $region8
  $region5: #{tpu_custom_call.1} parent=0 // loop_body
    %s14 = ssub.s32 %s9, 1
    %s15 = ssub.s32 %s9, 2
    %s16 = sadd.s32 %s9, 1
    %s17 = ssub.s32 %s9, %s16
    %p18 = scmp.eq.s32.totalorder %s17, 0
    %s20 = sadd.s32 %s19, 1
    %s21 = scalar_select %p18, %s19, %s20
    %p24 = pneg %p18
    %p25 = scmp.eq.s32.totalorder %s9, 1
    %p26 = por %p24, %p25
    %p27 = scmp.ne.s32.totalorder %s19, %s22
    %p28 = scmp.eq.s32.totalorder %s9, 0
    %p29 = por %p27, %p28
    %p30 = scmp.ne.s32.totalorder %s19, %s22
    %p31 = scmp.eq.s32.totalorder %s14, 1
    %p32 = por %p30, %p31
    %p33 = scmp.ne.s32.totalorder %s22, %s23
    %p34 = scmp.eq.s32.totalorder %s14, 0
    %p35 = por %p33, %p34
    %p36 = scmp.ne.s32.totalorder %s22, %s23
    %p37 = scmp.eq.s32.totalorder %s15, 1
    %p38 = por %p36, %p37
    %p40 = scmp.ne.s32.totalorder %s23, %s39
    %p41 = scmp.eq.s32.totalorder %s15, 0
    %p42 = por %p40, %p41
    %s44 = sadd.s32 %s43, 1
    %p47 = scmp.eq.s32.totalorder %s9, 1
    %p48 = scmp.ne.s32.totalorder %s43, %s45
    %p49 = scmp.eq.s32.totalorder %s9, 0
    %p50 = por %p48, %p49
    %p51 = scmp.ne.s32.totalorder %s43, %s45
    %p52 = scmp.eq.s32.totalorder %s14, 1
    %p53 = por %p51, %p52
    %p54 = scmp.ne.s32.totalorder %s45, %s46
    %p55 = scmp.eq.s32.totalorder %s14, 0
    %p56 = por %p54, %p55
    %p57 = scmp.ne.s32.totalorder %s45, %s46
    %p58 = scmp.eq.s32.totalorder %s15, 1
    %p59 = por %p57, %p58
    %p61 = scmp.ne.s32.totalorder %s46, %s60
    %p62 = scmp.eq.s32.totalorder %s15, 0
    %p63 = por %p61, %p62
    %s65 = sadd.s32 %s64, 1
    %p68 = scmp.eq.s32.totalorder %s9, 1
    %p69 = scmp.ne.s32.totalorder %s64, %s66
    %p70 = scmp.eq.s32.totalorder %s9, 0
    %p71 = por %p69, %p70
    %p72 = scmp.ne.s32.totalorder %s64, %s66
    %p73 = scmp.eq.s32.totalorder %s14, 1
    %p74 = por %p72, %p73
    %p75 = scmp.ne.s32.totalorder %s66, %s67
    %p76 = scmp.eq.s32.totalorder %s14, 0
    %p77 = por %p75, %p76
    %p78 = scmp.ne.s32.totalorder %s66, %s67
    %p79 = scmp.eq.s32.totalorder %s15, 1
    %p80 = por %p78, %p79
    %p82 = scmp.ne.s32.totalorder %s67, %s81
    %p83 = scmp.eq.s32.totalorder %s15, 0
    %p84 = por %p82, %p83
    %s85 = ssub.s32 %s9, %s16
    %p86 = scmp.eq.s32.totalorder %s85, 0
    %s88 = sadd.s32 %s87, 1
    %s89 = scalar_select %p86, %s87, %s88
    %p92 = pneg %p86
    %p93 = scmp.eq.s32.totalorder %s9, 1
    %p94 = por %p92, %p93
    %p95 = scmp.ne.s32.totalorder %s87, %s90
    %p96 = scmp.eq.s32.totalorder %s9, 0
    %p97 = por %p95, %p96
    %p98 = scmp.ne.s32.totalorder %s87, %s90
    %p99 = scmp.eq.s32.totalorder %s14, 1
    %p100 = por %p98, %p99
    %p101 = scmp.ne.s32.totalorder %s90, %s91
    %p102 = scmp.eq.s32.totalorder %s14, 0
    %p103 = por %p101, %p102
    %p104 = scmp.ne.s32.totalorder %s90, %s91
    %p105 = scmp.eq.s32.totalorder %s15, 1
    %p106 = por %p104, %p105
    %p108 = scmp.ne.s32.totalorder %s91, %s107
    %p109 = scmp.eq.s32.totalorder %s15, 0
    %p110 = por %p108, %p109
    %p111 = scmp.le.s32.totalorder 1, %s9
    %p112 = scmp.lt.s32.totalorder %s9, 3
    %p113 = pnand %p111, %p112
    %p114 = pneg %p113
    // Predicated region
    $region9: #{tpu_custom_call.1} parent=5 // pred_check
      _
    $region10: #{tpu_custom_call.1} parent=5 // pred_check_branch
      %116 = sbr.rel (%p113) target = $region12
    $region11: #{tpu_custom_call.1} parent=5 // pred_region
      %s117 = ssub.s32 %s9, 1
      // Predicated region
      $region13: #{tpu_custom_call.1} parent=11 // pred_check
        %p118 = pneg %p56
      $region14: #{tpu_custom_call.1} parent=11 // pred_check_branch
        %120 = sbr.rel (%p118) target = $region16
      $region15: #{tpu_custom_call.1} parent=11 // pred_region
        _
      $region16: #{tpu_custom_call.1} parent=11 // pred_fallthru
        _
      // Predicated region
      $region17: #{tpu_custom_call.1} parent=11 // pred_check
        %p121 = pneg %p77
      $region18: #{tpu_custom_call.1} parent=11 // pred_check_branch
        %123 = sbr.rel (%p121) target = $region20
      $region19: #{tpu_custom_call.1} parent=11 // pred_region
        _
      $region20: #{tpu_custom_call.1} parent=11 // pred_fallthru
        _
    $region12: #{tpu_custom_call.1} parent=5 // pred_fallthru
      _
    %p124 = scmp.lt.s32.totalorder %s9, 2
    // Predicated region
    $region21: #{tpu_custom_call.1} parent=5 // pred_check
      %p125 = pneg %p124
    $region22: #{tpu_custom_call.1} parent=5 // pred_check_branch
      %127 = sbr.rel (%p125) target = $region24
    $region23: #{tpu_custom_call.1} parent=5 // pred_region
      // Predicated region
      $region25: #{tpu_custom_call.1} parent=23 // pred_check
        %p128 = pneg %p29
      $region26: #{tpu_custom_call.1} parent=23 // pred_check_branch
        %130 = sbr.rel (%p128) target = $region28
      $region27: #{tpu_custom_call.1} parent=23 // pred_region
        %s131 = smul.u32 136, %s9
        %p132 = scmp.lt.s32.totalorder %s131, 271
        %s133 = scalar_select %p132, %s131, 271
        %s134 = smul.addr %s133, 8
        %s135 = scalar_lea.vmem %s0, %s134
        %s136 = smul.u32 136, %s9
      $region28: #{tpu_custom_call.1} parent=23 // pred_fallthru
        _
    $region24: #{tpu_custom_call.1} parent=5 // pred_fallthru
      _
    %p137 = scmp.le.s32.totalorder 1, %s9
    %p138 = scmp.lt.s32.totalorder %s9, 3
    %p139 = pnand %p137, %p138
    %p140 = pneg %p139
    // Predicated region
    $region29: #{tpu_custom_call.1} parent=5 // pred_check
      _
    $region30: #{tpu_custom_call.1} parent=5 // pred_check_branch
      %142 = sbr.rel (%p139) target = $region32
    $region31: #{tpu_custom_call.1} parent=5 // pred_region
      %s143 = ssub.s32 %s9, 1
      %s144 = smul.u32 136, %s14
      %p145 = scmp.lt.s32.totalorder %s144, 271
      %s146 = scalar_select %p145, %s144, 271
      %s147 = smul.addr %s146, 8
      %s148 = scalar_lea.vmem %s0, %s147
      %p149 = pneg %p35
      %p150 = pneg %p32
      %p151 = pneg %p56
      %p152 = pneg %p53
      %p153 = pneg %p77
      %p154 = pneg %p74
      %p155 = pneg %p103
      %p156 = pneg %p100
      %s157 = smul.u32 128, %s14
      %p158 = scmp.lt.s32.totalorder %s157, 255
      %s159 = scalar_select %p158, %s157, 255
      %s160 = smul.addr %s159, 8
      %s161 = scalar_lea.vmem %s3, %s160
      %s162 = smul.u32 136, %s14
      %p163 = scmp.lt.s32.totalorder %s162, 271
      %s164 = scalar_select %p163, %s162, 271
      %s165 = smul.addr %s164, 8
      %s166 = scalar_lea.vmem %s0, %s165
      %s167 = smul.u32 136, %s14
      %s168 = smul.u32 128, %s14
      %p169 = scmp.lt.s32.totalorder %s168, 255
      %s170 = scalar_select %p169, %s168, 255
      %s171 = smul.addr %s170, 8
      %s172 = scalar_lea.vmem %s3, %s171
      %s173 = smul.u32 128, %s14
      %v174 = vld [vmem:[%s166] sm:$0xff]
      %v175 = vld [vmem:[%s166 + $0x8] sm:$0xff]
      %v176 = vld [vmem:[%s166 + $0x10] sm:$0xff]
      %v177 = vld [vmem:[%s166 + $0x18] sm:$0xff]
      %v178 = vld [vmem:[%s166 + $0x20] sm:$0xff]
      %v179 = vld [vmem:[%s166 + $0x28] sm:$0xff]
      %v180 = vld [vmem:[%s166 + $0x30] sm:$0xff]
      %v181 = vld [vmem:[%s166 + $0x38] sm:$0xff]
      %v182 = vld [vmem:[%s166 + $0x40] sm:$0xff]
      %v183 = vld [vmem:[%s166 + $0x48] sm:$0xff]
      %v184 = vld [vmem:[%s166 + $0x50] sm:$0xff]
      %v185 = vld [vmem:[%s166 + $0x58] sm:$0xff]
      %v186 = vld [vmem:[%s166 + $0x60] sm:$0xff]
      %v187 = vld [vmem:[%s166 + $0x68] sm:$0xff]
      %v188 = vld [vmem:[%s166 + $0x70] sm:$0xff]
      %v189 = vld [vmem:[%s166 + $0x78] sm:$0xff]
      %v190 = vld [vmem:[%s166 + $0x80] sm:$0xff]
      %v191 = vld [vmem:[%s166 + $0x88] sm:$0xff]
      %v192 = vld [vmem:[%s166 + $0x90] sm:$0xff]
      %v193 = vld [vmem:[%s166 + $0x98] sm:$0xff]
      %v194 = vld [vmem:[%s166 + $0xa0] sm:$0xff]
      %v195 = vld [vmem:[%s166 + $0xa8] sm:$0xff]
      %v196 = vld [vmem:[%s166 + $0xb0] sm:$0xff]
      %v197 = vld [vmem:[%s166 + $0xb8] sm:$0xff]
      %v198 = vld [vmem:[%s166 + $0xc0] sm:$0xff]
      %v199 = vld [vmem:[%s166 + $0xc8] sm:$0xff]
      %v200 = vld [vmem:[%s166 + $0xd0] sm:$0xff]
      %v201 = vld [vmem:[%s166 + $0xd8] sm:$0xff]
      %v202 = vld [vmem:[%s166 + $0xe0] sm:$0xff]
      %v203 = vld [vmem:[%s166 + $0xe8] sm:$0xff]
      %v204 = vld [vmem:[%s166 + $0xf0] sm:$0xff]
      %v205 = vld [vmem:[%s166 + $0xf8] sm:$0xff]
      %v206 = vld [vmem:[%s166 + $0x100] sm:$0xff]
      %v207 = vld [vmem:[%s166 + $0x108] sm:$0xff]
      %v208 = vld [vmem:[%s166 + $0x110] sm:$0xff]
      %v209 = vld [vmem:[%s166 + $0x118] sm:$0xff]
      %v210 = vld [vmem:[%s166 + $0x120] sm:$0xff]
      %v211 = vld [vmem:[%s166 + $0x128] sm:$0xff]
      %v212 = vld [vmem:[%s166 + $0x130] sm:$0xff]
      %v213 = vld [vmem:[%s166 + $0x138] sm:$0xff]
      %v214 = vld [vmem:[%s166 + $0x140] sm:$0xff]
      %v215 = vld [vmem:[%s166 + $0x148] sm:$0xff]
      %v216 = vld [vmem:[%s166 + $0x150] sm:$0xff]
      %v217 = vld [vmem:[%s166 + $0x158] sm:$0xff]
      %v218 = vld [vmem:[%s166 + $0x160] sm:$0xff]
      %v219 = vld [vmem:[%s166 + $0x168] sm:$0xff]
      %v220 = vld [vmem:[%s166 + $0x170] sm:$0xff]
      %v221 = vld [vmem:[%s166 + $0x178] sm:$0xff]
      %v222 = vld [vmem:[%s166 + $0x180] sm:$0xff]
      %v223 = vld [vmem:[%s166 + $0x188] sm:$0xff]
      %v224 = vld [vmem:[%s166 + $0x190] sm:$0xff]
      %v225 = vld [vmem:[%s166 + $0x198] sm:$0xff]
      %v226 = vld [vmem:[%s166 + $0x1a0] sm:$0xff]
      %v227 = vld [vmem:[%s166 + $0x1a8] sm:$0xff]
      %v228 = vld [vmem:[%s166 + $0x1b0] sm:$0xff]
      %v229 = vld [vmem:[%s166 + $0x1b8] sm:$0xff]
      %v230 = vld [vmem:[%s166 + $0x1c0] sm:$0xff]
      %v231 = vld [vmem:[%s166 + $0x1c8] sm:$0xff]
      %v232 = vld [vmem:[%s166 + $0x1d0] sm:$0xff]
      %v233 = vld [vmem:[%s166 + $0x1d8] sm:$0xff]
      %v234 = vld [vmem:[%s166 + $0x1e0] sm:$0xff]
      %v235 = vld [vmem:[%s166 + $0x1e8] sm:$0xff]
      %v236 = vld [vmem:[%s166 + $0x1f0] sm:$0xff]
      %v237 = vld [vmem:[%s166 + $0x1f8] sm:$0xff]
      %v238 = vld [vmem:[%s166 + $0x200] sm:$0xff]
      %v239 = vld [vmem:[%s166 + $0x208] sm:$0xff]
      %v240 = vld [vmem:[%s166 + $0x210] sm:$0xff]
      %v241 = vld [vmem:[%s166 + $0x218] sm:$0xff]
      %v242 = vld [vmem:[%s166 + $0x220] sm:$0xff]
      %v243 = vld [vmem:[%s166 + $0x228] sm:$0xff]
      %v244 = vld [vmem:[%s166 + $0x230] sm:$0xff]
      %v245 = vld [vmem:[%s166 + $0x238] sm:$0xff]
      %v246 = vld [vmem:[%s166 + $0x240] sm:$0xff]
      %v247 = vld [vmem:[%s166 + $0x248] sm:$0xff]
      %v248 = vld [vmem:[%s166 + $0x250] sm:$0xff]
      %v249 = vld [vmem:[%s166 + $0x258] sm:$0xff]
      %v250 = vld [vmem:[%s166 + $0x260] sm:$0xff]
      %v251 = vld [vmem:[%s166 + $0x268] sm:$0xff]
      %v252 = vld [vmem:[%s166 + $0x270] sm:$0xff]
      %v253 = vld [vmem:[%s166 + $0x278] sm:$0xff]
      %v254 = vld [vmem:[%s166 + $0x280] sm:$0xff]
      %v255 = vld [vmem:[%s166 + $0x288] sm:$0xff]
      %v256 = vld [vmem:[%s166 + $0x290] sm:$0xff]
      %v257 = vld [vmem:[%s166 + $0x298] sm:$0xff]
      %v258 = vld [vmem:[%s166 + $0x2a0] sm:$0xff]
      %v259 = vld [vmem:[%s166 + $0x2a8] sm:$0xff]
      %v260 = vld [vmem:[%s166 + $0x2b0] sm:$0xff]
      %v261 = vld [vmem:[%s166 + $0x2b8] sm:$0xff]
      %v262 = vld [vmem:[%s166 + $0x2c0] sm:$0xff]
      %v263 = vld [vmem:[%s166 + $0x2c8] sm:$0xff]
      %v264 = vld [vmem:[%s166 + $0x2d0] sm:$0xff]
      %v265 = vld [vmem:[%s166 + $0x2d8] sm:$0xff]
      %v266 = vld [vmem:[%s166 + $0x2e0] sm:$0xff]
      %v267 = vld [vmem:[%s166 + $0x2e8] sm:$0xff]
      %v268 = vld [vmem:[%s166 + $0x2f0] sm:$0xff]
      %v269 = vld [vmem:[%s166 + $0x2f8] sm:$0xff]
      %v270 = vld [vmem:[%s166 + $0x300] sm:$0xff]
      %v271 = vld [vmem:[%s166 + $0x308] sm:$0xff]
      %v272 = vld [vmem:[%s166 + $0x310] sm:$0xff]
      %v273 = vld [vmem:[%s166 + $0x318] sm:$0xff]
      %v274 = vld [vmem:[%s166 + $0x320] sm:$0xff]
      %v275 = vld [vmem:[%s166 + $0x328] sm:$0xff]
      %v276 = vld [vmem:[%s166 + $0x330] sm:$0xff]
      %v277 = vld [vmem:[%s166 + $0x338] sm:$0xff]
      %v278 = vld [vmem:[%s166 + $0x340] sm:$0xff]
      %v279 = vld [vmem:[%s166 + $0x348] sm:$0xff]
      %v280 = vld [vmem:[%s166 + $0x350] sm:$0xff]
      %v281 = vld [vmem:[%s166 + $0x358] sm:$0xff]
      %v282 = vld [vmem:[%s166 + $0x360] sm:$0xff]
      %v283 = vld [vmem:[%s166 + $0x368] sm:$0xff]
      %v284 = vld [vmem:[%s166 + $0x370] sm:$0xff]
      %v285 = vld [vmem:[%s166 + $0x378] sm:$0xff]
      %v286 = vld [vmem:[%s166 + $0x380] sm:$0xff]
      %v287 = vld [vmem:[%s166 + $0x388] sm:$0xff]
      %v288 = vld [vmem:[%s166 + $0x390] sm:$0xff]
      %v289 = vld [vmem:[%s166 + $0x398] sm:$0xff]
      %v290 = vld [vmem:[%s166 + $0x3a0] sm:$0xff]
      %v291 = vld [vmem:[%s166 + $0x3a8] sm:$0xff]
      %v292 = vld [vmem:[%s166 + $0x3b0] sm:$0xff]
      %v293 = vld [vmem:[%s166 + $0x3b8] sm:$0xff]
      %v294 = vld [vmem:[%s166 + $0x3c0] sm:$0xff]
      %v295 = vld [vmem:[%s166 + $0x3c8] sm:$0xff]
      %v296 = vld [vmem:[%s166 + $0x3d0] sm:$0xff]
      %v297 = vld [vmem:[%s166 + $0x3d8] sm:$0xff]
      %v298 = vld [vmem:[%s166 + $0x3e0] sm:$0xff]
      %v299 = vld [vmem:[%s166 + $0x3e8] sm:$0xff]
      %v300 = vld [vmem:[%s166 + $0x3f0] sm:$0xff]
      %v301 = vld [vmem:[%s166 + $0x3f8] sm:$0xff]
      %v302 = vld [vmem:[%s1] sm:$0xff]
      %v303 = vld [vmem:[%s1 + $0x8] sm:$0xf]
      %v304 = vld [vmem:[%s166 + $0x400] sm:$0xff]
      %v305 = vld [vmem:[%s166 + $0x408] sm:$0xff]
      %v306 = vld [vmem:[%s166 + $0x410] sm:$0xff]
      %v307 = vld [vmem:[%s166 + $0x418] sm:$0xff]
      %s308 = scalar_lea.vmem %s1, 16
      %v309 = vld [vmem:[%s308] sm:$0xff]
      %v310 = vld [vmem:[%s308 + $0x8] sm:$0xf]
      %vm311 = vcmask 97280
      %v313 = vsel %vm311, %v178, 0
      %v316 = vsel %vm311, %v179, 0
      %v319 = vsel %vm311, %v180, 0
      %v322 = vsel %vm311, %v181, 0
      %v325 = vsel %vm311, %v182, 0
      %v328 = vsel %vm311, %v183, 0
      %v331 = vsel %vm311, %v184, 0
      %v334 = vsel %vm311, %v185, 0
      %v337 = vsel %vm311, %v186, 0
      %v340 = vsel %vm311, %v187, 0
      %v343 = vsel %vm311, %v188, 0
      %v346 = vsel %vm311, %v189, 0
      %v349 = vsel %vm311, %v190, 0
      %v352 = vsel %vm311, %v191, 0
      %v355 = vsel %vm311, %v192, 0
      %v358 = vsel %vm311, %v193, 0
      %v361 = vsel %vm311, %v194, 0
      %v364 = vsel %vm311, %v195, 0
      %v367 = vsel %vm311, %v196, 0
      %v370 = vsel %vm311, %v197, 0
      %v373 = vsel %vm311, %v198, 0
      %v376 = vsel %vm311, %v199, 0
      %v379 = vsel %vm311, %v200, 0
      %v382 = vsel %vm311, %v201, 0
      %v385 = vsel %vm311, %v202, 0
      %v388 = vsel %vm311, %v203, 0
      %v391 = vsel %vm311, %v204, 0
      %v394 = vsel %vm311, %v205, 0
      %v397 = vsel %vm311, %v206, 0
      %v400 = vsel %vm311, %v207, 0
      %v403 = vsel %vm311, %v208, 0
      %v406 = vsel %vm311, %v209, 0
      %v409 = vsel %vm311, %v210, 0
      %v412 = vsel %vm311, %v211, 0
      %v415 = vsel %vm311, %v212, 0
      %v418 = vsel %vm311, %v213, 0
      %v421 = vsel %vm311, %v214, 0
      %v424 = vsel %vm311, %v215, 0
      %v427 = vsel %vm311, %v216, 0
      %v430 = vsel %vm311, %v217, 0
      %v433 = vsel %vm311, %v218, 0
      %v436 = vsel %vm311, %v219, 0
      %v439 = vsel %vm311, %v220, 0
      %v442 = vsel %vm311, %v221, 0
      %v445 = vsel %vm311, %v222, 0
      %v448 = vsel %vm311, %v223, 0
      %v451 = vsel %vm311, %v224, 0
      %v454 = vsel %vm311, %v225, 0
      %v457 = vsel %vm311, %v226, 0
      %v460 = vsel %vm311, %v227, 0
      %v463 = vsel %vm311, %v228, 0
      %v466 = vsel %vm311, %v229, 0
      %v469 = vsel %vm311, %v230, 0
      %v472 = vsel %vm311, %v231, 0
      %v475 = vsel %vm311, %v232, 0
      %v478 = vsel %vm311, %v233, 0
      %v481 = vsel %vm311, %v234, 0
      %v484 = vsel %vm311, %v235, 0
      %v487 = vsel %vm311, %v236, 0
      %v490 = vsel %vm311, %v237, 0
      %v493 = vsel %vm311, %v238, 0
      %v496 = vsel %vm311, %v239, 0
      %v499 = vsel %vm311, %v240, 0
      %v502 = vsel %vm311, %v241, 0
      %v505 = vsel %vm311, %v242, 0
      %v508 = vsel %vm311, %v243, 0
      %v511 = vsel %vm311, %v244, 0
      %v514 = vsel %vm311, %v245, 0
      %v517 = vsel %vm311, %v246, 0
      %v520 = vsel %vm311, %v247, 0
      %v523 = vsel %vm311, %v248, 0
      %v526 = vsel %vm311, %v249, 0
      %v529 = vsel %vm311, %v250, 0
      %v532 = vsel %vm311, %v251, 0
      %v535 = vsel %vm311, %v252, 0
      %v538 = vsel %vm311, %v253, 0
      %v541 = vsel %vm311, %v254, 0
      %v544 = vsel %vm311, %v255, 0
      %v547 = vsel %vm311, %v256, 0
      %v550 = vsel %vm311, %v257, 0
      %v553 = vsel %vm311, %v258, 0
      %v556 = vsel %vm311, %v259, 0
      %v559 = vsel %vm311, %v260, 0
      %v562 = vsel %vm311, %v261, 0
      %v565 = vsel %vm311, %v262, 0
      %v568 = vsel %vm311, %v263, 0
      %v571 = vsel %vm311, %v264, 0
      %v574 = vsel %vm311, %v265, 0
      %v577 = vsel %vm311, %v266, 0
      %v580 = vsel %vm311, %v267, 0
      %v583 = vsel %vm311, %v268, 0
      %v586 = vsel %vm311, %v269, 0
      %v589 = vsel %vm311, %v270, 0
      %v592 = vsel %vm311, %v271, 0
      %v595 = vsel %vm311, %v272, 0
      %v598 = vsel %vm311, %v273, 0
      %v601 = vsel %vm311, %v274, 0
      %v604 = vsel %vm311, %v275, 0
      %v607 = vsel %vm311, %v276, 0
      %v610 = vsel %vm311, %v277, 0
      %v613 = vsel %vm311, %v278, 0
      %v616 = vsel %vm311, %v279, 0
      %v619 = vsel %vm311, %v280, 0
      %v622 = vsel %vm311, %v281, 0
      %v625 = vsel %vm311, %v282, 0
      %v628 = vsel %vm311, %v283, 0
      %v631 = vsel %vm311, %v284, 0
      %v634 = vsel %vm311, %v285, 0
      %v637 = vsel %vm311, %v286, 0
      %v640 = vsel %vm311, %v287, 0
      %v643 = vsel %vm311, %v288, 0
      %v646 = vsel %vm311, %v289, 0
      %v649 = vsel %vm311, %v290, 0
      %v652 = vsel %vm311, %v291, 0
      %v655 = vsel %vm311, %v292, 0
      %v658 = vsel %vm311, %v293, 0
      %v661 = vsel %vm311, %v294, 0
      %v664 = vsel %vm311, %v295, 0
      %v667 = vsel %vm311, %v296, 0
      %v670 = vsel %vm311, %v297, 0
      %v673 = vsel %vm311, %v298, 0
      %v676 = vsel %vm311, %v299, 0
      %v679 = vsel %vm311, %v300, 0
      %v682 = vsel %vm311, %v301, 0
      %v685 = vsel %vm311, %v304, 0
      %v688 = vsel %vm311, %v305, 0
      %v691 = vsel %vm311, %v306, 0
      %v694 = vsel %vm311, %v307, 0
      %vm696 = vcmask 1043456
      %v698 = vsel %vm696, %v310, 0
      %700 = vmatprep.subr.mxu0 0.0
      %701 = vmatpush1.msra.mxu0 %v309
      %702 = vmatprep.subr.mxu0 0.0
      %703 = vmatpush1.msra.mxu0 %v698
      %704 = vmatprep.subr.mxu0 0.0
      %705 = vmatpush1.msra.mxu0 0.0
      %706 = vmatprep.subr.mxu0 0.0
      %707 = vmatpush1.msra.mxu0 0.0
      %708 = vmatprep.subr.mxu0 0.0
      %709 = vmatpush1.msra.mxu0 0.0
      %710 = vmatprep.subr.mxu0 0.0
      %711 = vmatpush1.msra.mxu0 0.0
      %712 = vmatprep.subr.mxu0 0.0
      %713 = vmatpush1.msra.mxu0 0.0
      %714 = vmatprep.subr.mxu0 0.0
      %715 = vmatpush1.msra.mxu0 0.0
      %716 = vmatprep.subr.mxu0 0.0
      %717 = vmatpush1.msra.mxu0 0.0
      %718 = vmatprep.subr.mxu0 0.0
      %719 = vmatpush1.msra.mxu0 0.0
      %720 = vmatprep.subr.mxu0 0.0
      %721 = vmatpush1.msra.mxu0 0.0
      %722 = vmatprep.subr.mxu0 0.0
      %723 = vmatpush1.msra.mxu0 0.0
      %724 = vmatprep.subr.mxu0 0.0
      %725 = vmatpush1.msra.mxu0 0.0
      %726 = vmatprep.subr.mxu0 0.0
      %727 = vmatpush1.msra.mxu0 0.0
      %728 = vmatprep.subr.mxu0 0.0
      %729 = vmatpush1.msra.mxu0 0.0
      %730 = vmatprep.subr.mxu0 0.0
      %731 = vmatpush1.msra.mxu0 0.0
      %732 = vmatprep.subr.mxu0 0.0
      %733 = vmatpush1.msra.mxu0 0.0
      %734 = vmatprep.subr.mxu0 0.0
      %735 = vmatpush1.msra.mxu0 0.0
      %736 = vmatprep.subr.mxu0 0.0
      %737 = vmatpush1.msra.mxu0 0.0
      %738 = vmatprep.subr.mxu0 0.0
      %739 = vmatpush1.msra.mxu0 0.0
      %740 = vmatprep.subr.mxu0 0.0
      %741 = vmatpush1.msra.mxu0 0.0
      %742 = vmatprep.subr.mxu0 0.0
      %743 = vmatpush1.msra.mxu0 0.0
      %744 = vmatprep.subr.mxu0 0.0
      %745 = vmatpush1.msra.mxu0 0.0
      %746 = vmatprep.subr.mxu0 0.0
      %747 = vmatpush1.msra.mxu0 0.0
      %748 = vmatprep.subr.mxu0 0.0
      %749 = vmatpush1.msra.mxu0 0.0
      %750 = vmatprep.subr.mxu0 0.0
      %751 = vmatpush1.msra.mxu0 0.0
      %752 = vmatprep.subr.mxu0 0.0
      %753 = vmatpush1.msra.mxu0 0.0
      %754 = vmatprep.subr.mxu0 0.0
      %755 = vmatpush1.msra.mxu0 0.0
      %756 = vmatprep.subr.mxu0 0.0
      %757 = vmatpush1.msra.mxu0 0.0
      %758 = vmatprep.subr.mxu0 0.0
      %759 = vmatpush1.msra.mxu0 0.0
      %760 = vmatprep.subr.mxu0 0.0
      %761 = vmatpush1.msra.mxu0 0.0
      %762 = vmatprep.subr.mxu0 0.0
      %763 = vmatpush1.msra.mxu0 0.0
      %764 = vmatprep.mubr.f32.mxu0 0.0
      %765 = vmatmul.mubr.f32.gmra.mrb[0].mxu0 %v313
      %v766 = vpop.f32.mrb[0].mxu0
      %v767 = vadd.f32 0.0, %v766
      %v768 = vpop.f32.mrb[0].mxu0
      %769 = vmatprep.mubr.f32.mxu0 0.0
      %770 = vmatmul.mubr.f32.gmra.mrb[0].mxu0 %v316
      %v771 = vpop.f32.mrb[0].mxu0
      %v772 = vadd.f32 0.0, %v771
      %v773 = vpop.f32.mrb[0].mxu0
      %774 = vmatprep.mubr.f32.mxu0 0.0
      %775 = vmatmul.mubr.f32.gmra.mrb[0].mxu0 %v319
      %v776 = vpop.f32.mrb[0].mxu0
      %v777 = vadd.f32 0.0, %v776
      %v778 = vpop.f32.mrb[0].mxu0
      %779 = vmatprep.mubr.f32.mxu0 0.0
      %780 = vmatmul.mubr.f32.gmra.mrb[0].mxu0 %v322
      %v781 = vpop.f32.mrb[0].mxu0
      %v782 = vadd.f32 0.0, %v781
      %v783 = vpop.f32.mrb[0].mxu0
      %784 = vmatprep.mubr.f32.mxu0 0.0
      %785 = vmatmul.mubr.f32.gmra.mrb[0].mxu0 %v325
      %v786 = vpop.f32.mrb[0].mxu0
      %v787 = vadd.f32 0.0, %v786
      %v788 = vpop.f32.mrb[0].mxu0
      %789 = vmatprep.mubr.f32.mxu0 0.0
      %790 = vmatmul.mubr.f32.gmra.mrb[0].mxu0 %v328
      %v791 = vpop.f32.mrb[0].mxu0
      %v792 = vadd.f32 0.0, %v791
      %v793 = vpop.f32.mrb[0].mxu0
      %794 = vmatprep.mubr.f32.mxu0 0.0
      %795 = vmatmul.mubr.f32.gmra.mrb[0].mxu0 %v331
      %v796 = vpop.f32.mrb[0].mxu0
      %v797 = vadd.f32 0.0, %v796
      %v798 = vpop.f32.mrb[0].mxu0
      %799 = vmatprep.mubr.f32.mxu0 0.0
      %800 = vmatmul.mubr.f32.gmra.mrb[0].mxu0 %v334
      %v801 = vpop.f32.mrb[0].mxu0
      %v802 = vadd.f32 0.0, %v801
      %v803 = vpop.f32.mrb[0].mxu0
      %804 = vmatprep.mubr.f32.mxu0 0.0
      %805 = vmatmul.mubr.f32.gmra.mrb[0].mxu0 %v337
      %v806 = vpop.f32.mrb[0].mxu0
      %v807 = vadd.f32 0.0, %v806
      %v808 = vpop.f32.mrb[0].mxu0
      %809 = vmatprep.mubr.f32.mxu0 0.0
      %810 = vmatmul.mubr.f32.gmra.mrb[0].mxu0 %v340
      %v811 = vpop.f32.mrb[0].mxu0
      %v812 = vadd.f32 0.0, %v811
      %v813 = vpop.f32.mrb[0].mxu0
      %814 = vmatprep.mubr.f32.mxu0 0.0
      %815 = vmatmul.mubr.f32.gmra.mrb[0].mxu0 %v343
      %v816 = vpop.f32.mrb[0].mxu0
      %v817 = vadd.f32 0.0, %v816
      %v818 = vpop.f32.mrb[0].mxu0
      %819 = vmatprep.mubr.f32.mxu0 0.0
      %820 = vmatmul.mubr.f32.gmra.mrb[0].mxu0 %v346
      %v821 = vpop.f32.mrb[0].mxu0
      %v822 = vadd.f32 0.0, %v821
      %v823 = vpop.f32.mrb[0].mxu0
      %824 = vmatprep.mubr.f32.mxu0 0.0
      %825 = vmatmul.mubr.f32.gmra.mrb[0].mxu0 %v349
      %v826 = vpop.f32.mrb[0].mxu0
      %v827 = vadd.f32 0.0, %v826
      %v828 = vpop.f32.mrb[0].mxu0
      %829 = vmatprep.mubr.f32.mxu0 0.0
      %830 = vmatmul.mubr.f32.gmra.mrb[0].mxu0 %v352
      %v831 = vpop.f32.mrb[0].mxu0
      %v832 = vadd.f32 0.0, %v831
      %v833 = vpop.f32.mrb[0].mxu0
      %834 = vmatprep.mubr.f32.mxu0 0.0
      %835 = vmatmul.mubr.f32.gmra.mrb[0].mxu0 %v355
      %v836 = vpop.f32.mrb[0].mxu0
      %v837 = vadd.f32 0.0, %v836
      %v838 = vpop.f32.mrb[0].mxu0
      %839 = vmatprep.mubr.f32.mxu0 0.0
      %840 = vmatmul.mubr.f32.gmra.mrb[0].mxu0 %v358
      %v841 = vpop.f32.mrb[0].mxu0
      %v842 = vadd.f32 0.0, %v841
      %v843 = vpop.f32.mrb[0].mxu0
      %844 = vmatprep.mubr.f32.mxu0 0.0
      %845 = vmatmul.mubr.f32.gmra.mrb[0].mxu0 %v361
      %v846 = vpop.f32.mrb[0].mxu0
      %v847 = vadd.f32 0.0, %v846
      %v848 = vpop.f32.mrb[0].mxu0
      %849 = vmatprep.mubr.f32.mxu0 0.0
      %850 = vmatmul.mubr.f32.gmra.mrb[0].mxu0 %v364
      %v851 = vpop.f32.mrb[0].mxu0
      %v852 = vadd.f32 0.0, %v851
      %v853 = vpop.f32.mrb[0].mxu0
      %854 = vmatprep.mubr.f32.mxu0 0.0
      %855 = vmatmul.mubr.f32.gmra.mrb[0].mxu0 %v367
      %v856 = vpop.f32.mrb[0].mxu0
      %v857 = vadd.f32 0.0, %v856
      %v858 = vpop.f32.mrb[0].mxu0
      %859 = vmatprep.mubr.f32.mxu0 0.0
      %860 = vmatmul.mubr.f32.gmra.mrb[0].mxu0 %v370
      %v861 = vpop.f32.mrb[0].mxu0
      %v862 = vadd.f32 0.0, %v861
      %v863 = vpop.f32.mrb[0].mxu0
      %864 = vmatprep.mubr.f32.mxu0 0.0
      %865 = vmatmul.mubr.f32.gmra.mrb[0].mxu0 %v373
      %v866 = vpop.f32.mrb[0].mxu0
      %v867 = vadd.f32 0.0, %v866
      %v868 = vpop.f32.mrb[0].mxu0
      %869 = vmatprep.mubr.f32.mxu0 0.0
      %870 = vmatmul.mubr.f32.gmra.mrb[0].mxu0 %v376
      %v871 = vpop.f32.mrb[0].mxu0
      %v872 = vadd.f32 0.0, %v871
      %v873 = vpop.f32.mrb[0].mxu0
      %874 = vmatprep.mubr.f32.mxu0 0.0
      %875 = vmatmul.mubr.f32.gmra.mrb[0].mxu0 %v379
      %v876 = vpop.f32.mrb[0].mxu0
      %v877 = vadd.f32 0.0, %v876
      %v878 = vpop.f32.mrb[0].mxu0
      %879 = vmatprep.mubr.f32.mxu0 0.0
      %880 = vmatmul.mubr.f32.gmra.mrb[0].mxu0 %v382
      %v881 = vpop.f32.mrb[0].mxu0
      %v882 = vadd.f32 0.0, %v881
      %v883 = vpop.f32.mrb[0].mxu0
      %884 = vmatprep.mubr.f32.mxu0 0.0
      %885 = vmatmul.mubr.f32.gmra.mrb[0].mxu0 %v385
      %v886 = vpop.f32.mrb[0].mxu0
      %v887 = vadd.f32 0.0, %v886
      %v888 = vpop.f32.mrb[0].mxu0
      %889 = vmatprep.mubr.f32.mxu0 0.0
      %890 = vmatmul.mubr.f32.gmra.mrb[0].mxu0 %v388
      %v891 = vpop.f32.mrb[0].mxu0
      %v892 = vadd.f32 0.0, %v891
      %v893 = vpop.f32.mrb[0].mxu0
      %894 = vmatprep.mubr.f32.mxu0 0.0
      %895 = vmatmul.mubr.f32.gmra.mrb[0].mxu0 %v391
      %v896 = vpop.f32.mrb[0].mxu0
      %v897 = vadd.f32 0.0, %v896
      %v898 = vpop.f32.mrb[0].mxu0
      %899 = vmatprep.mubr.f32.mxu0 0.0
      %900 = vmatmul.mubr.f32.gmra.mrb[0].mxu0 %v394
      %v901 = vpop.f32.mrb[0].mxu0
      %v902 = vadd.f32 0.0, %v901
      %v903 = vpop.f32.mrb[0].mxu0
      %904 = vmatprep.mubr.f32.mxu0 0.0
      %905 = vmatmul.mubr.f32.gmra.mrb[0].mxu0 %v397
      %v906 = vpop.f32.mrb[0].mxu0
      %v907 = vadd.f32 0.0, %v906
      %v908 = vpop.f32.mrb[0].mxu0
      %909 = vmatprep.mubr.f32.mxu0 0.0
      %910 = vmatmul.mubr.f32.gmra.mrb[0].mxu0 %v400
      %v911 = vpop.f32.mrb[0].mxu0
      %v912 = vadd.f32 0.0, %v911
      %v913 = vpop.f32.mrb[0].mxu0
      %914 = vmatprep.mubr.f32.mxu0 0.0
      %915 = vmatmul.mubr.f32.gmra.mrb[0].mxu0 %v403
      %v916 = vpop.f32.mrb[0].mxu0
      %v917 = vadd.f32 0.0, %v916
      %v918 = vpop.f32.mrb[0].mxu0
      %919 = vmatprep.mubr.f32.mxu0 0.0
      %920 = vmatmul.mubr.f32.gmra.mrb[0].mxu0 %v406
      %v921 = vpop.f32.mrb[0].mxu0
      %v922 = vadd.f32 0.0, %v921
      %v923 = vpop.f32.mrb[0].mxu0
      %924 = vmatprep.mubr.f32.mxu0 0.0
      %925 = vmatmul.mubr.f32.gmra.mrb[0].mxu0 %v409
      %v926 = vpop.f32.mrb[0].mxu0
      %v927 = vadd.f32 0.0, %v926
      %v928 = vpop.f32.mrb[0].mxu0
      %929 = vmatprep.mubr.f32.mxu0 0.0
      %930 = vmatmul.mubr.f32.gmra.mrb[0].mxu0 %v412
      %v931 = vpop.f32.mrb[0].mxu0
      %v932 = vadd.f32 0.0, %v931
      %v933 = vpop.f32.mrb[0].mxu0
      %934 = vmatprep.mubr.f32.mxu0 0.0
      %935 = vmatmul.mubr.f32.gmra.mrb[0].mxu0 %v415
      %v936 = vpop.f32.mrb[0].mxu0
      %v937 = vadd.f32 0.0, %v936
      %v938 = vpop.f32.mrb[0].mxu0
      %939 = vmatprep.mubr.f32.mxu0 0.0
      %940 = vmatmul.mubr.f32.gmra.mrb[0].mxu0 %v418
      %v941 = vpop.f32.mrb[0].mxu0
      %v942 = vadd.f32 0.0, %v941
      %v943 = vpop.f32.mrb[0].mxu0
      %944 = vmatprep.mubr.f32.mxu0 0.0
      %945 = vmatmul.mubr.f32.gmra.mrb[0].mxu0 %v421
      %v946 = vpop.f32.mrb[0].mxu0
      %v947 = vadd.f32 0.0, %v946
      %v948 = vpop.f32.mrb[0].mxu0
      %949 = vmatprep.mubr.f32.mxu0 0.0
      %950 = vmatmul.mubr.f32.gmra.mrb[0].mxu0 %v424
      %v951 = vpop.f32.mrb[0].mxu0
      %v952 = vadd.f32 0.0, %v951
      %v953 = vpop.f32.mrb[0].mxu0
      %954 = vmatprep.mubr.f32.mxu0 0.0
      %955 = vmatmul.mubr.f32.gmra.mrb[0].mxu0 %v427
      %v956 = vpop.f32.mrb[0].mxu0
      %v957 = vadd.f32 0.0, %v956
      %v958 = vpop.f32.mrb[0].mxu0
      %959 = vmatprep.mubr.f32.mxu0 0.0
      %960 = vmatmul.mubr.f32.gmra.mrb[0].mxu0 %v430
      %v961 = vpop.f32.mrb[0].mxu0
      %v962 = vadd.f32 0.0, %v961
      %v963 = vpop.f32.mrb[0].mxu0
      %964 = vmatprep.mubr.f32.mxu0 0.0
      %965 = vmatmul.mubr.f32.gmra.mrb[0].mxu0 %v433
      %v966 = vpop.f32.mrb[0].mxu0
      %v967 = vadd.f32 0.0, %v966
      %v968 = vpop.f32.mrb[0].mxu0
      %969 = vmatprep.mubr.f32.mxu0 0.0
      %970 = vmatmul.mubr.f32.gmra.mrb[0].mxu0 %v436
      %v971 = vpop.f32.mrb[0].mxu0
      %v972 = vadd.f32 0.0, %v971
      %v973 = vpop.f32.mrb[0].mxu0
      %974 = vmatprep.mubr.f32.mxu0 0.0
      %975 = vmatmul.mubr.f32.gmra.mrb[0].mxu0 %v439
      %v976 = vpop.f32.mrb[0].mxu0
      %v977 = vadd.f32 0.0, %v976
      %v978 = vpop.f32.mrb[0].mxu0
      %979 = vmatprep.mubr.f32.mxu0 0.0
      %980 = vmatmul.mubr.f32.gmra.mrb[0].mxu0 %v442
      %v981 = vpop.f32.mrb[0].mxu0
      %v982 = vadd.f32 0.0, %v981
      %v983 = vpop.f32.mrb[0].mxu0
      %984 = vmatprep.mubr.f32.mxu0 0.0
      %985 = vmatmul.mubr.f32.gmra.mrb[0].mxu0 %v445
      %v986 = vpop.f32.mrb[0].mxu0
      %v987 = vadd.f32 0.0, %v986
      %v988 = vpop.f32.mrb[0].mxu0
      %989 = vmatprep.mubr.f32.mxu0 0.0
      %990 = vmatmul.mubr.f32.gmra.mrb[0].mxu0 %v448
      %v991 = vpop.f32.mrb[0].mxu0
      %v992 = vadd.f32 0.0, %v991
      %v993 = vpop.f32.mrb[0].mxu0
      %994 = vmatprep.mubr.f32.mxu0 0.0
      %995 = vmatmul.mubr.f32.gmra.mrb[0].mxu0 %v451
      %v996 = vpop.f32.mrb[0].mxu0
      %v997 = vadd.f32 0.0, %v996
      %v998 = vpop.f32.mrb[0].mxu0
      %999 = vmatprep.mubr.f32.mxu0 0.0
      %1000 = vmatmul.mubr.f32.gmra.mrb[0].mxu0 %v454
      %v1001 = vpop.f32.mrb[0].mxu0
      %v1002 = vadd.f32 0.0, %v1001
      %v1003 = vpop.f32.mrb[0].mxu0
      %1004 = vmatprep.mubr.f32.mxu0 0.0
      %1005 = vmatmul.mubr.f32.gmra.mrb[0].mxu0 %v457
      %v1006 = vpop.f32.mrb[0].mxu0
      %v1007 = vadd.f32 0.0, %v1006
      %v1008 = vpop.f32.mrb[0].mxu0
      %1009 = vmatprep.mubr.f32.mxu0 0.0
      %1010 = vmatmul.mubr.f32.gmra.mrb[0].mxu0 %v460
      %v1011 = vpop.f32.mrb[0].mxu0
      %v1012 = vadd.f32 0.0, %v1011
      %v1013 = vpop.f32.mrb[0].mxu0
      %1014 = vmatprep.mubr.f32.mxu0 0.0
      %1015 = vmatmul.mubr.f32.gmra.mrb[0].mxu0 %v463
      %v1016 = vpop.f32.mrb[0].mxu0
      %v1017 = vadd.f32 0.0, %v1016
      %v1018 = vpop.f32.mrb[0].mxu0
      %1019 = vmatprep.mubr.f32.mxu0 0.0
      %1020 = vmatmul.mubr.f32.gmra.mrb[0].mxu0 %v466
      %v1021 = vpop.f32.mrb[0].mxu0
      %v1022 = vadd.f32 0.0, %v1021
      %v1023 = vpop.f32.mrb[0].mxu0
      %1024 = vmatprep.mubr.f32.mxu0 0.0
      %1025 = vmatmul.mubr.f32.gmra.mrb[0].mxu0 %v469
      %v1026 = vpop.f32.mrb[0].mxu0
      %v1027 = vadd.f32 0.0, %v1026
      %v1028 = vpop.f32.mrb[0].mxu0
      %1029 = vmatprep.mubr.f32.mxu0 0.0
      %1030 = vmatmul.mubr.f32.gmra.mrb[0].mxu0 %v472
      %v1031 = vpop.f32.mrb[0].mxu0
      %v1032 = vadd.f32 0.0, %v1031
      %v1033 = vpop.f32.mrb[0].mxu0
      %1034 = vmatprep.mubr.f32.mxu0 0.0
      %1035 = vmatmul.mubr.f32.gmra.mrb[0].mxu0 %v475
      %v1036 = vpop.f32.mrb[0].mxu0
      %v1037 = vadd.f32 0.0, %v1036
      %v1038 = vpop.f32.mrb[0].mxu0
      %1039 = vmatprep.mubr.f32.mxu0 0.0
      %1040 = vmatmul.mubr.f32.gmra.mrb[0].mxu0 %v478
      %v1041 = vpop.f32.mrb[0].mxu0
      %v1042 = vadd.f32 0.0, %v1041
      %v1043 = vpop.f32.mrb[0].mxu0
      %1044 = vmatprep.mubr.f32.mxu0 0.0
      %1045 = vmatmul.mubr.f32.gmra.mrb[0].mxu0 %v481
      %v1046 = vpop.f32.mrb[0].mxu0
      %v1047 = vadd.f32 0.0, %v1046
      %v1048 = vpop.f32.mrb[0].mxu0
      %1049 = vmatprep.mubr.f32.mxu0 0.0
      %1050 = vmatmul.mubr.f32.gmra.mrb[0].mxu0 %v484
      %v1051 = vpop.f32.mrb[0].mxu0
      %v1052 = vadd.f32 0.0, %v1051
      %v1053 = vpop.f32.mrb[0].mxu0
      %1054 = vmatprep.mubr.f32.mxu0 0.0
      %1055 = vmatmul.mubr.f32.gmra.mrb[0].mxu0 %v487
      %v1056 = vpop.f32.mrb[0].mxu0
      %v1057 = vadd.f32 0.0, %v1056
      %v1058 = vpop.f32.mrb[0].mxu0
      %1059 = vmatprep.mubr.f32.mxu0 0.0
      %1060 = vmatmul.mubr.f32.gmra.mrb[0].mxu0 %v490
      %v1061 = vpop.f32.mrb[0].mxu0
      %v1062 = vadd.f32 0.0, %v1061
      %v1063 = vpop.f32.mrb[0].mxu0
      %1064 = vmatprep.mubr.f32.mxu0 0.0
      %1065 = vmatmul.mubr.f32.gmra.mrb[0].mxu0 %v493
      %v1066 = vpop.f32.mrb[0].mxu0
      %v1067 = vadd.f32 0.0, %v1066
      %v1068 = vpop.f32.mrb[0].mxu0
      %1069 = vmatprep.mubr.f32.mxu0 0.0
      %1070 = vmatmul.mubr.f32.gmra.mrb[0].mxu0 %v496
      %v1071 = vpop.f32.mrb[0].mxu0
      %v1072 = vadd.f32 0.0, %v1071
      %v1073 = vpop.f32.mrb[0].mxu0
      %1074 = vmatprep.mubr.f32.mxu0 0.0
      %1075 = vmatmul.mubr.f32.gmra.mrb[0].mxu0 %v499
      %v1076 = vpop.f32.mrb[0].mxu0
      %v1077 = vadd.f32 0.0, %v1076
      %v1078 = vpop.f32.mrb[0].mxu0
      %1079 = vmatprep.mubr.f32.mxu0 0.0
      %1080 = vmatmul.mubr.f32.gmra.mrb[0].mxu0 %v502
      %v1081 = vpop.f32.mrb[0].mxu0
      %v1082 = vadd.f32 0.0, %v1081
      %v1083 = vpop.f32.mrb[0].mxu0
      %1084 = vmatprep.mubr.f32.mxu0 0.0
      %1085 = vmatmul.mubr.f32.gmra.mrb[0].mxu0 %v505
      %v1086 = vpop.f32.mrb[0].mxu0
      %v1087 = vadd.f32 0.0, %v1086
      %v1088 = vpop.f32.mrb[0].mxu0
      %1089 = vmatprep.mubr.f32.mxu0 0.0
      %1090 = vmatmul.mubr.f32.gmra.mrb[0].mxu0 %v508
      %v1091 = vpop.f32.mrb[0].mxu0
      %v1092 = vadd.f32 0.0, %v1091
      %v1093 = vpop.f32.mrb[0].mxu0
      %1094 = vmatprep.mubr.f32.mxu0 0.0
      %1095 = vmatmul.mubr.f32.gmra.mrb[0].mxu0 %v511
      %v1096 = vpop.f32.mrb[0].mxu0
      %v1097 = vadd.f32 0.0, %v1096
      %v1098 = vpop.f32.mrb[0].mxu0
      %1099 = vmatprep.mubr.f32.mxu0 0.0
      %1100 = vmatmul.mubr.f32.gmra.mrb[0].mxu0 %v514
      %v1101 = vpop.f32.mrb[0].mxu0
      %v1102 = vadd.f32 0.0, %v1101
      %v1103 = vpop.f32.mrb[0].mxu0
      %1104 = vmatprep.mubr.f32.mxu0 0.0
      %1105 = vmatmul.mubr.f32.gmra.mrb[0].mxu0 %v517
      %v1106 = vpop.f32.mrb[0].mxu0
      %v1107 = vadd.f32 0.0, %v1106
      %v1108 = vpop.f32.mrb[0].mxu0
      %1109 = vmatprep.mubr.f32.mxu0 0.0
      %1110 = vmatmul.mubr.f32.gmra.mrb[0].mxu0 %v520
      %v1111 = vpop.f32.mrb[0].mxu0
      %v1112 = vadd.f32 0.0, %v1111
      %v1113 = vpop.f32.mrb[0].mxu0
      %1114 = vmatprep.mubr.f32.mxu0 0.0
      %1115 = vmatmul.mubr.f32.gmra.mrb[0].mxu0 %v523
      %v1116 = vpop.f32.mrb[0].mxu0
      %v1117 = vadd.f32 0.0, %v1116
      %v1118 = vpop.f32.mrb[0].mxu0
      %1119 = vmatprep.mubr.f32.mxu0 0.0
      %1120 = vmatmul.mubr.f32.gmra.mrb[0].mxu0 %v526
      %v1121 = vpop.f32.mrb[0].mxu0
      %v1122 = vadd.f32 0.0, %v1121
      %v1123 = vpop.f32.mrb[0].mxu0
      %1124 = vmatprep.mubr.f32.mxu0 0.0
      %1125 = vmatmul.mubr.f32.gmra.mrb[0].mxu0 %v529
      %v1126 = vpop.f32.mrb[0].mxu0
      %v1127 = vadd.f32 0.0, %v1126
      %v1128 = vpop.f32.mrb[0].mxu0
      %1129 = vmatprep.mubr.f32.mxu0 0.0
      %1130 = vmatmul.mubr.f32.gmra.mrb[0].mxu0 %v532
      %v1131 = vpop.f32.mrb[0].mxu0
      %v1132 = vadd.f32 0.0, %v1131
      %v1133 = vpop.f32.mrb[0].mxu0
      %1134 = vmatprep.mubr.f32.mxu0 0.0
      %1135 = vmatmul.mubr.f32.gmra.mrb[0].mxu0 %v535
      %v1136 = vpop.f32.mrb[0].mxu0
      %v1137 = vadd.f32 0.0, %v1136
      %v1138 = vpop.f32.mrb[0].mxu0
      %1139 = vmatprep.mubr.f32.mxu0 0.0
      %1140 = vmatmul.mubr.f32.gmra.mrb[0].mxu0 %v538
      %v1141 = vpop.f32.mrb[0].mxu0
      %v1142 = vadd.f32 0.0, %v1141
      %v1143 = vpop.f32.mrb[0].mxu0
      %1144 = vmatprep.mubr.f32.mxu0 0.0
      %1145 = vmatmul.mubr.f32.gmra.mrb[0].mxu0 %v541
      %v1146 = vpop.f32.mrb[0].mxu0
      %v1147 = vadd.f32 0.0, %v1146
      %v1148 = vpop.f32.mrb[0].mxu0
      %1149 = vmatprep.mubr.f32.mxu0 0.0
      %1150 = vmatmul.mubr.f32.gmra.mrb[0].mxu0 %v544
      %v1151 = vpop.f32.mrb[0].mxu0
      %v1152 = vadd.f32 0.0, %v1151
      %v1153 = vpop.f32.mrb[0].mxu0
      %1154 = vmatprep.mubr.f32.mxu0 0.0
      %1155 = vmatmul.mubr.f32.gmra.mrb[0].mxu0 %v547
      %v1156 = vpop.f32.mrb[0].mxu0
      %v1157 = vadd.f32 0.0, %v1156
      %v1158 = vpop.f32.mrb[0].mxu0
      %1159 = vmatprep.mubr.f32.mxu0 0.0
      %1160 = vmatmul.mubr.f32.gmra.mrb[0].mxu0 %v550
      %v1161 = vpop.f32.mrb[0].mxu0
      %v1162 = vadd.f32 0.0, %v1161
      %v1163 = vpop.f32.mrb[0].mxu0
      %1164 = vmatprep.mubr.f32.mxu0 0.0
      %1165 = vmatmul.mubr.f32.gmra.mrb[0].mxu0 %v553
      %v1166 = vpop.f32.mrb[0].mxu0
      %v1167 = vadd.f32 0.0, %v1166
      %v1168 = vpop.f32.mrb[0].mxu0
      %1169 = vmatprep.mubr.f32.mxu0 0.0
      %1170 = vmatmul.mubr.f32.gmra.mrb[0].mxu0 %v556
      %v1171 = vpop.f32.mrb[0].mxu0
      %v1172 = vadd.f32 0.0, %v1171
      %v1173 = vpop.f32.mrb[0].mxu0
      %1174 = vmatprep.mubr.f32.mxu0 0.0
      %1175 = vmatmul.mubr.f32.gmra.mrb[0].mxu0 %v559
      %v1176 = vpop.f32.mrb[0].mxu0
      %v1177 = vadd.f32 0.0, %v1176
      %v1178 = vpop.f32.mrb[0].mxu0
      %1179 = vmatprep.mubr.f32.mxu0 0.0
      %1180 = vmatmul.mubr.f32.gmra.mrb[0].mxu0 %v562
      %v1181 = vpop.f32.mrb[0].mxu0
      %v1182 = vadd.f32 0.0, %v1181
      %v1183 = vpop.f32.mrb[0].mxu0
      %1184 = vmatprep.mubr.f32.mxu0 0.0
      %1185 = vmatmul.mubr.f32.gmra.mrb[0].mxu0 %v565
      %v1186 = vpop.f32.mrb[0].mxu0
      %v1187 = vadd.f32 0.0, %v1186
      %v1188 = vpop.f32.mrb[0].mxu0
      %1189 = vmatprep.mubr.f32.mxu0 0.0
      %1190 = vmatmul.mubr.f32.gmra.mrb[0].mxu0 %v568
      %v1191 = vpop.f32.mrb[0].mxu0
      %v1192 = vadd.f32 0.0, %v1191
      %v1193 = vpop.f32.mrb[0].mxu0
      %1194 = vmatprep.mubr.f32.mxu0 0.0
      %1195 = vmatmul.mubr.f32.gmra.mrb[0].mxu0 %v571
      %v1196 = vpop.f32.mrb[0].mxu0
      %v1197 = vadd.f32 0.0, %v1196
      %v1198 = vpop.f32.mrb[0].mxu0
      %1199 = vmatprep.mubr.f32.mxu0 0.0
      %1200 = vmatmul.mubr.f32.gmra.mrb[0].mxu0 %v574
      %v1201 = vpop.f32.mrb[0].mxu0
      %v1202 = vadd.f32 0.0, %v1201
      %v1203 = vpop.f32.mrb[0].mxu0
      %1204 = vmatprep.mubr.f32.mxu0 0.0
      %1205 = vmatmul.mubr.f32.gmra.mrb[0].mxu0 %v577
      %v1206 = vpop.f32.mrb[0].mxu0
      %v1207 = vadd.f32 0.0, %v1206
      %v1208 = vpop.f32.mrb[0].mxu0
      %1209 = vmatprep.mubr.f32.mxu0 0.0
      %1210 = vmatmul.mubr.f32.gmra.mrb[0].mxu0 %v580
      %v1211 = vpop.f32.mrb[0].mxu0
      %v1212 = vadd.f32 0.0, %v1211
      %v1213 = vpop.f32.mrb[0].mxu0
      %1214 = vmatprep.mubr.f32.mxu0 0.0
      %1215 = vmatmul.mubr.f32.gmra.mrb[0].mxu0 %v583
      %v1216 = vpop.f32.mrb[0].mxu0
      %v1217 = vadd.f32 0.0, %v1216
      %v1218 = vpop.f32.mrb[0].mxu0
      %1219 = vmatprep.mubr.f32.mxu0 0.0
      %1220 = vmatmul.mubr.f32.gmra.mrb[0].mxu0 %v586
      %v1221 = vpop.f32.mrb[0].mxu0
      %v1222 = vadd.f32 0.0, %v1221
      %v1223 = vpop.f32.mrb[0].mxu0
      %1224 = vmatprep.mubr.f32.mxu0 0.0
      %1225 = vmatmul.mubr.f32.gmra.mrb[0].mxu0 %v589
      %v1226 = vpop.f32.mrb[0].mxu0
      %v1227 = vadd.f32 0.0, %v1226
      %v1228 = vpop.f32.mrb[0].mxu0
      %1229 = vmatprep.mubr.f32.mxu0 0.0
      %1230 = vmatmul.mubr.f32.gmra.mrb[0].mxu0 %v592
      %v1231 = vpop.f32.mrb[0].mxu0
      %v1232 = vadd.f32 0.0, %v1231
      %v1233 = vpop.f32.mrb[0].mxu0
      %1234 = vmatprep.mubr.f32.mxu0 0.0
      %1235 = vmatmul.mubr.f32.gmra.mrb[0].mxu0 %v595
      %v1236 = vpop.f32.mrb[0].mxu0
      %v1237 = vadd.f32 0.0, %v1236
      %v1238 = vpop.f32.mrb[0].mxu0
      %1239 = vmatprep.mubr.f32.mxu0 0.0
      %1240 = vmatmul.mubr.f32.gmra.mrb[0].mxu0 %v598
      %v1241 = vpop.f32.mrb[0].mxu0
      %v1242 = vadd.f32 0.0, %v1241
      %v1243 = vpop.f32.mrb[0].mxu0
      %1244 = vmatprep.mubr.f32.mxu0 0.0
      %1245 = vmatmul.mubr.f32.gmra.mrb[0].mxu0 %v601
      %v1246 = vpop.f32.mrb[0].mxu0
      %v1247 = vadd.f32 0.0, %v1246
      %v1248 = vpop.f32.mrb[0].mxu0
      %1249 = vmatprep.mubr.f32.mxu0 0.0
      %1250 = vmatmul.mubr.f32.gmra.mrb[0].mxu0 %v604
      %v1251 = vpop.f32.mrb[0].mxu0
      %v1252 = vadd.f32 0.0, %v1251
      %v1253 = vpop.f32.mrb[0].mxu0
      %1254 = vmatprep.mubr.f32.mxu0 0.0
      %1255 = vmatmul.mubr.f32.gmra.mrb[0].mxu0 %v607
      %v1256 = vpop.f32.mrb[0].mxu0
      %v1257 = vadd.f32 0.0, %v1256
      %v1258 = vpop.f32.mrb[0].mxu0
      %1259 = vmatprep.mubr.f32.mxu0 0.0
      %1260 = vmatmul.mubr.f32.gmra.mrb[0].mxu0 %v610
      %v1261 = vpop.f32.mrb[0].mxu0
      %v1262 = vadd.f32 0.0, %v1261
      %v1263 = vpop.f32.mrb[0].mxu0
      %1264 = vmatprep.mubr.f32.mxu0 0.0
      %1265 = vmatmul.mubr.f32.gmra.mrb[0].mxu0 %v613
      %v1266 = vpop.f32.mrb[0].mxu0
      %v1267 = vadd.f32 0.0, %v1266
      %v1268 = vpop.f32.mrb[0].mxu0
      %1269 = vmatprep.mubr.f32.mxu0 0.0
      %1270 = vmatmul.mubr.f32.gmra.mrb[0].mxu0 %v616
      %v1271 = vpop.f32.mrb[0].mxu0
      %v1272 = vadd.f32 0.0, %v1271
      %v1273 = vpop.f32.mrb[0].mxu0
      %1274 = vmatprep.mubr.f32.mxu0 0.0
      %1275 = vmatmul.mubr.f32.gmra.mrb[0].mxu0 %v619
      %v1276 = vpop.f32.mrb[0].mxu0
      %v1277 = vadd.f32 0.0, %v1276
      %v1278 = vpop.f32.mrb[0].mxu0
      %1279 = vmatprep.mubr.f32.mxu0 0.0
      %1280 = vmatmul.mubr.f32.gmra.mrb[0].mxu0 %v622
      %v1281 = vpop.f32.mrb[0].mxu0
      %v1282 = vadd.f32 0.0, %v1281
      %v1283 = vpop.f32.mrb[0].mxu0
      %1284 = vmatprep.mubr.f32.mxu0 0.0
      %1285 = vmatmul.mubr.f32.gmra.mrb[0].mxu0 %v625
      %v1286 = vpop.f32.mrb[0].mxu0
      %v1287 = vadd.f32 0.0, %v1286
      %v1288 = vpop.f32.mrb[0].mxu0
      %1289 = vmatprep.mubr.f32.mxu0 0.0
      %1290 = vmatmul.mubr.f32.gmra.mrb[0].mxu0 %v628
      %v1291 = vpop.f32.mrb[0].mxu0
      %v1292 = vadd.f32 0.0, %v1291
      %v1293 = vpop.f32.mrb[0].mxu0
      %1294 = vmatprep.mubr.f32.mxu0 0.0
      %1295 = vmatmul.mubr.f32.gmra.mrb[0].mxu0 %v631
      %v1296 = vpop.f32.mrb[0].mxu0
      %v1297 = vadd.f32 0.0, %v1296
      %v1298 = vpop.f32.mrb[0].mxu0
      %1299 = vmatprep.mubr.f32.mxu0 0.0
      %1300 = vmatmul.mubr.f32.gmra.mrb[0].mxu0 %v634
      %v1301 = vpop.f32.mrb[0].mxu0
      %v1302 = vadd.f32 0.0, %v1301
      %v1303 = vpop.f32.mrb[0].mxu0
      %1304 = vmatprep.mubr.f32.mxu0 0.0
      %1305 = vmatmul.mubr.f32.gmra.mrb[0].mxu0 %v637
      %v1306 = vpop.f32.mrb[0].mxu0
      %v1307 = vadd.f32 0.0, %v1306
      %v1308 = vpop.f32.mrb[0].mxu0
      %1309 = vmatprep.mubr.f32.mxu0 0.0
      %1310 = vmatmul.mubr.f32.gmra.mrb[0].mxu0 %v640
      %v1311 = vpop.f32.mrb[0].mxu0
      %v1312 = vadd.f32 0.0, %v1311
      %v1313 = vpop.f32.mrb[0].mxu0
      %1314 = vmatprep.mubr.f32.mxu0 0.0
      %1315 = vmatmul.mubr.f32.gmra.mrb[0].mxu0 %v643
      %v1316 = vpop.f32.mrb[0].mxu0
      %v1317 = vadd.f32 0.0, %v1316
      %v1318 = vpop.f32.mrb[0].mxu0
      %1319 = vmatprep.mubr.f32.mxu0 0.0
      %1320 = vmatmul.mubr.f32.gmra.mrb[0].mxu0 %v646
      %v1321 = vpop.f32.mrb[0].mxu0
      %v1322 = vadd.f32 0.0, %v1321
      %v1323 = vpop.f32.mrb[0].mxu0
      %1324 = vmatprep.mubr.f32.mxu0 0.0
      %1325 = vmatmul.mubr.f32.gmra.mrb[0].mxu0 %v649
      %v1326 = vpop.f32.mrb[0].mxu0
      %v1327 = vadd.f32 0.0, %v1326
      %v1328 = vpop.f32.mrb[0].mxu0
      %1329 = vmatprep.mubr.f32.mxu0 0.0
      %1330 = vmatmul.mubr.f32.gmra.mrb[0].mxu0 %v652
      %v1331 = vpop.f32.mrb[0].mxu0
      %v1332 = vadd.f32 0.0, %v1331
      %v1333 = vpop.f32.mrb[0].mxu0
      %1334 = vmatprep.mubr.f32.mxu0 0.0
      %1335 = vmatmul.mubr.f32.gmra.mrb[0].mxu0 %v655
      %v1336 = vpop.f32.mrb[0].mxu0
      %v1337 = vadd.f32 0.0, %v1336
      %v1338 = vpop.f32.mrb[0].mxu0
      %1339 = vmatprep.mubr.f32.mxu0 0.0
      %1340 = vmatmul.mubr.f32.gmra.mrb[0].mxu0 %v658
      %v1341 = vpop.f32.mrb[0].mxu0
      %v1342 = vadd.f32 0.0, %v1341
      %v1343 = vpop.f32.mrb[0].mxu0
      %1344 = vmatprep.mubr.f32.mxu0 0.0
      %1345 = vmatmul.mubr.f32.gmra.mrb[0].mxu0 %v661
      %v1346 = vpop.f32.mrb[0].mxu0
      %v1347 = vadd.f32 0.0, %v1346
      %v1348 = vpop.f32.mrb[0].mxu0
      %1349 = vmatprep.mubr.f32.mxu0 0.0
      %1350 = vmatmul.mubr.f32.gmra.mrb[0].mxu0 %v664
      %v1351 = vpop.f32.mrb[0].mxu0
      %v1352 = vadd.f32 0.0, %v1351
      %v1353 = vpop.f32.mrb[0].mxu0
      %1354 = vmatprep.mubr.f32.mxu0 0.0
      %1355 = vmatmul.mubr.f32.gmra.mrb[0].mxu0 %v667
      %v1356 = vpop.f32.mrb[0].mxu0
      %v1357 = vadd.f32 0.0, %v1356
      %v1358 = vpop.f32.mrb[0].mxu0
      %1359 = vmatprep.mubr.f32.mxu0 0.0
      %1360 = vmatmul.mubr.f32.gmra.mrb[0].mxu0 %v670
      %v1361 = vpop.f32.mrb[0].mxu0
      %v1362 = vadd.f32 0.0, %v1361
      %v1363 = vpop.f32.mrb[0].mxu0
      %1364 = vmatprep.mubr.f32.mxu0 0.0
      %1365 = vmatmul.mubr.f32.gmra.mrb[0].mxu0 %v673
      %v1366 = vpop.f32.mrb[0].mxu0
      %v1367 = vadd.f32 0.0, %v1366
      %v1368 = vpop.f32.mrb[0].mxu0
      %1369 = vmatprep.mubr.f32.mxu0 0.0
      %1370 = vmatmul.mubr.f32.gmra.mrb[0].mxu0 %v676
      %v1371 = vpop.f32.mrb[0].mxu0
      %v1372 = vadd.f32 0.0, %v1371
      %v1373 = vpop.f32.mrb[0].mxu0
      %1374 = vmatprep.mubr.f32.mxu0 0.0
      %1375 = vmatmul.mubr.f32.gmra.mrb[0].mxu0 %v679
      %v1376 = vpop.f32.mrb[0].mxu0
      %v1377 = vadd.f32 0.0, %v1376
      %v1378 = vpop.f32.mrb[0].mxu0
      %1379 = vmatprep.mubr.f32.mxu0 0.0
      %1380 = vmatmul.mubr.f32.gmra.mrb[0].mxu0 %v682
      %v1381 = vpop.f32.mrb[0].mxu0
      %v1382 = vadd.f32 0.0, %v1381
      %v1383 = vpop.f32.mrb[0].mxu0
      %1384 = vmatprep.mubr.f32.mxu0 0.0
      %1385 = vmatmul.mubr.f32.gmra.mrb[0].mxu0 %v685
      %v1386 = vpop.f32.mrb[0].mxu0
      %v1387 = vadd.f32 0.0, %v1386
      %v1388 = vpop.f32.mrb[0].mxu0
      %1389 = vmatprep.mubr.f32.mxu0 0.0
      %1390 = vmatmul.mubr.f32.gmra.mrb[0].mxu0 %v688
      %v1391 = vpop.f32.mrb[0].mxu0
      %v1392 = vadd.f32 0.0, %v1391
      %v1393 = vpop.f32.mrb[0].mxu0
      %1394 = vmatprep.mubr.f32.mxu0 0.0
      %1395 = vmatmul.mubr.f32.gmra.mrb[0].mxu0 %v691
      %v1396 = vpop.f32.mrb[0].mxu0
      %v1397 = vadd.f32 0.0, %v1396
      %v1398 = vpop.f32.mrb[0].mxu0
      %1399 = vmatprep.mubr.f32.mxu0 0.0
      %1400 = vmatmul.mubr.f32.gmra.mrb[0].mxu0 %v694
      %v1401 = vpop.f32.mrb[0].mxu0
      %v1402 = vadd.f32 0.0, %v1401
      %v1403 = vpop.f32.mrb[0].mxu0
      %1404 = vdwg.mxu0
      %v1406 = vsel %vm311, %v174, 0
      %v1409 = vsel %vm311, %v175, 0
      %v1412 = vsel %vm311, %v176, 0
      %v1415 = vsel %vm311, %v177, 0
      %v1418 = vsel %vm696, %v303, 0
      %1420 = vmatprep.subr.mxu0 0.0
      %1421 = vmatpush1.msra.mxu0 %v302
      %1422 = vmatprep.subr.mxu0 0.0
      %1423 = vmatpush1.msra.mxu0 %v1418
      %1424 = vmatprep.subr.mxu0 0.0
      %1425 = vmatpush1.msra.mxu0 0.0
      %1426 = vmatprep.subr.mxu0 0.0
      %1427 = vmatpush1.msra.mxu0 0.0
      %1428 = vmatprep.subr.mxu0 0.0
      %1429 = vmatpush1.msra.mxu0 0.0
      %1430 = vmatprep.subr.mxu0 0.0
      %1431 = vmatpush1.msra.mxu0 0.0
      %1432 = vmatprep.subr.mxu0 0.0
      %1433 = vmatpush1.msra.mxu0 0.0
      %1434 = vmatprep.subr.mxu0 0.0
      %1435 = vmatpush1.msra.mxu0 0.0
      %1436 = vmatprep.subr.mxu0 0.0
      %1437 = vmatpush1.msra.mxu0 0.0
      %1438 = vmatprep.subr.mxu0 0.0
      %1439 = vmatpush1.msra.mxu0 0.0
      %1440 = vmatprep.subr.mxu0 0.0
      %1441 = vmatpush1.msra.mxu0 0.0
      %1442 = vmatprep.subr.mxu0 0.0
      %1443 = vmatpush1.msra.mxu0 0.0
      %1444 = vmatprep.subr.mxu0 0.0
      %1445 = vmatpush1.msra.mxu0 0.0
      %1446 = vmatprep.subr.mxu0 0.0
      %1447 = vmatpush1.msra.mxu0 0.0
      %1448 = vmatprep.subr.mxu0 0.0
      %1449 = vmatpush1.msra.mxu0 0.0
      %1450 = vmatprep.subr.mxu0 0.0
      %1451 = vmatpush1.msra.mxu0 0.0
      %1452 = vmatprep.subr.mxu0 0.0
      %1453 = vmatpush1.msra.mxu0 0.0
      %1454 = vmatprep.subr.mxu0 0.0
      %1455 = vmatpush1.msra.mxu0 0.0
      %1456 = vmatprep.subr.mxu0 0.0
      %1457 = vmatpush1.msra.mxu0 0.0
      %1458 = vmatprep.subr.mxu0 0.0
      %1459 = vmatpush1.msra.mxu0 0.0
      %1460 = vmatprep.subr.mxu0 0.0
      %1461 = vmatpush1.msra.mxu0 0.0
      %1462 = vmatprep.subr.mxu0 0.0
      %1463 = vmatpush1.msra.mxu0 0.0
      %1464 = vmatprep.subr.mxu0 0.0
      %1465 = vmatpush1.msra.mxu0 0.0
      %1466 = vmatprep.subr.mxu0 0.0
      %1467 = vmatpush1.msra.mxu0 0.0
      %1468 = vmatprep.subr.mxu0 0.0
      %1469 = vmatpush1.msra.mxu0 0.0
      %1470 = vmatprep.subr.mxu0 0.0
      %1471 = vmatpush1.msra.mxu0 0.0
      %1472 = vmatprep.subr.mxu0 0.0
      %1473 = vmatpush1.msra.mxu0 0.0
      %1474 = vmatprep.subr.mxu0 0.0
      %1475 = vmatpush1.msra.mxu0 0.0
      %1476 = vmatprep.subr.mxu0 0.0
      %1477 = vmatpush1.msra.mxu0 0.0
      %1478 = vmatprep.subr.mxu0 0.0
      %1479 = vmatpush1.msra.mxu0 0.0
      %1480 = vmatprep.subr.mxu0 0.0
      %1481 = vmatpush1.msra.mxu0 0.0
      %1482 = vmatprep.subr.mxu0 0.0
      %1483 = vmatpush1.msra.mxu0 0.0
      %1484 = vmatprep.mubr.f32.mxu0 0.0
      %1485 = vmatmul.mubr.f32.gmra.mrb[0].mxu0 %v1406
      %v1486 = vpop.f32.mrb[0].mxu0
      %v1487 = vadd.f32 %v767, %v1486
      %v1488 = vpop.f32.mrb[0].mxu0
      %1489 = vmatprep.mubr.f32.mxu0 0.0
      %1490 = vmatmul.mubr.f32.gmra.mrb[0].mxu0 %v1409
      %v1491 = vpop.f32.mrb[0].mxu0
      %v1492 = vadd.f32 %v772, %v1491
      %v1493 = vpop.f32.mrb[0].mxu0
      %1494 = vmatprep.mubr.f32.mxu0 0.0
      %1495 = vmatmul.mubr.f32.gmra.mrb[0].mxu0 %v1412
      %v1496 = vpop.f32.mrb[0].mxu0
      %v1497 = vadd.f32 %v777, %v1496
      %v1498 = vpop.f32.mrb[0].mxu0
      %1499 = vmatprep.mubr.f32.mxu0 0.0
      %1500 = vmatmul.mubr.f32.gmra.mrb[0].mxu0 %v1415
      %v1501 = vpop.f32.mrb[0].mxu0
      %v1502 = vadd.f32 %v782, %v1501
      %v1503 = vpop.f32.mrb[0].mxu0
      %1504 = vmatprep.mubr.f32.mxu0 0.0
      %1505 = vmatmul.mubr.f32.gmra.mrb[0].mxu0 %v313
      %v1506 = vpop.f32.mrb[0].mxu0
      %v1507 = vadd.f32 %v787, %v1506
      %v1508 = vpop.f32.mrb[0].mxu0
      %1509 = vmatprep.mubr.f32.mxu0 0.0
      %1510 = vmatmul.mubr.f32.gmra.mrb[0].mxu0 %v316
      %v1511 = vpop.f32.mrb[0].mxu0
      %v1512 = vadd.f32 %v792, %v1511
      %v1513 = vpop.f32.mrb[0].mxu0
      %1514 = vmatprep.mubr.f32.mxu0 0.0
      %1515 = vmatmul.mubr.f32.gmra.mrb[0].mxu0 %v319
      %v1516 = vpop.f32.mrb[0].mxu0
      %v1517 = vadd.f32 %v797, %v1516
      %v1518 = vpop.f32.mrb[0].mxu0
      %1519 = vmatprep.mubr.f32.mxu0 0.0
      %1520 = vmatmul.mubr.f32.gmra.mrb[0].mxu0 %v322
      %v1521 = vpop.f32.mrb[0].mxu0
      %v1522 = vadd.f32 %v802, %v1521
      %v1523 = vpop.f32.mrb[0].mxu0
      %1524 = vmatprep.mubr.f32.mxu0 0.0
      %1525 = vmatmul.mubr.f32.gmra.mrb[0].mxu0 %v325
      %v1526 = vpop.f32.mrb[0].mxu0
      %v1527 = vadd.f32 %v807, %v1526
      %v1528 = vpop.f32.mrb[0].mxu0
      %1529 = vmatprep.mubr.f32.mxu0 0.0
      %1530 = vmatmul.mubr.f32.gmra.mrb[0].mxu0 %v328
      %v1531 = vpop.f32.mrb[0].mxu0
      %v1532 = vadd.f32 %v812, %v1531
      %v1533 = vpop.f32.mrb[0].mxu0
      %1534 = vmatprep.mubr.f32.mxu0 0.0
      %1535 = vmatmul.mubr.f32.gmra.mrb[0].mxu0 %v331
      %v1536 = vpop.f32.mrb[0].mxu0
      %v1537 = vadd.f32 %v817, %v1536
      %v1538 = vpop.f32.mrb[0].mxu0
      %1539 = vmatprep.mubr.f32.mxu0 0.0
      %1540 = vmatmul.mubr.f32.gmra.mrb[0].mxu0 %v334
      %v1541 = vpop.f32.mrb[0].mxu0
      %v1542 = vadd.f32 %v822, %v1541
      %v1543 = vpop.f32.mrb[0].mxu0
      %1544 = vmatprep.mubr.f32.mxu0 0.0
      %1545 = vmatmul.mubr.f32.gmra.mrb[0].mxu0 %v337
      %v1546 = vpop.f32.mrb[0].mxu0
      %v1547 = vadd.f32 %v827, %v1546
      %v1548 = vpop.f32.mrb[0].mxu0
      %1549 = vmatprep.mubr.f32.mxu0 0.0
      %1550 = vmatmul.mubr.f32.gmra.mrb[0].mxu0 %v340
      %v1551 = vpop.f32.mrb[0].mxu0
      %v1552 = vadd.f32 %v832, %v1551
      %v1553 = vpop.f32.mrb[0].mxu0
      %1554 = vmatprep.mubr.f32.mxu0 0.0
      %1555 = vmatmul.mubr.f32.gmra.mrb[0].mxu0 %v343
      %v1556 = vpop.f32.mrb[0].mxu0
      %v1557 = vadd.f32 %v837, %v1556
      %v1558 = vpop.f32.mrb[0].mxu0
      %1559 = vmatprep.mubr.f32.mxu0 0.0
      %1560 = vmatmul.mubr.f32.gmra.mrb[0].mxu0 %v346
      %v1561 = vpop.f32.mrb[0].mxu0
      %v1562 = vadd.f32 %v842, %v1561
      %v1563 = vpop.f32.mrb[0].mxu0
      %1564 = vmatprep.mubr.f32.mxu0 0.0
      %1565 = vmatmul.mubr.f32.gmra.mrb[0].mxu0 %v349
      %v1566 = vpop.f32.mrb[0].mxu0
      %v1567 = vadd.f32 %v847, %v1566
      %v1568 = vpop.f32.mrb[0].mxu0
      %1569 = vmatprep.mubr.f32.mxu0 0.0
      %1570 = vmatmul.mubr.f32.gmra.mrb[0].mxu0 %v352
      %v1571 = vpop.f32.mrb[0].mxu0
      %v1572 = vadd.f32 %v852, %v1571
      %v1573 = vpop.f32.mrb[0].mxu0
      %1574 = vmatprep.mubr.f32.mxu0 0.0
      %1575 = vmatmul.mubr.f32.gmra.mrb[0].mxu0 %v355
      %v1576 = vpop.f32.mrb[0].mxu0
      %v1577 = vadd.f32 %v857, %v1576
      %v1578 = vpop.f32.mrb[0].mxu0
      %1579 = vmatprep.mubr.f32.mxu0 0.0
      %1580 = vmatmul.mubr.f32.gmra.mrb[0].mxu0 %v358
      %v1581 = vpop.f32.mrb[0].mxu0
      %v1582 = vadd.f32 %v862, %v1581
      %v1583 = vpop.f32.mrb[0].mxu0
      %1584 = vmatprep.mubr.f32.mxu0 0.0
      %1585 = vmatmul.mubr.f32.gmra.mrb[0].mxu0 %v361
      %v1586 = vpop.f32.mrb[0].mxu0
      %v1587 = vadd.f32 %v867, %v1586
      %v1588 = vpop.f32.mrb[0].mxu0
      %1589 = vmatprep.mubr.f32.mxu0 0.0
      %1590 = vmatmul.mubr.f32.gmra.mrb[0].mxu0 %v364
      %v1591 = vpop.f32.mrb[0].mxu0
      %v1592 = vadd.f32 %v872, %v1591
      %v1593 = vpop.f32.mrb[0].mxu0
      %1594 = vmatprep.mubr.f32.mxu0 0.0
      %1595 = vmatmul.mubr.f32.gmra.mrb[0].mxu0 %v367
      %v1596 = vpop.f32.mrb[0].mxu0
      %v1597 = vadd.f32 %v877, %v1596
      %v1598 = vpop.f32.mrb[0].mxu0
      %1599 = vmatprep.mubr.f32.mxu0 0.0
      %1600 = vmatmul.mubr.f32.gmra.mrb[0].mxu0 %v370
      %v1601 = vpop.f32.mrb[0].mxu0
      %v1602 = vadd.f32 %v882, %v1601
      %v1603 = vpop.f32.mrb[0].mxu0
      %1604 = vmatprep.mubr.f32.mxu0 0.0
      %1605 = vmatmul.mubr.f32.gmra.mrb[0].mxu0 %v373
      %v1606 = vpop.f32.mrb[0].mxu0
      %v1607 = vadd.f32 %v887, %v1606
      %v1608 = vpop.f32.mrb[0].mxu0
      %1609 = vmatprep.mubr.f32.mxu0 0.0
      %1610 = vmatmul.mubr.f32.gmra.mrb[0].mxu0 %v376
      %v1611 = vpop.f32.mrb[0].mxu0
      %v1612 = vadd.f32 %v892, %v1611
      %v1613 = vpop.f32.mrb[0].mxu0
      %1614 = vmatprep.mubr.f32.mxu0 0.0
      %1615 = vmatmul.mubr.f32.gmra.mrb[0].mxu0 %v379
      %v1616 = vpop.f32.mrb[0].mxu0
      %v1617 = vadd.f32 %v897, %v1616
      %v1618 = vpop.f32.mrb[0].mxu0
      %1619 = vmatprep.mubr.f32.mxu0 0.0
      %1620 = vmatmul.mubr.f32.gmra.mrb[0].mxu0 %v382
      %v1621 = vpop.f32.mrb[0].mxu0
      %v1622 = vadd.f32 %v902, %v1621
      %v1623 = vpop.f32.mrb[0].mxu0
      %1624 = vmatprep.mubr.f32.mxu0 0.0
      %1625 = vmatmul.mubr.f32.gmra.mrb[0].mxu0 %v385
      %v1626 = vpop.f32.mrb[0].mxu0
      %v1627 = vadd.f32 %v907, %v1626
      %v1628 = vpop.f32.mrb[0].mxu0
      %1629 = vmatprep.mubr.f32.mxu0 0.0
      %1630 = vmatmul.mubr.f32.gmra.mrb[0].mxu0 %v388
      %v1631 = vpop.f32.mrb[0].mxu0
      %v1632 = vadd.f32 %v912, %v1631
      %v1633 = vpop.f32.mrb[0].mxu0
      %1634 = vmatprep.mubr.f32.mxu0 0.0
      %1635 = vmatmul.mubr.f32.gmra.mrb[0].mxu0 %v391
      %v1636 = vpop.f32.mrb[0].mxu0
      %v1637 = vadd.f32 %v917, %v1636
      %v1638 = vpop.f32.mrb[0].mxu0
      %1639 = vmatprep.mubr.f32.mxu0 0.0
      %1640 = vmatmul.mubr.f32.gmra.mrb[0].mxu0 %v394
      %v1641 = vpop.f32.mrb[0].mxu0
      %v1642 = vadd.f32 %v922, %v1641
      %v1643 = vpop.f32.mrb[0].mxu0
      %1644 = vmatprep.mubr.f32.mxu0 0.0
      %1645 = vmatmul.mubr.f32.gmra.mrb[0].mxu0 %v397
      %v1646 = vpop.f32.mrb[0].mxu0
      %v1647 = vadd.f32 %v927, %v1646
      %v1648 = vpop.f32.mrb[0].mxu0
      %1649 = vmatprep.mubr.f32.mxu0 0.0
      %1650 = vmatmul.mubr.f32.gmra.mrb[0].mxu0 %v400
      %v1651 = vpop.f32.mrb[0].mxu0
      %v1652 = vadd.f32 %v932, %v1651
      %v1653 = vpop.f32.mrb[0].mxu0
      %1654 = vmatprep.mubr.f32.mxu0 0.0
      %1655 = vmatmul.mubr.f32.gmra.mrb[0].mxu0 %v403
      %v1656 = vpop.f32.mrb[0].mxu0
      %v1657 = vadd.f32 %v937, %v1656
      %v1658 = vpop.f32.mrb[0].mxu0
      %1659 = vmatprep.mubr.f32.mxu0 0.0
      %1660 = vmatmul.mubr.f32.gmra.mrb[0].mxu0 %v406
      %v1661 = vpop.f32.mrb[0].mxu0
      %v1662 = vadd.f32 %v942, %v1661
      %v1663 = vpop.f32.mrb[0].mxu0
      %1664 = vmatprep.mubr.f32.mxu0 0.0
      %1665 = vmatmul.mubr.f32.gmra.mrb[0].mxu0 %v409
      %v1666 = vpop.f32.mrb[0].mxu0
      %v1667 = vadd.f32 %v947, %v1666
      %v1668 = vpop.f32.mrb[0].mxu0
      %1669 = vmatprep.mubr.f32.mxu0 0.0
      %1670 = vmatmul.mubr.f32.gmra.mrb[0].mxu0 %v412
      %v1671 = vpop.f32.mrb[0].mxu0
      %v1672 = vadd.f32 %v952, %v1671
      %v1673 = vpop.f32.mrb[0].mxu0
      %1674 = vmatprep.mubr.f32.mxu0 0.0
      %1675 = vmatmul.mubr.f32.gmra.mrb[0].mxu0 %v415
      %v1676 = vpop.f32.mrb[0].mxu0
      %v1677 = vadd.f32 %v957, %v1676
      %v1678 = vpop.f32.mrb[0].mxu0
      %1679 = vmatprep.mubr.f32.mxu0 0.0
      %1680 = vmatmul.mubr.f32.gmra.mrb[0].mxu0 %v418
      %v1681 = vpop.f32.mrb[0].mxu0
      %v1682 = vadd.f32 %v962, %v1681
      %v1683 = vpop.f32.mrb[0].mxu0
      %1684 = vmatprep.mubr.f32.mxu0 0.0
      %1685 = vmatmul.mubr.f32.gmra.mrb[0].mxu0 %v421
      %v1686 = vpop.f32.mrb[0].mxu0
      %v1687 = vadd.f32 %v967, %v1686
      %v1688 = vpop.f32.mrb[0].mxu0
      %1689 = vmatprep.mubr.f32.mxu0 0.0
      %1690 = vmatmul.mubr.f32.gmra.mrb[0].mxu0 %v424
      %v1691 = vpop.f32.mrb[0].mxu0
      %v1692 = vadd.f32 %v972, %v1691
      %v1693 = vpop.f32.mrb[0].mxu0
      %1694 = vmatprep.mubr.f32.mxu0 0.0
      %1695 = vmatmul.mubr.f32.gmra.mrb[0].mxu0 %v427
      %v1696 = vpop.f32.mrb[0].mxu0
      %v1697 = vadd.f32 %v977, %v1696
      %v1698 = vpop.f32.mrb[0].mxu0
      %1699 = vmatprep.mubr.f32.mxu0 0.0
      %1700 = vmatmul.mubr.f32.gmra.mrb[0].mxu0 %v430
      %v1701 = vpop.f32.mrb[0].mxu0
      %v1702 = vadd.f32 %v982, %v1701
      %v1703 = vpop.f32.mrb[0].mxu0
      %1704 = vmatprep.mubr.f32.mxu0 0.0
      %1705 = vmatmul.mubr.f32.gmra.mrb[0].mxu0 %v433
      %v1706 = vpop.f32.mrb[0].mxu0
      %v1707 = vadd.f32 %v987, %v1706
      %v1708 = vpop.f32.mrb[0].mxu0
      %1709 = vmatprep.mubr.f32.mxu0 0.0
      %1710 = vmatmul.mubr.f32.gmra.mrb[0].mxu0 %v436
      %v1711 = vpop.f32.mrb[0].mxu0
      %v1712 = vadd.f32 %v992, %v1711
      %v1713 = vpop.f32.mrb[0].mxu0
      %1714 = vmatprep.mubr.f32.mxu0 0.0
      %1715 = vmatmul.mubr.f32.gmra.mrb[0].mxu0 %v439
      %v1716 = vpop.f32.mrb[0].mxu0
      %v1717 = vadd.f32 %v997, %v1716
      %v1718 = vpop.f32.mrb[0].mxu0
      %1719 = vmatprep.mubr.f32.mxu0 0.0
      %1720 = vmatmul.mubr.f32.gmra.mrb[0].mxu0 %v442
      %v1721 = vpop.f32.mrb[0].mxu0
      %v1722 = vadd.f32 %v1002, %v1721
      %v1723 = vpop.f32.mrb[0].mxu0
      %1724 = vmatprep.mubr.f32.mxu0 0.0
      %1725 = vmatmul.mubr.f32.gmra.mrb[0].mxu0 %v445
      %v1726 = vpop.f32.mrb[0].mxu0
      %v1727 = vadd.f32 %v1007, %v1726
      %v1728 = vpop.f32.mrb[0].mxu0
      %1729 = vmatprep.mubr.f32.mxu0 0.0
      %1730 = vmatmul.mubr.f32.gmra.mrb[0].mxu0 %v448
      %v1731 = vpop.f32.mrb[0].mxu0
      %v1732 = vadd.f32 %v1012, %v1731
      %v1733 = vpop.f32.mrb[0].mxu0
      %1734 = vmatprep.mubr.f32.mxu0 0.0
      %1735 = vmatmul.mubr.f32.gmra.mrb[0].mxu0 %v451
      %v1736 = vpop.f32.mrb[0].mxu0
      %v1737 = vadd.f32 %v1017, %v1736
      %v1738 = vpop.f32.mrb[0].mxu0
      %1739 = vmatprep.mubr.f32.mxu0 0.0
      %1740 = vmatmul.mubr.f32.gmra.mrb[0].mxu0 %v454
      %v1741 = vpop.f32.mrb[0].mxu0
      %v1742 = vadd.f32 %v1022, %v1741
      %v1743 = vpop.f32.mrb[0].mxu0
      %1744 = vmatprep.mubr.f32.mxu0 0.0
      %1745 = vmatmul.mubr.f32.gmra.mrb[0].mxu0 %v457
      %v1746 = vpop.f32.mrb[0].mxu0
      %v1747 = vadd.f32 %v1027, %v1746
      %v1748 = vpop.f32.mrb[0].mxu0
      %1749 = vmatprep.mubr.f32.mxu0 0.0
      %1750 = vmatmul.mubr.f32.gmra.mrb[0].mxu0 %v460
      %v1751 = vpop.f32.mrb[0].mxu0
      %v1752 = vadd.f32 %v1032, %v1751
      %v1753 = vpop.f32.mrb[0].mxu0
      %1754 = vmatprep.mubr.f32.mxu0 0.0
      %1755 = vmatmul.mubr.f32.gmra.mrb[0].mxu0 %v463
      %v1756 = vpop.f32.mrb[0].mxu0
      %v1757 = vadd.f32 %v1037, %v1756
      %v1758 = vpop.f32.mrb[0].mxu0
      %1759 = vmatprep.mubr.f32.mxu0 0.0
      %1760 = vmatmul.mubr.f32.gmra.mrb[0].mxu0 %v466
      %v1761 = vpop.f32.mrb[0].mxu0
      %v1762 = vadd.f32 %v1042, %v1761
      %v1763 = vpop.f32.mrb[0].mxu0
      %1764 = vmatprep.mubr.f32.mxu0 0.0
      %1765 = vmatmul.mubr.f32.gmra.mrb[0].mxu0 %v469
      %v1766 = vpop.f32.mrb[0].mxu0
      %v1767 = vadd.f32 %v1047, %v1766
      %v1768 = vpop.f32.mrb[0].mxu0
      %1769 = vmatprep.mubr.f32.mxu0 0.0
      %1770 = vmatmul.mubr.f32.gmra.mrb[0].mxu0 %v472
      %v1771 = vpop.f32.mrb[0].mxu0
      %v1772 = vadd.f32 %v1052, %v1771
      %v1773 = vpop.f32.mrb[0].mxu0
      %1774 = vmatprep.mubr.f32.mxu0 0.0
      %1775 = vmatmul.mubr.f32.gmra.mrb[0].mxu0 %v475
      %v1776 = vpop.f32.mrb[0].mxu0
      %v1777 = vadd.f32 %v1057, %v1776
      %v1778 = vpop.f32.mrb[0].mxu0
      %1779 = vmatprep.mubr.f32.mxu0 0.0
      %1780 = vmatmul.mubr.f32.gmra.mrb[0].mxu0 %v478
      %v1781 = vpop.f32.mrb[0].mxu0
      %v1782 = vadd.f32 %v1062, %v1781
      %v1783 = vpop.f32.mrb[0].mxu0
      %1784 = vmatprep.mubr.f32.mxu0 0.0
      %1785 = vmatmul.mubr.f32.gmra.mrb[0].mxu0 %v481
      %v1786 = vpop.f32.mrb[0].mxu0
      %v1787 = vadd.f32 %v1067, %v1786
      %v1788 = vpop.f32.mrb[0].mxu0
      %1789 = vmatprep.mubr.f32.mxu0 0.0
      %1790 = vmatmul.mubr.f32.gmra.mrb[0].mxu0 %v484
      %v1791 = vpop.f32.mrb[0].mxu0
      %v1792 = vadd.f32 %v1072, %v1791
      %v1793 = vpop.f32.mrb[0].mxu0
      %1794 = vmatprep.mubr.f32.mxu0 0.0
      %1795 = vmatmul.mubr.f32.gmra.mrb[0].mxu0 %v487
      %v1796 = vpop.f32.mrb[0].mxu0
      %v1797 = vadd.f32 %v1077, %v1796
      %v1798 = vpop.f32.mrb[0].mxu0
      %1799 = vmatprep.mubr.f32.mxu0 0.0
      %1800 = vmatmul.mubr.f32.gmra.mrb[0].mxu0 %v490
      %v1801 = vpop.f32.mrb[0].mxu0
      %v1802 = vadd.f32 %v1082, %v1801
      %v1803 = vpop.f32.mrb[0].mxu0
      %1804 = vmatprep.mubr.f32.mxu0 0.0
      %1805 = vmatmul.mubr.f32.gmra.mrb[0].mxu0 %v493
      %v1806 = vpop.f32.mrb[0].mxu0
      %v1807 = vadd.f32 %v1087, %v1806
      %v1808 = vpop.f32.mrb[0].mxu0
      %1809 = vmatprep.mubr.f32.mxu0 0.0
      %1810 = vmatmul.mubr.f32.gmra.mrb[0].mxu0 %v496
      %v1811 = vpop.f32.mrb[0].mxu0
      %v1812 = vadd.f32 %v1092, %v1811
      %v1813 = vpop.f32.mrb[0].mxu0
      %1814 = vmatprep.mubr.f32.mxu0 0.0
      %1815 = vmatmul.mubr.f32.gmra.mrb[0].mxu0 %v499
      %v1816 = vpop.f32.mrb[0].mxu0
      %v1817 = vadd.f32 %v1097, %v1816
      %v1818 = vpop.f32.mrb[0].mxu0
      %1819 = vmatprep.mubr.f32.mxu0 0.0
      %1820 = vmatmul.mubr.f32.gmra.mrb[0].mxu0 %v502
      %v1821 = vpop.f32.mrb[0].mxu0
      %v1822 = vadd.f32 %v1102, %v1821
      %v1823 = vpop.f32.mrb[0].mxu0
      %1824 = vmatprep.mubr.f32.mxu0 0.0
      %1825 = vmatmul.mubr.f32.gmra.mrb[0].mxu0 %v505
      %v1826 = vpop.f32.mrb[0].mxu0
      %v1827 = vadd.f32 %v1107, %v1826
      %v1828 = vpop.f32.mrb[0].mxu0
      %1829 = vmatprep.mubr.f32.mxu0 0.0
      %1830 = vmatmul.mubr.f32.gmra.mrb[0].mxu0 %v508
      %v1831 = vpop.f32.mrb[0].mxu0
      %v1832 = vadd.f32 %v1112, %v1831
      %v1833 = vpop.f32.mrb[0].mxu0
      %1834 = vmatprep.mubr.f32.mxu0 0.0
      %1835 = vmatmul.mubr.f32.gmra.mrb[0].mxu0 %v511
      %v1836 = vpop.f32.mrb[0].mxu0
      %v1837 = vadd.f32 %v1117, %v1836
      %v1838 = vpop.f32.mrb[0].mxu0
      %1839 = vmatprep.mubr.f32.mxu0 0.0
      %1840 = vmatmul.mubr.f32.gmra.mrb[0].mxu0 %v514
      %v1841 = vpop.f32.mrb[0].mxu0
      %v1842 = vadd.f32 %v1122, %v1841
      %v1843 = vpop.f32.mrb[0].mxu0
      %1844 = vmatprep.mubr.f32.mxu0 0.0
      %1845 = vmatmul.mubr.f32.gmra.mrb[0].mxu0 %v517
      %v1846 = vpop.f32.mrb[0].mxu0
      %v1847 = vadd.f32 %v1127, %v1846
      %v1848 = vpop.f32.mrb[0].mxu0
      %1849 = vmatprep.mubr.f32.mxu0 0.0
      %1850 = vmatmul.mubr.f32.gmra.mrb[0].mxu0 %v520
      %v1851 = vpop.f32.mrb[0].mxu0
      %v1852 = vadd.f32 %v1132, %v1851
      %v1853 = vpop.f32.mrb[0].mxu0
      %1854 = vmatprep.mubr.f32.mxu0 0.0
      %1855 = vmatmul.mubr.f32.gmra.mrb[0].mxu0 %v523
      %v1856 = vpop.f32.mrb[0].mxu0
      %v1857 = vadd.f32 %v1137, %v1856
      %v1858 = vpop.f32.mrb[0].mxu0
      %1859 = vmatprep.mubr.f32.mxu0 0.0
      %1860 = vmatmul.mubr.f32.gmra.mrb[0].mxu0 %v526
      %v1861 = vpop.f32.mrb[0].mxu0
      %v1862 = vadd.f32 %v1142, %v1861
      %v1863 = vpop.f32.mrb[0].mxu0
      %1864 = vmatprep.mubr.f32.mxu0 0.0
      %1865 = vmatmul.mubr.f32.gmra.mrb[0].mxu0 %v529
      %v1866 = vpop.f32.mrb[0].mxu0
      %v1867 = vadd.f32 %v1147, %v1866
      %v1868 = vpop.f32.mrb[0].mxu0
      %1869 = vmatprep.mubr.f32.mxu0 0.0
      %1870 = vmatmul.mubr.f32.gmra.mrb[0].mxu0 %v532
      %v1871 = vpop.f32.mrb[0].mxu0
      %v1872 = vadd.f32 %v1152, %v1871
      %v1873 = vpop.f32.mrb[0].mxu0
      %1874 = vmatprep.mubr.f32.mxu0 0.0
      %1875 = vmatmul.mubr.f32.gmra.mrb[0].mxu0 %v535
      %v1876 = vpop.f32.mrb[0].mxu0
      %v1877 = vadd.f32 %v1157, %v1876
      %v1878 = vpop.f32.mrb[0].mxu0
      %1879 = vmatprep.mubr.f32.mxu0 0.0
      %1880 = vmatmul.mubr.f32.gmra.mrb[0].mxu0 %v538
      %v1881 = vpop.f32.mrb[0].mxu0
      %v1882 = vadd.f32 %v1162, %v1881
      %v1883 = vpop.f32.mrb[0].mxu0
      %1884 = vmatprep.mubr.f32.mxu0 0.0
      %1885 = vmatmul.mubr.f32.gmra.mrb[0].mxu0 %v541
      %v1886 = vpop.f32.mrb[0].mxu0
      %v1887 = vadd.f32 %v1167, %v1886
      %v1888 = vpop.f32.mrb[0].mxu0
      %1889 = vmatprep.mubr.f32.mxu0 0.0
      %1890 = vmatmul.mubr.f32.gmra.mrb[0].mxu0 %v544
      %v1891 = vpop.f32.mrb[0].mxu0
      %v1892 = vadd.f32 %v1172, %v1891
      %v1893 = vpop.f32.mrb[0].mxu0
      %1894 = vmatprep.mubr.f32.mxu0 0.0
      %1895 = vmatmul.mubr.f32.gmra.mrb[0].mxu0 %v547
      %v1896 = vpop.f32.mrb[0].mxu0
      %v1897 = vadd.f32 %v1177, %v1896
      %v1898 = vpop.f32.mrb[0].mxu0
      %1899 = vmatprep.mubr.f32.mxu0 0.0
      %1900 = vmatmul.mubr.f32.gmra.mrb[0].mxu0 %v550
      %v1901 = vpop.f32.mrb[0].mxu0
      %v1902 = vadd.f32 %v1182, %v1901
      %v1903 = vpop.f32.mrb[0].mxu0
      %1904 = vmatprep.mubr.f32.mxu0 0.0
      %1905 = vmatmul.mubr.f32.gmra.mrb[0].mxu0 %v553
      %v1906 = vpop.f32.mrb[0].mxu0
      %v1907 = vadd.f32 %v1187, %v1906
      %v1908 = vpop.f32.mrb[0].mxu0
      %1909 = vmatprep.mubr.f32.mxu0 0.0
      %1910 = vmatmul.mubr.f32.gmra.mrb[0].mxu0 %v556
      %v1911 = vpop.f32.mrb[0].mxu0
      %v1912 = vadd.f32 %v1192, %v1911
      %v1913 = vpop.f32.mrb[0].mxu0
      %1914 = vmatprep.mubr.f32.mxu0 0.0
      %1915 = vmatmul.mubr.f32.gmra.mrb[0].mxu0 %v559
      %v1916 = vpop.f32.mrb[0].mxu0
      %v1917 = vadd.f32 %v1197, %v1916
      %v1918 = vpop.f32.mrb[0].mxu0
      %1919 = vmatprep.mubr.f32.mxu0 0.0
      %1920 = vmatmul.mubr.f32.gmra.mrb[0].mxu0 %v562
      %v1921 = vpop.f32.mrb[0].mxu0
      %v1922 = vadd.f32 %v1202, %v1921
      %v1923 = vpop.f32.mrb[0].mxu0
      %1924 = vmatprep.mubr.f32.mxu0 0.0
      %1925 = vmatmul.mubr.f32.gmra.mrb[0].mxu0 %v565
      %v1926 = vpop.f32.mrb[0].mxu0
      %v1927 = vadd.f32 %v1207, %v1926
      %v1928 = vpop.f32.mrb[0].mxu0
      %1929 = vmatprep.mubr.f32.mxu0 0.0
      %1930 = vmatmul.mubr.f32.gmra.mrb[0].mxu0 %v568
      %v1931 = vpop.f32.mrb[0].mxu0
      %v1932 = vadd.f32 %v1212, %v1931
      %v1933 = vpop.f32.mrb[0].mxu0
      %1934 = vmatprep.mubr.f32.mxu0 0.0
      %1935 = vmatmul.mubr.f32.gmra.mrb[0].mxu0 %v571
      %v1936 = vpop.f32.mrb[0].mxu0
      %v1937 = vadd.f32 %v1217, %v1936
      %v1938 = vpop.f32.mrb[0].mxu0
      %1939 = vmatprep.mubr.f32.mxu0 0.0
      %1940 = vmatmul.mubr.f32.gmra.mrb[0].mxu0 %v574
      %v1941 = vpop.f32.mrb[0].mxu0
      %v1942 = vadd.f32 %v1222, %v1941
      %v1943 = vpop.f32.mrb[0].mxu0
      %1944 = vmatprep.mubr.f32.mxu0 0.0
      %1945 = vmatmul.mubr.f32.gmra.mrb[0].mxu0 %v577
      %v1946 = vpop.f32.mrb[0].mxu0
      %v1947 = vadd.f32 %v1227, %v1946
      %v1948 = vpop.f32.mrb[0].mxu0
      %1949 = vmatprep.mubr.f32.mxu0 0.0
      %1950 = vmatmul.mubr.f32.gmra.mrb[0].mxu0 %v580
      %v1951 = vpop.f32.mrb[0].mxu0
      %v1952 = vadd.f32 %v1232, %v1951
      %v1953 = vpop.f32.mrb[0].mxu0
      %1954 = vmatprep.mubr.f32.mxu0 0.0
      %1955 = vmatmul.mubr.f32.gmra.mrb[0].mxu0 %v583
      %v1956 = vpop.f32.mrb[0].mxu0
      %v1957 = vadd.f32 %v1237, %v1956
      %v1958 = vpop.f32.mrb[0].mxu0
      %1959 = vmatprep.mubr.f32.mxu0 0.0
      %1960 = vmatmul.mubr.f32.gmra.mrb[0].mxu0 %v586
      %v1961 = vpop.f32.mrb[0].mxu0
      %v1962 = vadd.f32 %v1242, %v1961
      %v1963 = vpop.f32.mrb[0].mxu0
      %1964 = vmatprep.mubr.f32.mxu0 0.0
      %1965 = vmatmul.mubr.f32.gmra.mrb[0].mxu0 %v589
      %v1966 = vpop.f32.mrb[0].mxu0
      %v1967 = vadd.f32 %v1247, %v1966
      %v1968 = vpop.f32.mrb[0].mxu0
      %1969 = vmatprep.mubr.f32.mxu0 0.0
      %1970 = vmatmul.mubr.f32.gmra.mrb[0].mxu0 %v592
      %v1971 = vpop.f32.mrb[0].mxu0
      %v1972 = vadd.f32 %v1252, %v1971
      %v1973 = vpop.f32.mrb[0].mxu0
      %1974 = vmatprep.mubr.f32.mxu0 0.0
      %1975 = vmatmul.mubr.f32.gmra.mrb[0].mxu0 %v595
      %v1976 = vpop.f32.mrb[0].mxu0
      %v1977 = vadd.f32 %v1257, %v1976
      %v1978 = vpop.f32.mrb[0].mxu0
      %1979 = vmatprep.mubr.f32.mxu0 0.0
      %1980 = vmatmul.mubr.f32.gmra.mrb[0].mxu0 %v598
      %v1981 = vpop.f32.mrb[0].mxu0
      %v1982 = vadd.f32 %v1262, %v1981
      %v1983 = vpop.f32.mrb[0].mxu0
      %1984 = vmatprep.mubr.f32.mxu0 0.0
      %1985 = vmatmul.mubr.f32.gmra.mrb[0].mxu0 %v601
      %v1986 = vpop.f32.mrb[0].mxu0
      %v1987 = vadd.f32 %v1267, %v1986
      %v1988 = vpop.f32.mrb[0].mxu0
      %1989 = vmatprep.mubr.f32.mxu0 0.0
      %1990 = vmatmul.mubr.f32.gmra.mrb[0].mxu0 %v604
      %v1991 = vpop.f32.mrb[0].mxu0
      %v1992 = vadd.f32 %v1272, %v1991
      %v1993 = vpop.f32.mrb[0].mxu0
      %1994 = vmatprep.mubr.f32.mxu0 0.0
      %1995 = vmatmul.mubr.f32.gmra.mrb[0].mxu0 %v607
      %v1996 = vpop.f32.mrb[0].mxu0
      %v1997 = vadd.f32 %v1277, %v1996
      %v1998 = vpop.f32.mrb[0].mxu0
      %1999 = vmatprep.mubr.f32.mxu0 0.0
      %2000 = vmatmul.mubr.f32.gmra.mrb[0].mxu0 %v610
      %v2001 = vpop.f32.mrb[0].mxu0
      %v2002 = vadd.f32 %v1282, %v2001
      %v2003 = vpop.f32.mrb[0].mxu0
      %2004 = vmatprep.mubr.f32.mxu0 0.0
      %2005 = vmatmul.mubr.f32.gmra.mrb[0].mxu0 %v613
      %v2006 = vpop.f32.mrb[0].mxu0
      %v2007 = vadd.f32 %v1287, %v2006
      %v2008 = vpop.f32.mrb[0].mxu0
      %2009 = vmatprep.mubr.f32.mxu0 0.0
      %2010 = vmatmul.mubr.f32.gmra.mrb[0].mxu0 %v616
      %v2011 = vpop.f32.mrb[0].mxu0
      %v2012 = vadd.f32 %v1292, %v2011
      %v2013 = vpop.f32.mrb[0].mxu0
      %2014 = vmatprep.mubr.f32.mxu0 0.0
      %2015 = vmatmul.mubr.f32.gmra.mrb[0].mxu0 %v619
      %v2016 = vpop.f32.mrb[0].mxu0
      %v2017 = vadd.f32 %v1297, %v2016
      %v2018 = vpop.f32.mrb[0].mxu0
      %2019 = vmatprep.mubr.f32.mxu0 0.0
      %2020 = vmatmul.mubr.f32.gmra.mrb[0].mxu0 %v622
      %v2021 = vpop.f32.mrb[0].mxu0
      %v2022 = vadd.f32 %v1302, %v2021
      %v2023 = vpop.f32.mrb[0].mxu0
      %2024 = vmatprep.mubr.f32.mxu0 0.0
      %2025 = vmatmul.mubr.f32.gmra.mrb[0].mxu0 %v625
      %v2026 = vpop.f32.mrb[0].mxu0
      %v2027 = vadd.f32 %v1307, %v2026
      %v2028 = vpop.f32.mrb[0].mxu0
      %2029 = vmatprep.mubr.f32.mxu0 0.0
      %2030 = vmatmul.mubr.f32.gmra.mrb[0].mxu0 %v628
      %v2031 = vpop.f32.mrb[0].mxu0
      %v2032 = vadd.f32 %v1312, %v2031
      %v2033 = vpop.f32.mrb[0].mxu0
      %2034 = vmatprep.mubr.f32.mxu0 0.0
      %2035 = vmatmul.mubr.f32.gmra.mrb[0].mxu0 %v631
      %v2036 = vpop.f32.mrb[0].mxu0
      %v2037 = vadd.f32 %v1317, %v2036
      %v2038 = vpop.f32.mrb[0].mxu0
      %2039 = vmatprep.mubr.f32.mxu0 0.0
      %2040 = vmatmul.mubr.f32.gmra.mrb[0].mxu0 %v634
      %v2041 = vpop.f32.mrb[0].mxu0
      %v2042 = vadd.f32 %v1322, %v2041
      %v2043 = vpop.f32.mrb[0].mxu0
      %2044 = vmatprep.mubr.f32.mxu0 0.0
      %2045 = vmatmul.mubr.f32.gmra.mrb[0].mxu0 %v637
      %v2046 = vpop.f32.mrb[0].mxu0
      %v2047 = vadd.f32 %v1327, %v2046
      %v2048 = vpop.f32.mrb[0].mxu0
      %2049 = vmatprep.mubr.f32.mxu0 0.0
      %2050 = vmatmul.mubr.f32.gmra.mrb[0].mxu0 %v640
      %v2051 = vpop.f32.mrb[0].mxu0
      %v2052 = vadd.f32 %v1332, %v2051
      %v2053 = vpop.f32.mrb[0].mxu0
      %2054 = vmatprep.mubr.f32.mxu0 0.0
      %2055 = vmatmul.mubr.f32.gmra.mrb[0].mxu0 %v643
      %v2056 = vpop.f32.mrb[0].mxu0
      %v2057 = vadd.f32 %v1337, %v2056
      %v2058 = vpop.f32.mrb[0].mxu0
      %2059 = vmatprep.mubr.f32.mxu0 0.0
      %2060 = vmatmul.mubr.f32.gmra.mrb[0].mxu0 %v646
      %v2061 = vpop.f32.mrb[0].mxu0
      %v2062 = vadd.f32 %v1342, %v2061
      %v2063 = vpop.f32.mrb[0].mxu0
      %2064 = vmatprep.mubr.f32.mxu0 0.0
      %2065 = vmatmul.mubr.f32.gmra.mrb[0].mxu0 %v649
      %v2066 = vpop.f32.mrb[0].mxu0
      %v2067 = vadd.f32 %v1347, %v2066
      %v2068 = vpop.f32.mrb[0].mxu0
      %2069 = vmatprep.mubr.f32.mxu0 0.0
      %2070 = vmatmul.mubr.f32.gmra.mrb[0].mxu0 %v652
      %v2071 = vpop.f32.mrb[0].mxu0
      %v2072 = vadd.f32 %v1352, %v2071
      %v2073 = vpop.f32.mrb[0].mxu0
      %2074 = vmatprep.mubr.f32.mxu0 0.0
      %2075 = vmatmul.mubr.f32.gmra.mrb[0].mxu0 %v655
      %v2076 = vpop.f32.mrb[0].mxu0
      %v2077 = vadd.f32 %v1357, %v2076
      %v2078 = vpop.f32.mrb[0].mxu0
      %2079 = vmatprep.mubr.f32.mxu0 0.0
      %2080 = vmatmul.mubr.f32.gmra.mrb[0].mxu0 %v658
      %v2081 = vpop.f32.mrb[0].mxu0
      %v2082 = vadd.f32 %v1362, %v2081
      %v2083 = vpop.f32.mrb[0].mxu0
      %2084 = vmatprep.mubr.f32.mxu0 0.0
      %2085 = vmatmul.mubr.f32.gmra.mrb[0].mxu0 %v661
      %v2086 = vpop.f32.mrb[0].mxu0
      %v2087 = vadd.f32 %v1367, %v2086
      %v2088 = vpop.f32.mrb[0].mxu0
      %2089 = vmatprep.mubr.f32.mxu0 0.0
      %2090 = vmatmul.mubr.f32.gmra.mrb[0].mxu0 %v664
      %v2091 = vpop.f32.mrb[0].mxu0
      %v2092 = vadd.f32 %v1372, %v2091
      %v2093 = vpop.f32.mrb[0].mxu0
      %2094 = vmatprep.mubr.f32.mxu0 0.0
      %2095 = vmatmul.mubr.f32.gmra.mrb[0].mxu0 %v667
      %v2096 = vpop.f32.mrb[0].mxu0
      %v2097 = vadd.f32 %v1377, %v2096
      %v2098 = vpop.f32.mrb[0].mxu0
      %2099 = vmatprep.mubr.f32.mxu0 0.0
      %2100 = vmatmul.mubr.f32.gmra.mrb[0].mxu0 %v670
      %v2101 = vpop.f32.mrb[0].mxu0
      %v2102 = vadd.f32 %v1382, %v2101
      %v2103 = vpop.f32.mrb[0].mxu0
      %2104 = vmatprep.mubr.f32.mxu0 0.0
      %2105 = vmatmul.mubr.f32.gmra.mrb[0].mxu0 %v673
      %v2106 = vpop.f32.mrb[0].mxu0
      %v2107 = vadd.f32 %v1387, %v2106
      %v2108 = vpop.f32.mrb[0].mxu0
      %2109 = vmatprep.mubr.f32.mxu0 0.0
      %2110 = vmatmul.mubr.f32.gmra.mrb[0].mxu0 %v676
      %v2111 = vpop.f32.mrb[0].mxu0
      %v2112 = vadd.f32 %v1392, %v2111
      %v2113 = vpop.f32.mrb[0].mxu0
      %2114 = vmatprep.mubr.f32.mxu0 0.0
      %2115 = vmatmul.mubr.f32.gmra.mrb[0].mxu0 %v679
      %v2116 = vpop.f32.mrb[0].mxu0
      %v2117 = vadd.f32 %v1397, %v2116
      %v2118 = vpop.f32.mrb[0].mxu0
      %2119 = vmatprep.mubr.f32.mxu0 0.0
      %2120 = vmatmul.mubr.f32.gmra.mrb[0].mxu0 %v682
      %v2121 = vpop.f32.mrb[0].mxu0
      %v2122 = vadd.f32 %v1402, %v2121
      %v2123 = vpop.f32.mrb[0].mxu0
      %2124 = vdwg.mxu0
      %v2125 = vld [vmem:[%s166 + $0x40] sm:$0xff]
      %v2126 = vld [vmem:[%s166 + $0x48] sm:$0xff]
      %v2127 = vld [vmem:[%s166 + $0x50] sm:$0xff]
      %v2128 = vld [vmem:[%s166 + $0x58] sm:$0xff]
      %v2129 = vld [vmem:[%s166 + $0x60] sm:$0xff]
      %v2130 = vld [vmem:[%s166 + $0x68] sm:$0xff]
      %v2131 = vld [vmem:[%s166 + $0x70] sm:$0xff]
      %v2132 = vld [vmem:[%s166 + $0x78] sm:$0xff]
      %v2133 = vld [vmem:[%s166 + $0x80] sm:$0xff]
      %v2134 = vld [vmem:[%s166 + $0x88] sm:$0xff]
      %v2135 = vld [vmem:[%s166 + $0x90] sm:$0xff]
      %v2136 = vld [vmem:[%s166 + $0x98] sm:$0xff]
      %v2137 = vld [vmem:[%s166 + $0xa0] sm:$0xff]
      %v2138 = vld [vmem:[%s166 + $0xa8] sm:$0xff]
      %v2139 = vld [vmem:[%s166 + $0xb0] sm:$0xff]
      %v2140 = vld [vmem:[%s166 + $0xb8] sm:$0xff]
      %v2141 = vld [vmem:[%s166 + $0xc0] sm:$0xff]
      %v2142 = vld [vmem:[%s166 + $0xc8] sm:$0xff]
      %v2143 = vld [vmem:[%s166 + $0xd0] sm:$0xff]
      %v2144 = vld [vmem:[%s166 + $0xd8] sm:$0xff]
      %v2145 = vld [vmem:[%s166 + $0xe0] sm:$0xff]
      %v2146 = vld [vmem:[%s166 + $0xe8] sm:$0xff]
      %v2147 = vld [vmem:[%s166 + $0xf0] sm:$0xff]
      %v2148 = vld [vmem:[%s166 + $0xf8] sm:$0xff]
      %v2149 = vld [vmem:[%s166 + $0x100] sm:$0xff]
      %v2150 = vld [vmem:[%s166 + $0x108] sm:$0xff]
      %v2151 = vld [vmem:[%s166 + $0x110] sm:$0xff]
      %v2152 = vld [vmem:[%s166 + $0x118] sm:$0xff]
      %v2153 = vld [vmem:[%s166 + $0x120] sm:$0xff]
      %v2154 = vld [vmem:[%s166 + $0x128] sm:$0xff]
      %v2155 = vld [vmem:[%s166 + $0x130] sm:$0xff]
      %v2156 = vld [vmem:[%s166 + $0x138] sm:$0xff]
      %v2157 = vld [vmem:[%s166 + $0x140] sm:$0xff]
      %v2158 = vld [vmem:[%s166 + $0x148] sm:$0xff]
      %v2159 = vld [vmem:[%s166 + $0x150] sm:$0xff]
      %v2160 = vld [vmem:[%s166 + $0x158] sm:$0xff]
      %v2161 = vld [vmem:[%s166 + $0x160] sm:$0xff]
      %v2162 = vld [vmem:[%s166 + $0x168] sm:$0xff]
      %v2163 = vld [vmem:[%s166 + $0x170] sm:$0xff]
      %v2164 = vld [vmem:[%s166 + $0x178] sm:$0xff]
      %v2165 = vld [vmem:[%s166 + $0x180] sm:$0xff]
      %v2166 = vld [vmem:[%s166 + $0x188] sm:$0xff]
      %v2167 = vld [vmem:[%s166 + $0x190] sm:$0xff]
      %v2168 = vld [vmem:[%s166 + $0x198] sm:$0xff]
      %v2169 = vld [vmem:[%s166 + $0x1a0] sm:$0xff]
      %v2170 = vld [vmem:[%s166 + $0x1a8] sm:$0xff]
      %v2171 = vld [vmem:[%s166 + $0x1b0] sm:$0xff]
      %v2172 = vld [vmem:[%s166 + $0x1b8] sm:$0xff]
      %v2173 = vld [vmem:[%s166 + $0x1c0] sm:$0xff]
      %v2174 = vld [vmem:[%s166 + $0x1c8] sm:$0xff]
      %v2175 = vld [vmem:[%s166 + $0x1d0] sm:$0xff]
      %v2176 = vld [vmem:[%s166 + $0x1d8] sm:$0xff]
      %v2177 = vld [vmem:[%s166 + $0x1e0] sm:$0xff]
      %v2178 = vld [vmem:[%s166 + $0x1e8] sm:$0xff]
      %v2179 = vld [vmem:[%s166 + $0x1f0] sm:$0xff]
      %v2180 = vld [vmem:[%s166 + $0x1f8] sm:$0xff]
      %v2181 = vld [vmem:[%s166 + $0x200] sm:$0xff]
      %v2182 = vld [vmem:[%s166 + $0x208] sm:$0xff]
      %v2183 = vld [vmem:[%s166 + $0x210] sm:$0xff]
      %v2184 = vld [vmem:[%s166 + $0x218] sm:$0xff]
      %v2185 = vld [vmem:[%s166 + $0x220] sm:$0xff]
      %v2186 = vld [vmem:[%s166 + $0x228] sm:$0xff]
      %v2187 = vld [vmem:[%s166 + $0x230] sm:$0xff]
      %v2188 = vld [vmem:[%s166 + $0x238] sm:$0xff]
      %v2189 = vld [vmem:[%s166 + $0x240] sm:$0xff]
      %v2190 = vld [vmem:[%s166 + $0x248] sm:$0xff]
      %v2191 = vld [vmem:[%s166 + $0x250] sm:$0xff]
      %v2192 = vld [vmem:[%s166 + $0x258] sm:$0xff]
      %v2193 = vld [vmem:[%s166 + $0x260] sm:$0xff]
      %v2194 = vld [vmem:[%s166 + $0x268] sm:$0xff]
      %v2195 = vld [vmem:[%s166 + $0x270] sm:$0xff]
      %v2196 = vld [vmem:[%s166 + $0x278] sm:$0xff]
      %v2197 = vld [vmem:[%s166 + $0x280] sm:$0xff]
      %v2198 = vld [vmem:[%s166 + $0x288] sm:$0xff]
      %v2199 = vld [vmem:[%s166 + $0x290] sm:$0xff]
      %v2200 = vld [vmem:[%s166 + $0x298] sm:$0xff]
      %v2201 = vld [vmem:[%s166 + $0x2a0] sm:$0xff]
      %v2202 = vld [vmem:[%s166 + $0x2a8] sm:$0xff]
      %v2203 = vld [vmem:[%s166 + $0x2b0] sm:$0xff]
      %v2204 = vld [vmem:[%s166 + $0x2b8] sm:$0xff]
      %v2205 = vld [vmem:[%s166 + $0x2c0] sm:$0xff]
      %v2206 = vld [vmem:[%s166 + $0x2c8] sm:$0xff]
      %v2207 = vld [vmem:[%s166 + $0x2d0] sm:$0xff]
      %v2208 = vld [vmem:[%s166 + $0x2d8] sm:$0xff]
      %v2209 = vld [vmem:[%s166 + $0x2e0] sm:$0xff]
      %v2210 = vld [vmem:[%s166 + $0x2e8] sm:$0xff]
      %v2211 = vld [vmem:[%s166 + $0x2f0] sm:$0xff]
      %v2212 = vld [vmem:[%s166 + $0x2f8] sm:$0xff]
      %v2213 = vld [vmem:[%s166 + $0x300] sm:$0xff]
      %v2214 = vld [vmem:[%s166 + $0x308] sm:$0xff]
      %v2215 = vld [vmem:[%s166 + $0x310] sm:$0xff]
      %v2216 = vld [vmem:[%s166 + $0x318] sm:$0xff]
      %v2217 = vld [vmem:[%s166 + $0x320] sm:$0xff]
      %v2218 = vld [vmem:[%s166 + $0x328] sm:$0xff]
      %v2219 = vld [vmem:[%s166 + $0x330] sm:$0xff]
      %v2220 = vld [vmem:[%s166 + $0x338] sm:$0xff]
      %v2221 = vld [vmem:[%s166 + $0x340] sm:$0xff]
      %v2222 = vld [vmem:[%s166 + $0x348] sm:$0xff]
      %v2223 = vld [vmem:[%s166 + $0x350] sm:$0xff]
      %v2224 = vld [vmem:[%s166 + $0x358] sm:$0xff]
      %v2225 = vld [vmem:[%s166 + $0x360] sm:$0xff]
      %v2226 = vld [vmem:[%s166 + $0x368] sm:$0xff]
      %v2227 = vld [vmem:[%s166 + $0x370] sm:$0xff]
      %v2228 = vld [vmem:[%s166 + $0x378] sm:$0xff]
      %v2229 = vld [vmem:[%s166 + $0x380] sm:$0xff]
      %v2230 = vld [vmem:[%s166 + $0x388] sm:$0xff]
      %v2231 = vld [vmem:[%s166 + $0x390] sm:$0xff]
      %v2232 = vld [vmem:[%s166 + $0x398] sm:$0xff]
      %v2233 = vld [vmem:[%s166 + $0x3a0] sm:$0xff]
      %v2234 = vld [vmem:[%s166 + $0x3a8] sm:$0xff]
      %v2235 = vld [vmem:[%s166 + $0x3b0] sm:$0xff]
      %v2236 = vld [vmem:[%s166 + $0x3b8] sm:$0xff]
      %v2237 = vld [vmem:[%s166 + $0x3c0] sm:$0xff]
      %v2238 = vld [vmem:[%s166 + $0x3c8] sm:$0xff]
      %v2239 = vld [vmem:[%s166 + $0x3d0] sm:$0xff]
      %v2240 = vld [vmem:[%s166 + $0x3d8] sm:$0xff]
      %v2241 = vld [vmem:[%s166 + $0x3e0] sm:$0xff]
      %v2242 = vld [vmem:[%s166 + $0x3e8] sm:$0xff]
      %v2243 = vld [vmem:[%s166 + $0x3f0] sm:$0xff]
      %v2244 = vld [vmem:[%s166 + $0x3f8] sm:$0xff]
      %v2245 = vld [vmem:[%s166 + $0x400] sm:$0xff]
      %v2246 = vld [vmem:[%s166 + $0x408] sm:$0xff]
      %v2247 = vld [vmem:[%s166 + $0x410] sm:$0xff]
      %v2248 = vld [vmem:[%s166 + $0x418] sm:$0xff]
      %v2249 = vld [vmem:[%s166 + $0x420] sm:$0xff]
      %v2250 = vld [vmem:[%s166 + $0x428] sm:$0xff]
      %v2251 = vld [vmem:[%s166 + $0x430] sm:$0xff]
      %v2252 = vld [vmem:[%s166 + $0x438] sm:$0xff]
      %s2253 = scalar_lea.vmem %s1, 32
      %v2254 = vld [vmem:[%s2253] sm:$0xff]
      %v2255 = vld [vmem:[%s2253 + $0x8] sm:$0xf]
      %v2257 = vsel %vm311, %v2125, 0
      %v2260 = vsel %vm311, %v2126, 0
      %v2263 = vsel %vm311, %v2127, 0
      %v2266 = vsel %vm311, %v2128, 0
      %v2269 = vsel %vm311, %v2129, 0
      %v2272 = vsel %vm311, %v2130, 0
      %v2275 = vsel %vm311, %v2131, 0
      %v2278 = vsel %vm311, %v2132, 0
      %v2281 = vsel %vm311, %v2133, 0
      %v2284 = vsel %vm311, %v2134, 0
      %v2287 = vsel %vm311, %v2135, 0
      %v2290 = vsel %vm311, %v2136, 0
      %v2293 = vsel %vm311, %v2137, 0
      %v2296 = vsel %vm311, %v2138, 0
      %v2299 = vsel %vm311, %v2139, 0
      %v2302 = vsel %vm311, %v2140, 0
      %v2305 = vsel %vm311, %v2141, 0
      %v2308 = vsel %vm311, %v2142, 0
      %v2311 = vsel %vm311, %v2143, 0
      %v2314 = vsel %vm311, %v2144, 0
      %v2317 = vsel %vm311, %v2145, 0
      %v2320 = vsel %vm311, %v2146, 0
      %v2323 = vsel %vm311, %v2147, 0
      %v2326 = vsel %vm311, %v2148, 0
      %v2329 = vsel %vm311, %v2149, 0
      %v2332 = vsel %vm311, %v2150, 0
      %v2335 = vsel %vm311, %v2151, 0
      %v2338 = vsel %vm311, %v2152, 0
      %v2341 = vsel %vm311, %v2153, 0
      %v2344 = vsel %vm311, %v2154, 0
      %v2347 = vsel %vm311, %v2155, 0
      %v2350 = vsel %vm311, %v2156, 0
      %v2353 = vsel %vm311, %v2157, 0
      %v2356 = vsel %vm311, %v2158, 0
      %v2359 = vsel %vm311, %v2159, 0
      %v2362 = vsel %vm311, %v2160, 0
      %v2365 = vsel %vm311, %v2161, 0
      %v2368 = vsel %vm311, %v2162, 0
      %v2371 = vsel %vm311, %v2163, 0
      %v2374 = vsel %vm311, %v2164, 0
      %v2377 = vsel %vm311, %v2165, 0
      %v2380 = vsel %vm311, %v2166, 0
      %v2383 = vsel %vm311, %v2167, 0
      %v2386 = vsel %vm311, %v2168, 0
      %v2389 = vsel %vm311, %v2169, 0
      %v2392 = vsel %vm311, %v2170, 0
      %v2395 = vsel %vm311, %v2171, 0
      %v2398 = vsel %vm311, %v2172, 0
      %v2401 = vsel %vm311, %v2173, 0
      %v2404 = vsel %vm311, %v2174, 0
      %v2407 = vsel %vm311, %v2175, 0
      %v2410 = vsel %vm311, %v2176, 0
      %v2413 = vsel %vm311, %v2177, 0
      %v2416 = vsel %vm311, %v2178, 0
      %v2419 = vsel %vm311, %v2179, 0
      %v2422 = vsel %vm311, %v2180, 0
      %v2425 = vsel %vm311, %v2181, 0
      %v2428 = vsel %vm311, %v2182, 0
      %v2431 = vsel %vm311, %v2183, 0
      %v2434 = vsel %vm311, %v2184, 0
      %v2437 = vsel %vm311, %v2185, 0
      %v2440 = vsel %vm311, %v2186, 0
      %v2443 = vsel %vm311, %v2187, 0
      %v2446 = vsel %vm311, %v2188, 0
      %v2449 = vsel %vm311, %v2189, 0
      %v2452 = vsel %vm311, %v2190, 0
      %v2455 = vsel %vm311, %v2191, 0
      %v2458 = vsel %vm311, %v2192, 0
      %v2461 = vsel %vm311, %v2193, 0
      %v2464 = vsel %vm311, %v2194, 0
      %v2467 = vsel %vm311, %v2195, 0
      %v2470 = vsel %vm311, %v2196, 0
      %v2473 = vsel %vm311, %v2197, 0
      %v2476 = vsel %vm311, %v2198, 0
      %v2479 = vsel %vm311, %v2199, 0
      %v2482 = vsel %vm311, %v2200, 0
      %v2485 = vsel %vm311, %v2201, 0
      %v2488 = vsel %vm311, %v2202, 0
      %v2491 = vsel %vm311, %v2203, 0
      %v2494 = vsel %vm311, %v2204, 0
      %v2497 = vsel %vm311, %v2205, 0
      %v2500 = vsel %vm311, %v2206, 0
      %v2503 = vsel %vm311, %v2207, 0
      %v2506 = vsel %vm311, %v2208, 0
      %v2509 = vsel %vm311, %v2209, 0
      %v2512 = vsel %vm311, %v2210, 0
      %v2515 = vsel %vm311, %v2211, 0
      %v2518 = vsel %vm311, %v2212, 0
      %v2521 = vsel %vm311, %v2213, 0
      %v2524 = vsel %vm311, %v2214, 0
      %v2527 = vsel %vm311, %v2215, 0
      %v2530 = vsel %vm311, %v2216, 0
      %v2533 = vsel %vm311, %v2217, 0
      %v2536 = vsel %vm311, %v2218, 0
      %v2539 = vsel %vm311, %v2219, 0
      %v2542 = vsel %vm311, %v2220, 0
      %v2545 = vsel %vm311, %v2221, 0
      %v2548 = vsel %vm311, %v2222, 0
      %v2551 = vsel %vm311, %v2223, 0
      %v2554 = vsel %vm311, %v2224, 0
      %v2557 = vsel %vm311, %v2225, 0
      %v2560 = vsel %vm311, %v2226, 0
      %v2563 = vsel %vm311, %v2227, 0
      %v2566 = vsel %vm311, %v2228, 0
      %v2569 = vsel %vm311, %v2229, 0
      %v2572 = vsel %vm311, %v2230, 0
      %v2575 = vsel %vm311, %v2231, 0
      %v2578 = vsel %vm311, %v2232, 0
      %v2581 = vsel %vm311, %v2233, 0
      %v2584 = vsel %vm311, %v2234, 0
      %v2587 = vsel %vm311, %v2235, 0
      %v2590 = vsel %vm311, %v2236, 0
      %v2593 = vsel %vm311, %v2237, 0
      %v2596 = vsel %vm311, %v2238, 0
      %v2599 = vsel %vm311, %v2239, 0
      %v2602 = vsel %vm311, %v2240, 0
      %v2605 = vsel %vm311, %v2241, 0
      %v2608 = vsel %vm311, %v2242, 0
      %v2611 = vsel %vm311, %v2243, 0
      %v2614 = vsel %vm311, %v2244, 0
      %v2617 = vsel %vm311, %v2245, 0
      %v2620 = vsel %vm311, %v2246, 0
      %v2623 = vsel %vm311, %v2247, 0
      %v2626 = vsel %vm311, %v2248, 0
      %v2629 = vsel %vm311, %v2249, 0
      %v2632 = vsel %vm311, %v2250, 0
      %v2635 = vsel %vm311, %v2251, 0
      %v2638 = vsel %vm311, %v2252, 0
      %v2641 = vsel %vm696, %v2255, 0
      %2643 = vmatprep.subr.mxu0 0.0
      %2644 = vmatpush1.msra.mxu0 %v2254
      %2645 = vmatprep.subr.mxu0 0.0
      %2646 = vmatpush1.msra.mxu0 %v2641
      %2647 = vmatprep.subr.mxu0 0.0
      %2648 = vmatpush1.msra.mxu0 0.0
      %2649 = vmatprep.subr.mxu0 0.0
      %2650 = vmatpush1.msra.mxu0 0.0
      %2651 = vmatprep.subr.mxu0 0.0
      %2652 = vmatpush1.msra.mxu0 0.0
      %2653 = vmatprep.subr.mxu0 0.0
      %2654 = vmatpush1.msra.mxu0 0.0
      %2655 = vmatprep.subr.mxu0 0.0
      %2656 = vmatpush1.msra.mxu0 0.0
      %2657 = vmatprep.subr.mxu0 0.0
      %2658 = vmatpush1.msra.mxu0 0.0
      %2659 = vmatprep.subr.mxu0 0.0
      %2660 = vmatpush1.msra.mxu0 0.0
      %2661 = vmatprep.subr.mxu0 0.0
      %2662 = vmatpush1.msra.mxu0 0.0
      %2663 = vmatprep.subr.mxu0 0.0
      %2664 = vmatpush1.msra.mxu0 0.0
      %2665 = vmatprep.subr.mxu0 0.0
      %2666 = vmatpush1.msra.mxu0 0.0
      %2667 = vmatprep.subr.mxu0 0.0
      %2668 = vmatpush1.msra.mxu0 0.0
      %2669 = vmatprep.subr.mxu0 0.0
      %2670 = vmatpush1.msra.mxu0 0.0
      %2671 = vmatprep.subr.mxu0 0.0
      %2672 = vmatpush1.msra.mxu0 0.0
      %2673 = vmatprep.subr.mxu0 0.0
      %2674 = vmatpush1.msra.mxu0 0.0
      %2675 = vmatprep.subr.mxu0 0.0
      %2676 = vmatpush1.msra.mxu0 0.0
      %2677 = vmatprep.subr.mxu0 0.0
      %2678 = vmatpush1.msra.mxu0 0.0
      %2679 = vmatprep.subr.mxu0 0.0
      %2680 = vmatpush1.msra.mxu0 0.0
      %2681 = vmatprep.subr.mxu0 0.0
      %2682 = vmatpush1.msra.mxu0 0.0
      %2683 = vmatprep.subr.mxu0 0.0
      %2684 = vmatpush1.msra.mxu0 0.0
      %2685 = vmatprep.subr.mxu0 0.0
      %2686 = vmatpush1.msra.mxu0 0.0
      %2687 = vmatprep.subr.mxu0 0.0
      %2688 = vmatpush1.msra.mxu0 0.0
      %2689 = vmatprep.subr.mxu0 0.0
      %2690 = vmatpush1.msra.mxu0 0.0
      %2691 = vmatprep.subr.mxu0 0.0
      %2692 = vmatpush1.msra.mxu0 0.0
      %2693 = vmatprep.subr.mxu0 0.0
      %2694 = vmatpush1.msra.mxu0 0.0
      %2695 = vmatprep.subr.mxu0 0.0
      %2696 = vmatpush1.msra.mxu0 0.0
      %2697 = vmatprep.subr.mxu0 0.0
      %2698 = vmatpush1.msra.mxu0 0.0
      %2699 = vmatprep.subr.mxu0 0.0
      %2700 = vmatpush1.msra.mxu0 0.0
      %2701 = vmatprep.subr.mxu0 0.0
      %2702 = vmatpush1.msra.mxu0 0.0
      %2703 = vmatprep.subr.mxu0 0.0
      %2704 = vmatpush1.msra.mxu0 0.0
      %2705 = vmatprep.subr.mxu0 0.0
      %2706 = vmatpush1.msra.mxu0 0.0
      %2707 = vmatprep.mubr.f32.mxu0 0.0
      %2708 = vmatmul.mubr.f32.gmra.mrb[0].mxu0 %v2257
      %v2709 = vpop.f32.mrb[0].mxu0
      %v2710 = vadd.f32 0.0, %v2709
      %v2711 = vpop.f32.mrb[0].mxu0
      %2712 = vmatprep.mubr.f32.mxu0 0.0
      %2713 = vmatmul.mubr.f32.gmra.mrb[0].mxu0 %v2260
      %v2714 = vpop.f32.mrb[0].mxu0
      %v2715 = vadd.f32 0.0, %v2714
      %v2716 = vpop.f32.mrb[0].mxu0
      %2717 = vmatprep.mubr.f32.mxu0 0.0
      %2718 = vmatmul.mubr.f32.gmra.mrb[0].mxu0 %v2263
      %v2719 = vpop.f32.mrb[0].mxu0
      %v2720 = vadd.f32 0.0, %v2719
      %v2721 = vpop.f32.mrb[0].mxu0
      %2722 = vmatprep.mubr.f32.mxu0 0.0
      %2723 = vmatmul.mubr.f32.gmra.mrb[0].mxu0 %v2266
      %v2724 = vpop.f32.mrb[0].mxu0
      %v2725 = vadd.f32 0.0, %v2724
      %v2726 = vpop.f32.mrb[0].mxu0
      %2727 = vmatprep.mubr.f32.mxu0 0.0
      %2728 = vmatmul.mubr.f32.gmra.mrb[0].mxu0 %v2269
      %v2729 = vpop.f32.mrb[0].mxu0
      %v2730 = vadd.f32 0.0, %v2729
      %v2731 = vpop.f32.mrb[0].mxu0
      %2732 = vmatprep.mubr.f32.mxu0 0.0
      %2733 = vmatmul.mubr.f32.gmra.mrb[0].mxu0 %v2272
      %v2734 = vpop.f32.mrb[0].mxu0
      %v2735 = vadd.f32 0.0, %v2734
      %v2736 = vpop.f32.mrb[0].mxu0
      %2737 = vmatprep.mubr.f32.mxu0 0.0
      %2738 = vmatmul.mubr.f32.gmra.mrb[0].mxu0 %v2275
      %v2739 = vpop.f32.mrb[0].mxu0
      %v2740 = vadd.f32 0.0, %v2739
      %v2741 = vpop.f32.mrb[0].mxu0
      %2742 = vmatprep.mubr.f32.mxu0 0.0
      %2743 = vmatmul.mubr.f32.gmra.mrb[0].mxu0 %v2278
      %v2744 = vpop.f32.mrb[0].mxu0
      %v2745 = vadd.f32 0.0, %v2744
      %v2746 = vpop.f32.mrb[0].mxu0
      %2747 = vmatprep.mubr.f32.mxu0 0.0
      %2748 = vmatmul.mubr.f32.gmra.mrb[0].mxu0 %v2281
      %v2749 = vpop.f32.mrb[0].mxu0
      %v2750 = vadd.f32 0.0, %v2749
      %v2751 = vpop.f32.mrb[0].mxu0
      %2752 = vmatprep.mubr.f32.mxu0 0.0
      %2753 = vmatmul.mubr.f32.gmra.mrb[0].mxu0 %v2284
      %v2754 = vpop.f32.mrb[0].mxu0
      %v2755 = vadd.f32 0.0, %v2754
      %v2756 = vpop.f32.mrb[0].mxu0
      %2757 = vmatprep.mubr.f32.mxu0 0.0
      %2758 = vmatmul.mubr.f32.gmra.mrb[0].mxu0 %v2287
      %v2759 = vpop.f32.mrb[0].mxu0
      %v2760 = vadd.f32 0.0, %v2759
      %v2761 = vpop.f32.mrb[0].mxu0
      %2762 = vmatprep.mubr.f32.mxu0 0.0
      %2763 = vmatmul.mubr.f32.gmra.mrb[0].mxu0 %v2290
      %v2764 = vpop.f32.mrb[0].mxu0
      %v2765 = vadd.f32 0.0, %v2764
      %v2766 = vpop.f32.mrb[0].mxu0
      %2767 = vmatprep.mubr.f32.mxu0 0.0
      %2768 = vmatmul.mubr.f32.gmra.mrb[0].mxu0 %v2293
      %v2769 = vpop.f32.mrb[0].mxu0
      %v2770 = vadd.f32 0.0, %v2769
      %v2771 = vpop.f32.mrb[0].mxu0
      %2772 = vmatprep.mubr.f32.mxu0 0.0
      %2773 = vmatmul.mubr.f32.gmra.mrb[0].mxu0 %v2296
      %v2774 = vpop.f32.mrb[0].mxu0
      %v2775 = vadd.f32 0.0, %v2774
      %v2776 = vpop.f32.mrb[0].mxu0
      %2777 = vmatprep.mubr.f32.mxu0 0.0
      %2778 = vmatmul.mubr.f32.gmra.mrb[0].mxu0 %v2299
      %v2779 = vpop.f32.mrb[0].mxu0
      %v2780 = vadd.f32 0.0, %v2779
      %v2781 = vpop.f32.mrb[0].mxu0
      %2782 = vmatprep.mubr.f32.mxu0 0.0
      %2783 = vmatmul.mubr.f32.gmra.mrb[0].mxu0 %v2302
      %v2784 = vpop.f32.mrb[0].mxu0
      %v2785 = vadd.f32 0.0, %v2784
      %v2786 = vpop.f32.mrb[0].mxu0
      %2787 = vmatprep.mubr.f32.mxu0 0.0
      %2788 = vmatmul.mubr.f32.gmra.mrb[0].mxu0 %v2305
      %v2789 = vpop.f32.mrb[0].mxu0
      %v2790 = vadd.f32 0.0, %v2789
      %v2791 = vpop.f32.mrb[0].mxu0
      %2792 = vmatprep.mubr.f32.mxu0 0.0
      %2793 = vmatmul.mubr.f32.gmra.mrb[0].mxu0 %v2308
      %v2794 = vpop.f32.mrb[0].mxu0
      %v2795 = vadd.f32 0.0, %v2794
      %v2796 = vpop.f32.mrb[0].mxu0
      %2797 = vmatprep.mubr.f32.mxu0 0.0
      %2798 = vmatmul.mubr.f32.gmra.mrb[0].mxu0 %v2311
      %v2799 = vpop.f32.mrb[0].mxu0
      %v2800 = vadd.f32 0.0, %v2799
      %v2801 = vpop.f32.mrb[0].mxu0
      %2802 = vmatprep.mubr.f32.mxu0 0.0
      %2803 = vmatmul.mubr.f32.gmra.mrb[0].mxu0 %v2314
      %v2804 = vpop.f32.mrb[0].mxu0
      %v2805 = vadd.f32 0.0, %v2804
      %v2806 = vpop.f32.mrb[0].mxu0
      %2807 = vmatprep.mubr.f32.mxu0 0.0
      %2808 = vmatmul.mubr.f32.gmra.mrb[0].mxu0 %v2317
      %v2809 = vpop.f32.mrb[0].mxu0
      %v2810 = vadd.f32 0.0, %v2809
      %v2811 = vpop.f32.mrb[0].mxu0
      %2812 = vmatprep.mubr.f32.mxu0 0.0
      %2813 = vmatmul.mubr.f32.gmra.mrb[0].mxu0 %v2320
      %v2814 = vpop.f32.mrb[0].mxu0
      %v2815 = vadd.f32 0.0, %v2814
      %v2816 = vpop.f32.mrb[0].mxu0
      %2817 = vmatprep.mubr.f32.mxu0 0.0
      %2818 = vmatmul.mubr.f32.gmra.mrb[0].mxu0 %v2323
      %v2819 = vpop.f32.mrb[0].mxu0
      %v2820 = vadd.f32 0.0, %v2819
      %v2821 = vpop.f32.mrb[0].mxu0
      %2822 = vmatprep.mubr.f32.mxu0 0.0
      %2823 = vmatmul.mubr.f32.gmra.mrb[0].mxu0 %v2326
      %v2824 = vpop.f32.mrb[0].mxu0
      %v2825 = vadd.f32 0.0, %v2824
      %v2826 = vpop.f32.mrb[0].mxu0
      %2827 = vmatprep.mubr.f32.mxu0 0.0
      %2828 = vmatmul.mubr.f32.gmra.mrb[0].mxu0 %v2329
      %v2829 = vpop.f32.mrb[0].mxu0
      %v2830 = vadd.f32 0.0, %v2829
      %v2831 = vpop.f32.mrb[0].mxu0
      %2832 = vmatprep.mubr.f32.mxu0 0.0
      %2833 = vmatmul.mubr.f32.gmra.mrb[0].mxu0 %v2332
      %v2834 = vpop.f32.mrb[0].mxu0
      %v2835 = vadd.f32 0.0, %v2834
      %v2836 = vpop.f32.mrb[0].mxu0
      %2837 = vmatprep.mubr.f32.mxu0 0.0
      %2838 = vmatmul.mubr.f32.gmra.mrb[0].mxu0 %v2335
      %v2839 = vpop.f32.mrb[0].mxu0
      %v2840 = vadd.f32 0.0, %v2839
      %v2841 = vpop.f32.mrb[0].mxu0
      %2842 = vmatprep.mubr.f32.mxu0 0.0
      %2843 = vmatmul.mubr.f32.gmra.mrb[0].mxu0 %v2338
      %v2844 = vpop.f32.mrb[0].mxu0
      %v2845 = vadd.f32 0.0, %v2844
      %v2846 = vpop.f32.mrb[0].mxu0
      %2847 = vmatprep.mubr.f32.mxu0 0.0
      %2848 = vmatmul.mubr.f32.gmra.mrb[0].mxu0 %v2341
      %v2849 = vpop.f32.mrb[0].mxu0
      %v2850 = vadd.f32 0.0, %v2849
      %v2851 = vpop.f32.mrb[0].mxu0
      %2852 = vmatprep.mubr.f32.mxu0 0.0
      %2853 = vmatmul.mubr.f32.gmra.mrb[0].mxu0 %v2344
      %v2854 = vpop.f32.mrb[0].mxu0
      %v2855 = vadd.f32 0.0, %v2854
      %v2856 = vpop.f32.mrb[0].mxu0
      %2857 = vmatprep.mubr.f32.mxu0 0.0
      %2858 = vmatmul.mubr.f32.gmra.mrb[0].mxu0 %v2347
      %v2859 = vpop.f32.mrb[0].mxu0
      %v2860 = vadd.f32 0.0, %v2859
      %v2861 = vpop.f32.mrb[0].mxu0
      %2862 = vmatprep.mubr.f32.mxu0 0.0
      %2863 = vmatmul.mubr.f32.gmra.mrb[0].mxu0 %v2350
      %v2864 = vpop.f32.mrb[0].mxu0
      %v2865 = vadd.f32 0.0, %v2864
      %v2866 = vpop.f32.mrb[0].mxu0
      %2867 = vmatprep.mubr.f32.mxu0 0.0
      %2868 = vmatmul.mubr.f32.gmra.mrb[0].mxu0 %v2353
      %v2869 = vpop.f32.mrb[0].mxu0
      %v2870 = vadd.f32 0.0, %v2869
      %v2871 = vpop.f32.mrb[0].mxu0
      %2872 = vmatprep.mubr.f32.mxu0 0.0
      %2873 = vmatmul.mubr.f32.gmra.mrb[0].mxu0 %v2356
      %v2874 = vpop.f32.mrb[0].mxu0
      %v2875 = vadd.f32 0.0, %v2874
      %v2876 = vpop.f32.mrb[0].mxu0
      %2877 = vmatprep.mubr.f32.mxu0 0.0
      %2878 = vmatmul.mubr.f32.gmra.mrb[0].mxu0 %v2359
      %v2879 = vpop.f32.mrb[0].mxu0
      %v2880 = vadd.f32 0.0, %v2879
      %v2881 = vpop.f32.mrb[0].mxu0
      %2882 = vmatprep.mubr.f32.mxu0 0.0
      %2883 = vmatmul.mubr.f32.gmra.mrb[0].mxu0 %v2362
      %v2884 = vpop.f32.mrb[0].mxu0
      %v2885 = vadd.f32 0.0, %v2884
      %v2886 = vpop.f32.mrb[0].mxu0
      %2887 = vmatprep.mubr.f32.mxu0 0.0
      %2888 = vmatmul.mubr.f32.gmra.mrb[0].mxu0 %v2365
      %v2889 = vpop.f32.mrb[0].mxu0
      %v2890 = vadd.f32 0.0, %v2889
      %v2891 = vpop.f32.mrb[0].mxu0
      %2892 = vmatprep.mubr.f32.mxu0 0.0
      %2893 = vmatmul.mubr.f32.gmra.mrb[0].mxu0 %v2368
      %v2894 = vpop.f32.mrb[0].mxu0
      %v2895 = vadd.f32 0.0, %v2894
      %v2896 = vpop.f32.mrb[0].mxu0
      %2897 = vmatprep.mubr.f32.mxu0 0.0
      %2898 = vmatmul.mubr.f32.gmra.mrb[0].mxu0 %v2371
      %v2899 = vpop.f32.mrb[0].mxu0
      %v2900 = vadd.f32 0.0, %v2899
      %v2901 = vpop.f32.mrb[0].mxu0
      %2902 = vmatprep.mubr.f32.mxu0 0.0
      %2903 = vmatmul.mubr.f32.gmra.mrb[0].mxu0 %v2374
      %v2904 = vpop.f32.mrb[0].mxu0
      %v2905 = vadd.f32 0.0, %v2904
      %v2906 = vpop.f32.mrb[0].mxu0
      %2907 = vmatprep.mubr.f32.mxu0 0.0
      %2908 = vmatmul.mubr.f32.gmra.mrb[0].mxu0 %v2377
      %v2909 = vpop.f32.mrb[0].mxu0
      %v2910 = vadd.f32 0.0, %v2909
      %v2911 = vpop.f32.mrb[0].mxu0
      %2912 = vmatprep.mubr.f32.mxu0 0.0
      %2913 = vmatmul.mubr.f32.gmra.mrb[0].mxu0 %v2380
      %v2914 = vpop.f32.mrb[0].mxu0
      %v2915 = vadd.f32 0.0, %v2914
      %v2916 = vpop.f32.mrb[0].mxu0
      %2917 = vmatprep.mubr.f32.mxu0 0.0
      %2918 = vmatmul.mubr.f32.gmra.mrb[0].mxu0 %v2383
      %v2919 = vpop.f32.mrb[0].mxu0
      %v2920 = vadd.f32 0.0, %v2919
      %v2921 = vpop.f32.mrb[0].mxu0
      %2922 = vmatprep.mubr.f32.mxu0 0.0
      %2923 = vmatmul.mubr.f32.gmra.mrb[0].mxu0 %v2386
      %v2924 = vpop.f32.mrb[0].mxu0
      %v2925 = vadd.f32 0.0, %v2924
      %v2926 = vpop.f32.mrb[0].mxu0
      %2927 = vmatprep.mubr.f32.mxu0 0.0
      %2928 = vmatmul.mubr.f32.gmra.mrb[0].mxu0 %v2389
      %v2929 = vpop.f32.mrb[0].mxu0
      %v2930 = vadd.f32 0.0, %v2929
      %v2931 = vpop.f32.mrb[0].mxu0
      %2932 = vmatprep.mubr.f32.mxu0 0.0
      %2933 = vmatmul.mubr.f32.gmra.mrb[0].mxu0 %v2392
      %v2934 = vpop.f32.mrb[0].mxu0
      %v2935 = vadd.f32 0.0, %v2934
      %v2936 = vpop.f32.mrb[0].mxu0
      %2937 = vmatprep.mubr.f32.mxu0 0.0
      %2938 = vmatmul.mubr.f32.gmra.mrb[0].mxu0 %v2395
      %v2939 = vpop.f32.mrb[0].mxu0
      %v2940 = vadd.f32 0.0, %v2939
      %v2941 = vpop.f32.mrb[0].mxu0
      %2942 = vmatprep.mubr.f32.mxu0 0.0
      %2943 = vmatmul.mubr.f32.gmra.mrb[0].mxu0 %v2398
      %v2944 = vpop.f32.mrb[0].mxu0
      %v2945 = vadd.f32 0.0, %v2944
      %v2946 = vpop.f32.mrb[0].mxu0
      %2947 = vmatprep.mubr.f32.mxu0 0.0
      %2948 = vmatmul.mubr.f32.gmra.mrb[0].mxu0 %v2401
      %v2949 = vpop.f32.mrb[0].mxu0
      %v2950 = vadd.f32 0.0, %v2949
      %v2951 = vpop.f32.mrb[0].mxu0
      %2952 = vmatprep.mubr.f32.mxu0 0.0
      %2953 = vmatmul.mubr.f32.gmra.mrb[0].mxu0 %v2404
      %v2954 = vpop.f32.mrb[0].mxu0
      %v2955 = vadd.f32 0.0, %v2954
      %v2956 = vpop.f32.mrb[0].mxu0
      %2957 = vmatprep.mubr.f32.mxu0 0.0
      %2958 = vmatmul.mubr.f32.gmra.mrb[0].mxu0 %v2407
      %v2959 = vpop.f32.mrb[0].mxu0
      %v2960 = vadd.f32 0.0, %v2959
      %v2961 = vpop.f32.mrb[0].mxu0
      %2962 = vmatprep.mubr.f32.mxu0 0.0
      %2963 = vmatmul.mubr.f32.gmra.mrb[0].mxu0 %v2410
      %v2964 = vpop.f32.mrb[0].mxu0
      %v2965 = vadd.f32 0.0, %v2964
      %v2966 = vpop.f32.mrb[0].mxu0
      %2967 = vmatprep.mubr.f32.mxu0 0.0
      %2968 = vmatmul.mubr.f32.gmra.mrb[0].mxu0 %v2413
      %v2969 = vpop.f32.mrb[0].mxu0
      %v2970 = vadd.f32 0.0, %v2969
      %v2971 = vpop.f32.mrb[0].mxu0
      %2972 = vmatprep.mubr.f32.mxu0 0.0
      %2973 = vmatmul.mubr.f32.gmra.mrb[0].mxu0 %v2416
      %v2974 = vpop.f32.mrb[0].mxu0
      %v2975 = vadd.f32 0.0, %v2974
      %v2976 = vpop.f32.mrb[0].mxu0
      %2977 = vmatprep.mubr.f32.mxu0 0.0
      %2978 = vmatmul.mubr.f32.gmra.mrb[0].mxu0 %v2419
      %v2979 = vpop.f32.mrb[0].mxu0
      %v2980 = vadd.f32 0.0, %v2979
      %v2981 = vpop.f32.mrb[0].mxu0
      %2982 = vmatprep.mubr.f32.mxu0 0.0
      %2983 = vmatmul.mubr.f32.gmra.mrb[0].mxu0 %v2422
      %v2984 = vpop.f32.mrb[0].mxu0
      %v2985 = vadd.f32 0.0, %v2984
      %v2986 = vpop.f32.mrb[0].mxu0
      %2987 = vmatprep.mubr.f32.mxu0 0.0
      %2988 = vmatmul.mubr.f32.gmra.mrb[0].mxu0 %v2425
      %v2989 = vpop.f32.mrb[0].mxu0
      %v2990 = vadd.f32 0.0, %v2989
      %v2991 = vpop.f32.mrb[0].mxu0
      %2992 = vmatprep.mubr.f32.mxu0 0.0
      %2993 = vmatmul.mubr.f32.gmra.mrb[0].mxu0 %v2428
      %v2994 = vpop.f32.mrb[0].mxu0
      %v2995 = vadd.f32 0.0, %v2994
      %v2996 = vpop.f32.mrb[0].mxu0
      %2997 = vmatprep.mubr.f32.mxu0 0.0
      %2998 = vmatmul.mubr.f32.gmra.mrb[0].mxu0 %v2431
      %v2999 = vpop.f32.mrb[0].mxu0
      %v3000 = vadd.f32 0.0, %v2999
      %v3001 = vpop.f32.mrb[0].mxu0
      %3002 = vmatprep.mubr.f32.mxu0 0.0
      %3003 = vmatmul.mubr.f32.gmra.mrb[0].mxu0 %v2434
      %v3004 = vpop.f32.mrb[0].mxu0
      %v3005 = vadd.f32 0.0, %v3004
      %v3006 = vpop.f32.mrb[0].mxu0
      %3007 = vmatprep.mubr.f32.mxu0 0.0
      %3008 = vmatmul.mubr.f32.gmra.mrb[0].mxu0 %v2437
      %v3009 = vpop.f32.mrb[0].mxu0
      %v3010 = vadd.f32 0.0, %v3009
      %v3011 = vpop.f32.mrb[0].mxu0
      %3012 = vmatprep.mubr.f32.mxu0 0.0
      %3013 = vmatmul.mubr.f32.gmra.mrb[0].mxu0 %v2440
      %v3014 = vpop.f32.mrb[0].mxu0
      %v3015 = vadd.f32 0.0, %v3014
      %v3016 = vpop.f32.mrb[0].mxu0
      %3017 = vmatprep.mubr.f32.mxu0 0.0
      %3018 = vmatmul.mubr.f32.gmra.mrb[0].mxu0 %v2443
      %v3019 = vpop.f32.mrb[0].mxu0
      %v3020 = vadd.f32 0.0, %v3019
      %v3021 = vpop.f32.mrb[0].mxu0
      %3022 = vmatprep.mubr.f32.mxu0 0.0
      %3023 = vmatmul.mubr.f32.gmra.mrb[0].mxu0 %v2446
      %v3024 = vpop.f32.mrb[0].mxu0
      %v3025 = vadd.f32 0.0, %v3024
      %v3026 = vpop.f32.mrb[0].mxu0
      %3027 = vmatprep.mubr.f32.mxu0 0.0
      %3028 = vmatmul.mubr.f32.gmra.mrb[0].mxu0 %v2449
      %v3029 = vpop.f32.mrb[0].mxu0
      %v3030 = vadd.f32 0.0, %v3029
      %v3031 = vpop.f32.mrb[0].mxu0
      %3032 = vmatprep.mubr.f32.mxu0 0.0
      %3033 = vmatmul.mubr.f32.gmra.mrb[0].mxu0 %v2452
      %v3034 = vpop.f32.mrb[0].mxu0
      %v3035 = vadd.f32 0.0, %v3034
      %v3036 = vpop.f32.mrb[0].mxu0
      %3037 = vmatprep.mubr.f32.mxu0 0.0
      %3038 = vmatmul.mubr.f32.gmra.mrb[0].mxu0 %v2455
      %v3039 = vpop.f32.mrb[0].mxu0
      %v3040 = vadd.f32 0.0, %v3039
      %v3041 = vpop.f32.mrb[0].mxu0
      %3042 = vmatprep.mubr.f32.mxu0 0.0
      %3043 = vmatmul.mubr.f32.gmra.mrb[0].mxu0 %v2458
      %v3044 = vpop.f32.mrb[0].mxu0
      %v3045 = vadd.f32 0.0, %v3044
      %v3046 = vpop.f32.mrb[0].mxu0
      %3047 = vmatprep.mubr.f32.mxu0 0.0
      %3048 = vmatmul.mubr.f32.gmra.mrb[0].mxu0 %v2461
      %v3049 = vpop.f32.mrb[0].mxu0
      %v3050 = vadd.f32 0.0, %v3049
      %v3051 = vpop.f32.mrb[0].mxu0
      %3052 = vmatprep.mubr.f32.mxu0 0.0
      %3053 = vmatmul.mubr.f32.gmra.mrb[0].mxu0 %v2464
      %v3054 = vpop.f32.mrb[0].mxu0
      %v3055 = vadd.f32 0.0, %v3054
      %v3056 = vpop.f32.mrb[0].mxu0
      %3057 = vmatprep.mubr.f32.mxu0 0.0
      %3058 = vmatmul.mubr.f32.gmra.mrb[0].mxu0 %v2467
      %v3059 = vpop.f32.mrb[0].mxu0
      %v3060 = vadd.f32 0.0, %v3059
      %v3061 = vpop.f32.mrb[0].mxu0
      %3062 = vmatprep.mubr.f32.mxu0 0.0
      %3063 = vmatmul.mubr.f32.gmra.mrb[0].mxu0 %v2470
      %v3064 = vpop.f32.mrb[0].mxu0
      %v3065 = vadd.f32 0.0, %v3064
      %v3066 = vpop.f32.mrb[0].mxu0
      %3067 = vmatprep.mubr.f32.mxu0 0.0
      %3068 = vmatmul.mubr.f32.gmra.mrb[0].mxu0 %v2473
      %v3069 = vpop.f32.mrb[0].mxu0
      %v3070 = vadd.f32 0.0, %v3069
      %v3071 = vpop.f32.mrb[0].mxu0
      %3072 = vmatprep.mubr.f32.mxu0 0.0
      %3073 = vmatmul.mubr.f32.gmra.mrb[0].mxu0 %v2476
      %v3074 = vpop.f32.mrb[0].mxu0
      %v3075 = vadd.f32 0.0, %v3074
      %v3076 = vpop.f32.mrb[0].mxu0
      %3077 = vmatprep.mubr.f32.mxu0 0.0
      %3078 = vmatmul.mubr.f32.gmra.mrb[0].mxu0 %v2479
      %v3079 = vpop.f32.mrb[0].mxu0
      %v3080 = vadd.f32 0.0, %v3079
      %v3081 = vpop.f32.mrb[0].mxu0
      %3082 = vmatprep.mubr.f32.mxu0 0.0
      %3083 = vmatmul.mubr.f32.gmra.mrb[0].mxu0 %v2482
      %v3084 = vpop.f32.mrb[0].mxu0
      %v3085 = vadd.f32 0.0, %v3084
      %v3086 = vpop.f32.mrb[0].mxu0
      %3087 = vmatprep.mubr.f32.mxu0 0.0
      %3088 = vmatmul.mubr.f32.gmra.mrb[0].mxu0 %v2485
      %v3089 = vpop.f32.mrb[0].mxu0
      %v3090 = vadd.f32 0.0, %v3089
      %v3091 = vpop.f32.mrb[0].mxu0
      %3092 = vmatprep.mubr.f32.mxu0 0.0
      %3093 = vmatmul.mubr.f32.gmra.mrb[0].mxu0 %v2488
      %v3094 = vpop.f32.mrb[0].mxu0
      %v3095 = vadd.f32 0.0, %v3094
      %v3096 = vpop.f32.mrb[0].mxu0
      %3097 = vmatprep.mubr.f32.mxu0 0.0
      %3098 = vmatmul.mubr.f32.gmra.mrb[0].mxu0 %v2491
      %v3099 = vpop.f32.mrb[0].mxu0
      %v3100 = vadd.f32 0.0, %v3099
      %v3101 = vpop.f32.mrb[0].mxu0
      %3102 = vmatprep.mubr.f32.mxu0 0.0
      %3103 = vmatmul.mubr.f32.gmra.mrb[0].mxu0 %v2494
      %v3104 = vpop.f32.mrb[0].mxu0
      %v3105 = vadd.f32 0.0, %v3104
      %v3106 = vpop.f32.mrb[0].mxu0
      %3107 = vmatprep.mubr.f32.mxu0 0.0
      %3108 = vmatmul.mubr.f32.gmra.mrb[0].mxu0 %v2497
      %v3109 = vpop.f32.mrb[0].mxu0
      %v3110 = vadd.f32 0.0, %v3109
      %v3111 = vpop.f32.mrb[0].mxu0
      %3112 = vmatprep.mubr.f32.mxu0 0.0
      %3113 = vmatmul.mubr.f32.gmra.mrb[0].mxu0 %v2500
      %v3114 = vpop.f32.mrb[0].mxu0
      %v3115 = vadd.f32 0.0, %v3114
      %v3116 = vpop.f32.mrb[0].mxu0
      %3117 = vmatprep.mubr.f32.mxu0 0.0
      %3118 = vmatmul.mubr.f32.gmra.mrb[0].mxu0 %v2503
      %v3119 = vpop.f32.mrb[0].mxu0
      %v3120 = vadd.f32 0.0, %v3119
      %v3121 = vpop.f32.mrb[0].mxu0
      %3122 = vmatprep.mubr.f32.mxu0 0.0
      %3123 = vmatmul.mubr.f32.gmra.mrb[0].mxu0 %v2506
      %v3124 = vpop.f32.mrb[0].mxu0
      %v3125 = vadd.f32 0.0, %v3124
      %v3126 = vpop.f32.mrb[0].mxu0
      %3127 = vmatprep.mubr.f32.mxu0 0.0
      %3128 = vmatmul.mubr.f32.gmra.mrb[0].mxu0 %v2509
      %v3129 = vpop.f32.mrb[0].mxu0
      %v3130 = vadd.f32 0.0, %v3129
      %v3131 = vpop.f32.mrb[0].mxu0
      %3132 = vmatprep.mubr.f32.mxu0 0.0
      %3133 = vmatmul.mubr.f32.gmra.mrb[0].mxu0 %v2512
      %v3134 = vpop.f32.mrb[0].mxu0
      %v3135 = vadd.f32 0.0, %v3134
      %v3136 = vpop.f32.mrb[0].mxu0
      %3137 = vmatprep.mubr.f32.mxu0 0.0
      %3138 = vmatmul.mubr.f32.gmra.mrb[0].mxu0 %v2515
      %v3139 = vpop.f32.mrb[0].mxu0
      %v3140 = vadd.f32 0.0, %v3139
      %v3141 = vpop.f32.mrb[0].mxu0
      %3142 = vmatprep.mubr.f32.mxu0 0.0
      %3143 = vmatmul.mubr.f32.gmra.mrb[0].mxu0 %v2518
      %v3144 = vpop.f32.mrb[0].mxu0
      %v3145 = vadd.f32 0.0, %v3144
      %v3146 = vpop.f32.mrb[0].mxu0
      %3147 = vmatprep.mubr.f32.mxu0 0.0
      %3148 = vmatmul.mubr.f32.gmra.mrb[0].mxu0 %v2521
      %v3149 = vpop.f32.mrb[0].mxu0
      %v3150 = vadd.f32 0.0, %v3149
      %v3151 = vpop.f32.mrb[0].mxu0
      %3152 = vmatprep.mubr.f32.mxu0 0.0
      %3153 = vmatmul.mubr.f32.gmra.mrb[0].mxu0 %v2524
      %v3154 = vpop.f32.mrb[0].mxu0
      %v3155 = vadd.f32 0.0, %v3154
      %v3156 = vpop.f32.mrb[0].mxu0
      %3157 = vmatprep.mubr.f32.mxu0 0.0
      %3158 = vmatmul.mubr.f32.gmra.mrb[0].mxu0 %v2527
      %v3159 = vpop.f32.mrb[0].mxu0
      %v3160 = vadd.f32 0.0, %v3159
      %v3161 = vpop.f32.mrb[0].mxu0
      %3162 = vmatprep.mubr.f32.mxu0 0.0
      %3163 = vmatmul.mubr.f32.gmra.mrb[0].mxu0 %v2530
      %v3164 = vpop.f32.mrb[0].mxu0
      %v3165 = vadd.f32 0.0, %v3164
      %v3166 = vpop.f32.mrb[0].mxu0
      %3167 = vmatprep.mubr.f32.mxu0 0.0
      %3168 = vmatmul.mubr.f32.gmra.mrb[0].mxu0 %v2533
      %v3169 = vpop.f32.mrb[0].mxu0
      %v3170 = vadd.f32 0.0, %v3169
      %v3171 = vpop.f32.mrb[0].mxu0
      %3172 = vmatprep.mubr.f32.mxu0 0.0
      %3173 = vmatmul.mubr.f32.gmra.mrb[0].mxu0 %v2536
      %v3174 = vpop.f32.mrb[0].mxu0
      %v3175 = vadd.f32 0.0, %v3174
      %v3176 = vpop.f32.mrb[0].mxu0
      %3177 = vmatprep.mubr.f32.mxu0 0.0
      %3178 = vmatmul.mubr.f32.gmra.mrb[0].mxu0 %v2539
      %v3179 = vpop.f32.mrb[0].mxu0
      %v3180 = vadd.f32 0.0, %v3179
      %v3181 = vpop.f32.mrb[0].mxu0
      %3182 = vmatprep.mubr.f32.mxu0 0.0
      %3183 = vmatmul.mubr.f32.gmra.mrb[0].mxu0 %v2542
      %v3184 = vpop.f32.mrb[0].mxu0
      %v3185 = vadd.f32 0.0, %v3184
      %v3186 = vpop.f32.mrb[0].mxu0
      %3187 = vmatprep.mubr.f32.mxu0 0.0
      %3188 = vmatmul.mubr.f32.gmra.mrb[0].mxu0 %v2545
      %v3189 = vpop.f32.mrb[0].mxu0
      %v3190 = vadd.f32 0.0, %v3189
      %v3191 = vpop.f32.mrb[0].mxu0
      %3192 = vmatprep.mubr.f32.mxu0 0.0
      %3193 = vmatmul.mubr.f32.gmra.mrb[0].mxu0 %v2548
      %v3194 = vpop.f32.mrb[0].mxu0
      %v3195 = vadd.f32 0.0, %v3194
      %v3196 = vpop.f32.mrb[0].mxu0
      %3197 = vmatprep.mubr.f32.mxu0 0.0
      %3198 = vmatmul.mubr.f32.gmra.mrb[0].mxu0 %v2551
      %v3199 = vpop.f32.mrb[0].mxu0
      %v3200 = vadd.f32 0.0, %v3199
      %v3201 = vpop.f32.mrb[0].mxu0
      %3202 = vmatprep.mubr.f32.mxu0 0.0
      %3203 = vmatmul.mubr.f32.gmra.mrb[0].mxu0 %v2554
      %v3204 = vpop.f32.mrb[0].mxu0
      %v3205 = vadd.f32 0.0, %v3204
      %v3206 = vpop.f32.mrb[0].mxu0
      %3207 = vmatprep.mubr.f32.mxu0 0.0
      %3208 = vmatmul.mubr.f32.gmra.mrb[0].mxu0 %v2557
      %v3209 = vpop.f32.mrb[0].mxu0
      %v3210 = vadd.f32 0.0, %v3209
      %v3211 = vpop.f32.mrb[0].mxu0
      %3212 = vmatprep.mubr.f32.mxu0 0.0
      %3213 = vmatmul.mubr.f32.gmra.mrb[0].mxu0 %v2560
      %v3214 = vpop.f32.mrb[0].mxu0
      %v3215 = vadd.f32 0.0, %v3214
      %v3216 = vpop.f32.mrb[0].mxu0
      %3217 = vmatprep.mubr.f32.mxu0 0.0
      %3218 = vmatmul.mubr.f32.gmra.mrb[0].mxu0 %v2563
      %v3219 = vpop.f32.mrb[0].mxu0
      %v3220 = vadd.f32 0.0, %v3219
      %v3221 = vpop.f32.mrb[0].mxu0
      %3222 = vmatprep.mubr.f32.mxu0 0.0
      %3223 = vmatmul.mubr.f32.gmra.mrb[0].mxu0 %v2566
      %v3224 = vpop.f32.mrb[0].mxu0
      %v3225 = vadd.f32 0.0, %v3224
      %v3226 = vpop.f32.mrb[0].mxu0
      %3227 = vmatprep.mubr.f32.mxu0 0.0
      %3228 = vmatmul.mubr.f32.gmra.mrb[0].mxu0 %v2569
      %v3229 = vpop.f32.mrb[0].mxu0
      %v3230 = vadd.f32 0.0, %v3229
      %v3231 = vpop.f32.mrb[0].mxu0
      %3232 = vmatprep.mubr.f32.mxu0 0.0
      %3233 = vmatmul.mubr.f32.gmra.mrb[0].mxu0 %v2572
      %v3234 = vpop.f32.mrb[0].mxu0
      %v3235 = vadd.f32 0.0, %v3234
      %v3236 = vpop.f32.mrb[0].mxu0
      %3237 = vmatprep.mubr.f32.mxu0 0.0
      %3238 = vmatmul.mubr.f32.gmra.mrb[0].mxu0 %v2575
      %v3239 = vpop.f32.mrb[0].mxu0
      %v3240 = vadd.f32 0.0, %v3239
      %v3241 = vpop.f32.mrb[0].mxu0
      %3242 = vmatprep.mubr.f32.mxu0 0.0
      %3243 = vmatmul.mubr.f32.gmra.mrb[0].mxu0 %v2578
      %v3244 = vpop.f32.mrb[0].mxu0
      %v3245 = vadd.f32 0.0, %v3244
      %v3246 = vpop.f32.mrb[0].mxu0
      %3247 = vmatprep.mubr.f32.mxu0 0.0
      %3248 = vmatmul.mubr.f32.gmra.mrb[0].mxu0 %v2581
      %v3249 = vpop.f32.mrb[0].mxu0
      %v3250 = vadd.f32 0.0, %v3249
      %v3251 = vpop.f32.mrb[0].mxu0
      %3252 = vmatprep.mubr.f32.mxu0 0.0
      %3253 = vmatmul.mubr.f32.gmra.mrb[0].mxu0 %v2584
      %v3254 = vpop.f32.mrb[0].mxu0
      %v3255 = vadd.f32 0.0, %v3254
      %v3256 = vpop.f32.mrb[0].mxu0
      %3257 = vmatprep.mubr.f32.mxu0 0.0
      %3258 = vmatmul.mubr.f32.gmra.mrb[0].mxu0 %v2587
      %v3259 = vpop.f32.mrb[0].mxu0
      %v3260 = vadd.f32 0.0, %v3259
      %v3261 = vpop.f32.mrb[0].mxu0
      %3262 = vmatprep.mubr.f32.mxu0 0.0
      %3263 = vmatmul.mubr.f32.gmra.mrb[0].mxu0 %v2590
      %v3264 = vpop.f32.mrb[0].mxu0
      %v3265 = vadd.f32 0.0, %v3264
      %v3266 = vpop.f32.mrb[0].mxu0
      %3267 = vmatprep.mubr.f32.mxu0 0.0
      %3268 = vmatmul.mubr.f32.gmra.mrb[0].mxu0 %v2593
      %v3269 = vpop.f32.mrb[0].mxu0
      %v3270 = vadd.f32 0.0, %v3269
      %v3271 = vpop.f32.mrb[0].mxu0
      %3272 = vmatprep.mubr.f32.mxu0 0.0
      %3273 = vmatmul.mubr.f32.gmra.mrb[0].mxu0 %v2596
      %v3274 = vpop.f32.mrb[0].mxu0
      %v3275 = vadd.f32 0.0, %v3274
      %v3276 = vpop.f32.mrb[0].mxu0
      %3277 = vmatprep.mubr.f32.mxu0 0.0
      %3278 = vmatmul.mubr.f32.gmra.mrb[0].mxu0 %v2599
      %v3279 = vpop.f32.mrb[0].mxu0
      %v3280 = vadd.f32 0.0, %v3279
      %v3281 = vpop.f32.mrb[0].mxu0
      %3282 = vmatprep.mubr.f32.mxu0 0.0
      %3283 = vmatmul.mubr.f32.gmra.mrb[0].mxu0 %v2602
      %v3284 = vpop.f32.mrb[0].mxu0
      %v3285 = vadd.f32 0.0, %v3284
      %v3286 = vpop.f32.mrb[0].mxu0
      %3287 = vmatprep.mubr.f32.mxu0 0.0
      %3288 = vmatmul.mubr.f32.gmra.mrb[0].mxu0 %v2605
      %v3289 = vpop.f32.mrb[0].mxu0
      %v3290 = vadd.f32 0.0, %v3289
      %v3291 = vpop.f32.mrb[0].mxu0
      %3292 = vmatprep.mubr.f32.mxu0 0.0
      %3293 = vmatmul.mubr.f32.gmra.mrb[0].mxu0 %v2608
      %v3294 = vpop.f32.mrb[0].mxu0
      %v3295 = vadd.f32 0.0, %v3294
      %v3296 = vpop.f32.mrb[0].mxu0
      %3297 = vmatprep.mubr.f32.mxu0 0.0
      %3298 = vmatmul.mubr.f32.gmra.mrb[0].mxu0 %v2611
      %v3299 = vpop.f32.mrb[0].mxu0
      %v3300 = vadd.f32 0.0, %v3299
      %v3301 = vpop.f32.mrb[0].mxu0
      %3302 = vmatprep.mubr.f32.mxu0 0.0
      %3303 = vmatmul.mubr.f32.gmra.mrb[0].mxu0 %v2614
      %v3304 = vpop.f32.mrb[0].mxu0
      %v3305 = vadd.f32 0.0, %v3304
      %v3306 = vpop.f32.mrb[0].mxu0
      %3307 = vmatprep.mubr.f32.mxu0 0.0
      %3308 = vmatmul.mubr.f32.gmra.mrb[0].mxu0 %v2617
      %v3309 = vpop.f32.mrb[0].mxu0
      %v3310 = vadd.f32 0.0, %v3309
      %v3311 = vpop.f32.mrb[0].mxu0
      %3312 = vmatprep.mubr.f32.mxu0 0.0
      %3313 = vmatmul.mubr.f32.gmra.mrb[0].mxu0 %v2620
      %v3314 = vpop.f32.mrb[0].mxu0
      %v3315 = vadd.f32 0.0, %v3314
      %v3316 = vpop.f32.mrb[0].mxu0
      %3317 = vmatprep.mubr.f32.mxu0 0.0
      %3318 = vmatmul.mubr.f32.gmra.mrb[0].mxu0 %v2623
      %v3319 = vpop.f32.mrb[0].mxu0
      %v3320 = vadd.f32 0.0, %v3319
      %v3321 = vpop.f32.mrb[0].mxu0
      %3322 = vmatprep.mubr.f32.mxu0 0.0
      %3323 = vmatmul.mubr.f32.gmra.mrb[0].mxu0 %v2626
      %v3324 = vpop.f32.mrb[0].mxu0
      %v3325 = vadd.f32 0.0, %v3324
      %v3326 = vpop.f32.mrb[0].mxu0
      %3327 = vmatprep.mubr.f32.mxu0 0.0
      %3328 = vmatmul.mubr.f32.gmra.mrb[0].mxu0 %v2629
      %v3329 = vpop.f32.mrb[0].mxu0
      %v3330 = vadd.f32 0.0, %v3329
      %v3331 = vpop.f32.mrb[0].mxu0
      %3332 = vmatprep.mubr.f32.mxu0 0.0
      %3333 = vmatmul.mubr.f32.gmra.mrb[0].mxu0 %v2632
      %v3334 = vpop.f32.mrb[0].mxu0
      %v3335 = vadd.f32 0.0, %v3334
      %v3336 = vpop.f32.mrb[0].mxu0
      %3337 = vmatprep.mubr.f32.mxu0 0.0
      %3338 = vmatmul.mubr.f32.gmra.mrb[0].mxu0 %v2635
      %v3339 = vpop.f32.mrb[0].mxu0
      %v3340 = vadd.f32 0.0, %v3339
      %v3341 = vpop.f32.mrb[0].mxu0
      %3342 = vmatprep.mubr.f32.mxu0 0.0
      %3343 = vmatmul.mubr.f32.gmra.mrb[0].mxu0 %v2638
      %v3344 = vpop.f32.mrb[0].mxu0
      %v3345 = vadd.f32 0.0, %v3344
      %v3346 = vpop.f32.mrb[0].mxu0
      %3347 = vdwg.mxu0
      %v3348 = vadd.f32 %v1487, %v2710
      %v3349 = vadd.f32 %v1492, %v2715
      %v3350 = vadd.f32 %v1497, %v2720
      %v3351 = vadd.f32 %v1502, %v2725
      %v3352 = vadd.f32 %v1507, %v2730
      %v3353 = vadd.f32 %v1512, %v2735
      %v3354 = vadd.f32 %v1517, %v2740
      %v3355 = vadd.f32 %v1522, %v2745
      %v3356 = vadd.f32 %v1527, %v2750
      %v3357 = vadd.f32 %v1532, %v2755
      %v3358 = vadd.f32 %v1537, %v2760
      %v3359 = vadd.f32 %v1542, %v2765
      %v3360 = vadd.f32 %v1547, %v2770
      %v3361 = vadd.f32 %v1552, %v2775
      %v3362 = vadd.f32 %v1557, %v2780
      %v3363 = vadd.f32 %v1562, %v2785
      %v3364 = vadd.f32 %v1567, %v2790
      %v3365 = vadd.f32 %v1572, %v2795
      %v3366 = vadd.f32 %v1577, %v2800
      %v3367 = vadd.f32 %v1582, %v2805
      %v3368 = vadd.f32 %v1587, %v2810
      %v3369 = vadd.f32 %v1592, %v2815
      %v3370 = vadd.f32 %v1597, %v2820
      %v3371 = vadd.f32 %v1602, %v2825
      %v3372 = vadd.f32 %v1607, %v2830
      %v3373 = vadd.f32 %v1612, %v2835
      %v3374 = vadd.f32 %v1617, %v2840
      %v3375 = vadd.f32 %v1622, %v2845
      %v3376 = vadd.f32 %v1627, %v2850
      %v3377 = vadd.f32 %v1632, %v2855
      %v3378 = vadd.f32 %v1637, %v2860
      %v3379 = vadd.f32 %v1642, %v2865
      %v3380 = vadd.f32 %v1647, %v2870
      %v3381 = vadd.f32 %v1652, %v2875
      %v3382 = vadd.f32 %v1657, %v2880
      %v3383 = vadd.f32 %v1662, %v2885
      %v3384 = vadd.f32 %v1667, %v2890
      %v3385 = vadd.f32 %v1672, %v2895
      %v3386 = vadd.f32 %v1677, %v2900
      %v3387 = vadd.f32 %v1682, %v2905
      %v3388 = vadd.f32 %v1687, %v2910
      %v3389 = vadd.f32 %v1692, %v2915
      %v3390 = vadd.f32 %v1697, %v2920
      %v3391 = vadd.f32 %v1702, %v2925
      %v3392 = vadd.f32 %v1707, %v2930
      %v3393 = vadd.f32 %v1712, %v2935
      %v3394 = vadd.f32 %v1717, %v2940
      %v3395 = vadd.f32 %v1722, %v2945
      %v3396 = vadd.f32 %v1727, %v2950
      %v3397 = vadd.f32 %v1732, %v2955
      %v3398 = vadd.f32 %v1737, %v2960
      %v3399 = vadd.f32 %v1742, %v2965
      %v3400 = vadd.f32 %v1747, %v2970
      %v3401 = vadd.f32 %v1752, %v2975
      %v3402 = vadd.f32 %v1757, %v2980
      %v3403 = vadd.f32 %v1762, %v2985
      %v3404 = vadd.f32 %v1767, %v2990
      %v3405 = vadd.f32 %v1772, %v2995
      %v3406 = vadd.f32 %v1777, %v3000
      %v3407 = vadd.f32 %v1782, %v3005
      %v3408 = vadd.f32 %v1787, %v3010
      %v3409 = vadd.f32 %v1792, %v3015
      %v3410 = vadd.f32 %v1797, %v3020
      %v3411 = vadd.f32 %v1802, %v3025
      %v3412 = vadd.f32 %v1807, %v3030
      %v3413 = vadd.f32 %v1812, %v3035
      %v3414 = vadd.f32 %v1817, %v3040
      %v3415 = vadd.f32 %v1822, %v3045
      %v3416 = vadd.f32 %v1827, %v3050
      %v3417 = vadd.f32 %v1832, %v3055
      %v3418 = vadd.f32 %v1837, %v3060
      %v3419 = vadd.f32 %v1842, %v3065
      %v3420 = vadd.f32 %v1847, %v3070
      %v3421 = vadd.f32 %v1852, %v3075
      %v3422 = vadd.f32 %v1857, %v3080
      %v3423 = vadd.f32 %v1862, %v3085
      %v3424 = vadd.f32 %v1867, %v3090
      %v3425 = vadd.f32 %v1872, %v3095
      %v3426 = vadd.f32 %v1877, %v3100
      %v3427 = vadd.f32 %v1882, %v3105
      %v3428 = vadd.f32 %v1887, %v3110
      %v3429 = vadd.f32 %v1892, %v3115
      %v3430 = vadd.f32 %v1897, %v3120
      %v3431 = vadd.f32 %v1902, %v3125
      %v3432 = vadd.f32 %v1907, %v3130
      %v3433 = vadd.f32 %v1912, %v3135
      %v3434 = vadd.f32 %v1917, %v3140
      %v3435 = vadd.f32 %v1922, %v3145
      %v3436 = vadd.f32 %v1927, %v3150
      %v3437 = vadd.f32 %v1932, %v3155
      %v3438 = vadd.f32 %v1937, %v3160
      %v3439 = vadd.f32 %v1942, %v3165
      %v3440 = vadd.f32 %v1947, %v3170
      %v3441 = vadd.f32 %v1952, %v3175
      %v3442 = vadd.f32 %v1957, %v3180
      %v3443 = vadd.f32 %v1962, %v3185
      %v3444 = vadd.f32 %v1967, %v3190
      %v3445 = vadd.f32 %v1972, %v3195
      %v3446 = vadd.f32 %v1977, %v3200
      %v3447 = vadd.f32 %v1982, %v3205
      %v3448 = vadd.f32 %v1987, %v3210
      %v3449 = vadd.f32 %v1992, %v3215
      %v3450 = vadd.f32 %v1997, %v3220
      %v3451 = vadd.f32 %v2002, %v3225
      %v3452 = vadd.f32 %v2007, %v3230
      %v3453 = vadd.f32 %v2012, %v3235
      %v3454 = vadd.f32 %v2017, %v3240
      %v3455 = vadd.f32 %v2022, %v3245
      %v3456 = vadd.f32 %v2027, %v3250
      %v3457 = vadd.f32 %v2032, %v3255
      %v3458 = vadd.f32 %v2037, %v3260
      %v3459 = vadd.f32 %v2042, %v3265
      %v3460 = vadd.f32 %v2047, %v3270
      %v3461 = vadd.f32 %v2052, %v3275
      %v3462 = vadd.f32 %v2057, %v3280
      %v3463 = vadd.f32 %v2062, %v3285
      %v3464 = vadd.f32 %v2067, %v3290
      %v3465 = vadd.f32 %v2072, %v3295
      %v3466 = vadd.f32 %v2077, %v3300
      %v3467 = vadd.f32 %v2082, %v3305
      %v3468 = vadd.f32 %v2087, %v3310
      %v3469 = vadd.f32 %v2092, %v3315
      %v3470 = vadd.f32 %v2097, %v3320
      %v3471 = vadd.f32 %v2102, %v3325
      %v3472 = vadd.f32 %v2107, %v3330
      %v3473 = vadd.f32 %v2112, %v3335
      %v3474 = vadd.f32 %v2117, %v3340
      %v3475 = vadd.f32 %v2122, %v3345
      %v3476 = vld [vmem:[%s2] sm:$0x1]
      %v3478 = vlaneseq
      %v3479 = vshrl.u32 %v3478, 7
      %v3480 = vsub.s32 0, %v3479
      %v3481 = vrot.slane %v3476, %v3480
      %v3483 = vadd.f32 %v3348, %v3481
      %v3484 = vadd.f32 %v3349, %v3481
      %v3485 = vadd.f32 %v3350, %v3481
      %v3486 = vadd.f32 %v3351, %v3481
      %v3487 = vadd.f32 %v3352, %v3481
      %v3488 = vadd.f32 %v3353, %v3481
      %v3489 = vadd.f32 %v3354, %v3481
      %v3490 = vadd.f32 %v3355, %v3481
      %v3491 = vadd.f32 %v3356, %v3481
      %v3492 = vadd.f32 %v3357, %v3481
      %v3493 = vadd.f32 %v3358, %v3481
      %v3494 = vadd.f32 %v3359, %v3481
      %v3495 = vadd.f32 %v3360, %v3481
      %v3496 = vadd.f32 %v3361, %v3481
      %v3497 = vadd.f32 %v3362, %v3481
      %v3498 = vadd.f32 %v3363, %v3481
      %v3499 = vadd.f32 %v3364, %v3481
      %v3500 = vadd.f32 %v3365, %v3481
      %v3501 = vadd.f32 %v3366, %v3481
      %v3502 = vadd.f32 %v3367, %v3481
      %v3503 = vadd.f32 %v3368, %v3481
      %v3504 = vadd.f32 %v3369, %v3481
      %v3505 = vadd.f32 %v3370, %v3481
      %v3506 = vadd.f32 %v3371, %v3481
      %v3507 = vadd.f32 %v3372, %v3481
      %v3508 = vadd.f32 %v3373, %v3481
      %v3509 = vadd.f32 %v3374, %v3481
      %v3510 = vadd.f32 %v3375, %v3481
      %v3511 = vadd.f32 %v3376, %v3481
      %v3512 = vadd.f32 %v3377, %v3481
      %v3513 = vadd.f32 %v3378, %v3481
      %v3514 = vadd.f32 %v3379, %v3481
      %v3515 = vadd.f32 %v3380, %v3481
      %v3516 = vadd.f32 %v3381, %v3481
      %v3517 = vadd.f32 %v3382, %v3481
      %v3518 = vadd.f32 %v3383, %v3481
      %v3519 = vadd.f32 %v3384, %v3481
      %v3520 = vadd.f32 %v3385, %v3481
      %v3521 = vadd.f32 %v3386, %v3481
      %v3522 = vadd.f32 %v3387, %v3481
      %v3523 = vadd.f32 %v3388, %v3481
      %v3524 = vadd.f32 %v3389, %v3481
      %v3525 = vadd.f32 %v3390, %v3481
      %v3526 = vadd.f32 %v3391, %v3481
      %v3527 = vadd.f32 %v3392, %v3481
      %v3528 = vadd.f32 %v3393, %v3481
      %v3529 = vadd.f32 %v3394, %v3481
      %v3530 = vadd.f32 %v3395, %v3481
      %v3531 = vadd.f32 %v3396, %v3481
      %v3532 = vadd.f32 %v3397, %v3481
      %v3533 = vadd.f32 %v3398, %v3481
      %v3534 = vadd.f32 %v3399, %v3481
      %v3535 = vadd.f32 %v3400, %v3481
      %v3536 = vadd.f32 %v3401, %v3481
      %v3537 = vadd.f32 %v3402, %v3481
      %v3538 = vadd.f32 %v3403, %v3481
      %v3539 = vadd.f32 %v3404, %v3481
      %v3540 = vadd.f32 %v3405, %v3481
      %v3541 = vadd.f32 %v3406, %v3481
      %v3542 = vadd.f32 %v3407, %v3481
      %v3543 = vadd.f32 %v3408, %v3481
      %v3544 = vadd.f32 %v3409, %v3481
      %v3545 = vadd.f32 %v3410, %v3481
      %v3546 = vadd.f32 %v3411, %v3481
      %v3547 = vadd.f32 %v3412, %v3481
      %v3548 = vadd.f32 %v3413, %v3481
      %v3549 = vadd.f32 %v3414, %v3481
      %v3550 = vadd.f32 %v3415, %v3481
      %v3551 = vadd.f32 %v3416, %v3481
      %v3552 = vadd.f32 %v3417, %v3481
      %v3553 = vadd.f32 %v3418, %v3481
      %v3554 = vadd.f32 %v3419, %v3481
      %v3555 = vadd.f32 %v3420, %v3481
      %v3556 = vadd.f32 %v3421, %v3481
      %v3557 = vadd.f32 %v3422, %v3481
      %v3558 = vadd.f32 %v3423, %v3481
      %v3559 = vadd.f32 %v3424, %v3481
      %v3560 = vadd.f32 %v3425, %v3481
      %v3561 = vadd.f32 %v3426, %v3481
      %v3562 = vadd.f32 %v3427, %v3481
      %v3563 = vadd.f32 %v3428, %v3481
      %v3564 = vadd.f32 %v3429, %v3481
      %v3565 = vadd.f32 %v3430, %v3481
      %v3566 = vadd.f32 %v3431, %v3481
      %v3567 = vadd.f32 %v3432, %v3481
      %v3568 = vadd.f32 %v3433, %v3481
      %v3569 = vadd.f32 %v3434, %v3481
      %v3570 = vadd.f32 %v3435, %v3481
      %v3571 = vadd.f32 %v3436, %v3481
      %v3572 = vadd.f32 %v3437, %v3481
      %v3573 = vadd.f32 %v3438, %v3481
      %v3574 = vadd.f32 %v3439, %v3481
      %v3575 = vadd.f32 %v3440, %v3481
      %v3576 = vadd.f32 %v3441, %v3481
      %v3577 = vadd.f32 %v3442, %v3481
      %v3578 = vadd.f32 %v3443, %v3481
      %v3579 = vadd.f32 %v3444, %v3481
      %v3580 = vadd.f32 %v3445, %v3481
      %v3581 = vadd.f32 %v3446, %v3481
      %v3582 = vadd.f32 %v3447, %v3481
      %v3583 = vadd.f32 %v3448, %v3481
      %v3584 = vadd.f32 %v3449, %v3481
      %v3585 = vadd.f32 %v3450, %v3481
      %v3586 = vadd.f32 %v3451, %v3481
      %v3587 = vadd.f32 %v3452, %v3481
      %v3588 = vadd.f32 %v3453, %v3481
      %v3589 = vadd.f32 %v3454, %v3481
      %v3590 = vadd.f32 %v3455, %v3481
      %v3591 = vadd.f32 %v3456, %v3481
      %v3592 = vadd.f32 %v3457, %v3481
      %v3593 = vadd.f32 %v3458, %v3481
      %v3594 = vadd.f32 %v3459, %v3481
      %v3595 = vadd.f32 %v3460, %v3481
      %v3596 = vadd.f32 %v3461, %v3481
      %v3597 = vadd.f32 %v3462, %v3481
      %v3598 = vadd.f32 %v3463, %v3481
      %v3599 = vadd.f32 %v3464, %v3481
      %v3600 = vadd.f32 %v3465, %v3481
      %v3601 = vadd.f32 %v3466, %v3481
      %v3602 = vadd.f32 %v3467, %v3481
      %v3603 = vadd.f32 %v3468, %v3481
      %v3604 = vadd.f32 %v3469, %v3481
      %v3605 = vadd.f32 %v3470, %v3481
      %v3606 = vadd.f32 %v3471, %v3481
      %v3607 = vadd.f32 %v3472, %v3481
      %v3608 = vadd.f32 %v3473, %v3481
      %v3609 = vadd.f32 %v3474, %v3481
      %v3610 = vadd.f32 %v3475, %v3481
      %vm3611 = vcmask 64512
      %3612 = vst.msk [vmem:[%s172] sm:$0xff] %vm3611, %v3483
      %3613 = vst.msk [vmem:[%s172 + $0x8] sm:$0xff] %vm3611, %v3484
      %3614 = vst.msk [vmem:[%s172 + $0x10] sm:$0xff] %vm3611, %v3485
      %3615 = vst.msk [vmem:[%s172 + $0x18] sm:$0xff] %vm3611, %v3486
      %3616 = vst.msk [vmem:[%s172 + $0x20] sm:$0xff] %vm3611, %v3487
      %3617 = vst.msk [vmem:[%s172 + $0x28] sm:$0xff] %vm3611, %v3488
      %3618 = vst.msk [vmem:[%s172 + $0x30] sm:$0xff] %vm3611, %v3489
      %3619 = vst.msk [vmem:[%s172 + $0x38] sm:$0xff] %vm3611, %v3490
      %3620 = vst.msk [vmem:[%s172 + $0x40] sm:$0xff] %vm3611, %v3491
      %3621 = vst.msk [vmem:[%s172 + $0x48] sm:$0xff] %vm3611, %v3492
      %3622 = vst.msk [vmem:[%s172 + $0x50] sm:$0xff] %vm3611, %v3493
      %3623 = vst.msk [vmem:[%s172 + $0x58] sm:$0xff] %vm3611, %v3494
      %3624 = vst.msk [vmem:[%s172 + $0x60] sm:$0xff] %vm3611, %v3495
      %3625 = vst.msk [vmem:[%s172 + $0x68] sm:$0xff] %vm3611, %v3496
      %3626 = vst.msk [vmem:[%s172 + $0x70] sm:$0xff] %vm3611, %v3497
      %3627 = vst.msk [vmem:[%s172 + $0x78] sm:$0xff] %vm3611, %v3498
      %3628 = vst.msk [vmem:[%s172 + $0x80] sm:$0xff] %vm3611, %v3499
      %3629 = vst.msk [vmem:[%s172 + $0x88] sm:$0xff] %vm3611, %v3500
      %3630 = vst.msk [vmem:[%s172 + $0x90] sm:$0xff] %vm3611, %v3501
      %3631 = vst.msk [vmem:[%s172 + $0x98] sm:$0xff] %vm3611, %v3502
      %3632 = vst.msk [vmem:[%s172 + $0xa0] sm:$0xff] %vm3611, %v3503
      %3633 = vst.msk [vmem:[%s172 + $0xa8] sm:$0xff] %vm3611, %v3504
      %3634 = vst.msk [vmem:[%s172 + $0xb0] sm:$0xff] %vm3611, %v3505
      %3635 = vst.msk [vmem:[%s172 + $0xb8] sm:$0xff] %vm3611, %v3506
      %3636 = vst.msk [vmem:[%s172 + $0xc0] sm:$0xff] %vm3611, %v3507
      %3637 = vst.msk [vmem:[%s172 + $0xc8] sm:$0xff] %vm3611, %v3508
      %3638 = vst.msk [vmem:[%s172 + $0xd0] sm:$0xff] %vm3611, %v3509
      %3639 = vst.msk [vmem:[%s172 + $0xd8] sm:$0xff] %vm3611, %v3510
      %3640 = vst.msk [vmem:[%s172 + $0xe0] sm:$0xff] %vm3611, %v3511
      %3641 = vst.msk [vmem:[%s172 + $0xe8] sm:$0xff] %vm3611, %v3512
      %3642 = vst.msk [vmem:[%s172 + $0xf0] sm:$0xff] %vm3611, %v3513
      %3643 = vst.msk [vmem:[%s172 + $0xf8] sm:$0xff] %vm3611, %v3514
      %3644 = vst.msk [vmem:[%s172 + $0x100] sm:$0xff] %vm3611, %v3515
      %3645 = vst.msk [vmem:[%s172 + $0x108] sm:$0xff] %vm3611, %v3516
      %3646 = vst.msk [vmem:[%s172 + $0x110] sm:$0xff] %vm3611, %v3517
      %3647 = vst.msk [vmem:[%s172 + $0x118] sm:$0xff] %vm3611, %v3518
      %3648 = vst.msk [vmem:[%s172 + $0x120] sm:$0xff] %vm3611, %v3519
      %3649 = vst.msk [vmem:[%s172 + $0x128] sm:$0xff] %vm3611, %v3520
      %3650 = vst.msk [vmem:[%s172 + $0x130] sm:$0xff] %vm3611, %v3521
      %3651 = vst.msk [vmem:[%s172 + $0x138] sm:$0xff] %vm3611, %v3522
      %3652 = vst.msk [vmem:[%s172 + $0x140] sm:$0xff] %vm3611, %v3523
      %3653 = vst.msk [vmem:[%s172 + $0x148] sm:$0xff] %vm3611, %v3524
      %3654 = vst.msk [vmem:[%s172 + $0x150] sm:$0xff] %vm3611, %v3525
      %3655 = vst.msk [vmem:[%s172 + $0x158] sm:$0xff] %vm3611, %v3526
      %3656 = vst.msk [vmem:[%s172 + $0x160] sm:$0xff] %vm3611, %v3527
      %3657 = vst.msk [vmem:[%s172 + $0x168] sm:$0xff] %vm3611, %v3528
      %3658 = vst.msk [vmem:[%s172 + $0x170] sm:$0xff] %vm3611, %v3529
      %3659 = vst.msk [vmem:[%s172 + $0x178] sm:$0xff] %vm3611, %v3530
      %3660 = vst.msk [vmem:[%s172 + $0x180] sm:$0xff] %vm3611, %v3531
      %3661 = vst.msk [vmem:[%s172 + $0x188] sm:$0xff] %vm3611, %v3532
      %3662 = vst.msk [vmem:[%s172 + $0x190] sm:$0xff] %vm3611, %v3533
      %3663 = vst.msk [vmem:[%s172 + $0x198] sm:$0xff] %vm3611, %v3534
      %3664 = vst.msk [vmem:[%s172 + $0x1a0] sm:$0xff] %vm3611, %v3535
      %3665 = vst.msk [vmem:[%s172 + $0x1a8] sm:$0xff] %vm3611, %v3536
      %3666 = vst.msk [vmem:[%s172 + $0x1b0] sm:$0xff] %vm3611, %v3537
      %3667 = vst.msk [vmem:[%s172 + $0x1b8] sm:$0xff] %vm3611, %v3538
      %3668 = vst.msk [vmem:[%s172 + $0x1c0] sm:$0xff] %vm3611, %v3539
      %3669 = vst.msk [vmem:[%s172 + $0x1c8] sm:$0xff] %vm3611, %v3540
      %3670 = vst.msk [vmem:[%s172 + $0x1d0] sm:$0xff] %vm3611, %v3541
      %3671 = vst.msk [vmem:[%s172 + $0x1d8] sm:$0xff] %vm3611, %v3542
      %3672 = vst.msk [vmem:[%s172 + $0x1e0] sm:$0xff] %vm3611, %v3543
      %3673 = vst.msk [vmem:[%s172 + $0x1e8] sm:$0xff] %vm3611, %v3544
      %3674 = vst.msk [vmem:[%s172 + $0x1f0] sm:$0xff] %vm3611, %v3545
      %3675 = vst.msk [vmem:[%s172 + $0x1f8] sm:$0xff] %vm3611, %v3546
      %3676 = vst.msk [vmem:[%s172 + $0x200] sm:$0xff] %vm3611, %v3547
      %3677 = vst.msk [vmem:[%s172 + $0x208] sm:$0xff] %vm3611, %v3548
      %3678 = vst.msk [vmem:[%s172 + $0x210] sm:$0xff] %vm3611, %v3549
      %3679 = vst.msk [vmem:[%s172 + $0x218] sm:$0xff] %vm3611, %v3550
      %3680 = vst.msk [vmem:[%s172 + $0x220] sm:$0xff] %vm3611, %v3551
      %3681 = vst.msk [vmem:[%s172 + $0x228] sm:$0xff] %vm3611, %v3552
      %3682 = vst.msk [vmem:[%s172 + $0x230] sm:$0xff] %vm3611, %v3553
      %3683 = vst.msk [vmem:[%s172 + $0x238] sm:$0xff] %vm3611, %v3554
      %3684 = vst.msk [vmem:[%s172 + $0x240] sm:$0xff] %vm3611, %v3555
      %3685 = vst.msk [vmem:[%s172 + $0x248] sm:$0xff] %vm3611, %v3556
      %3686 = vst.msk [vmem:[%s172 + $0x250] sm:$0xff] %vm3611, %v3557
      %3687 = vst.msk [vmem:[%s172 + $0x258] sm:$0xff] %vm3611, %v3558
      %3688 = vst.msk [vmem:[%s172 + $0x260] sm:$0xff] %vm3611, %v3559
      %3689 = vst.msk [vmem:[%s172 + $0x268] sm:$0xff] %vm3611, %v3560
      %3690 = vst.msk [vmem:[%s172 + $0x270] sm:$0xff] %vm3611, %v3561
      %3691 = vst.msk [vmem:[%s172 + $0x278] sm:$0xff] %vm3611, %v3562
      %3692 = vst.msk [vmem:[%s172 + $0x280] sm:$0xff] %vm3611, %v3563
      %3693 = vst.msk [vmem:[%s172 + $0x288] sm:$0xff] %vm3611, %v3564
      %3694 = vst.msk [vmem:[%s172 + $0x290] sm:$0xff] %vm3611, %v3565
      %3695 = vst.msk [vmem:[%s172 + $0x298] sm:$0xff] %vm3611, %v3566
      %3696 = vst.msk [vmem:[%s172 + $0x2a0] sm:$0xff] %vm3611, %v3567
      %3697 = vst.msk [vmem:[%s172 + $0x2a8] sm:$0xff] %vm3611, %v3568
      %3698 = vst.msk [vmem:[%s172 + $0x2b0] sm:$0xff] %vm3611, %v3569
      %3699 = vst.msk [vmem:[%s172 + $0x2b8] sm:$0xff] %vm3611, %v3570
      %3700 = vst.msk [vmem:[%s172 + $0x2c0] sm:$0xff] %vm3611, %v3571
      %3701 = vst.msk [vmem:[%s172 + $0x2c8] sm:$0xff] %vm3611, %v3572
      %3702 = vst.msk [vmem:[%s172 + $0x2d0] sm:$0xff] %vm3611, %v3573
      %3703 = vst.msk [vmem:[%s172 + $0x2d8] sm:$0xff] %vm3611, %v3574
      %3704 = vst.msk [vmem:[%s172 + $0x2e0] sm:$0xff] %vm3611, %v3575
      %3705 = vst.msk [vmem:[%s172 + $0x2e8] sm:$0xff] %vm3611, %v3576
      %3706 = vst.msk [vmem:[%s172 + $0x2f0] sm:$0xff] %vm3611, %v3577
      %3707 = vst.msk [vmem:[%s172 + $0x2f8] sm:$0xff] %vm3611, %v3578
      %3708 = vst.msk [vmem:[%s172 + $0x300] sm:$0xff] %vm3611, %v3579
      %3709 = vst.msk [vmem:[%s172 + $0x308] sm:$0xff] %vm3611, %v3580
      %3710 = vst.msk [vmem:[%s172 + $0x310] sm:$0xff] %vm3611, %v3581
      %3711 = vst.msk [vmem:[%s172 + $0x318] sm:$0xff] %vm3611, %v3582
      %3712 = vst.msk [vmem:[%s172 + $0x320] sm:$0xff] %vm3611, %v3583
      %3713 = vst.msk [vmem:[%s172 + $0x328] sm:$0xff] %vm3611, %v3584
      %3714 = vst.msk [vmem:[%s172 + $0x330] sm:$0xff] %vm3611, %v3585
      %3715 = vst.msk [vmem:[%s172 + $0x338] sm:$0xff] %vm3611, %v3586
      %3716 = vst.msk [vmem:[%s172 + $0x340] sm:$0xff] %vm3611, %v3587
      %3717 = vst.msk [vmem:[%s172 + $0x348] sm:$0xff] %vm3611, %v3588
      %3718 = vst.msk [vmem:[%s172 + $0x350] sm:$0xff] %vm3611, %v3589
      %3719 = vst.msk [vmem:[%s172 + $0x358] sm:$0xff] %vm3611, %v3590
      %3720 = vst.msk [vmem:[%s172 + $0x360] sm:$0xff] %vm3611, %v3591
      %3721 = vst.msk [vmem:[%s172 + $0x368] sm:$0xff] %vm3611, %v3592
      %3722 = vst.msk [vmem:[%s172 + $0x370] sm:$0xff] %vm3611, %v3593
      %3723 = vst.msk [vmem:[%s172 + $0x378] sm:$0xff] %vm3611, %v3594
      %3724 = vst.msk [vmem:[%s172 + $0x380] sm:$0xff] %vm3611, %v3595
      %3725 = vst.msk [vmem:[%s172 + $0x388] sm:$0xff] %vm3611, %v3596
      %3726 = vst.msk [vmem:[%s172 + $0x390] sm:$0xff] %vm3611, %v3597
      %3727 = vst.msk [vmem:[%s172 + $0x398] sm:$0xff] %vm3611, %v3598
      %3728 = vst.msk [vmem:[%s172 + $0x3a0] sm:$0xff] %vm3611, %v3599
      %3729 = vst.msk [vmem:[%s172 + $0x3a8] sm:$0xff] %vm3611, %v3600
      %3730 = vst.msk [vmem:[%s172 + $0x3b0] sm:$0xff] %vm3611, %v3601
      %3731 = vst.msk [vmem:[%s172 + $0x3b8] sm:$0xff] %vm3611, %v3602
      %3732 = vst.msk [vmem:[%s172 + $0x3c0] sm:$0xff] %vm3611, %v3603
      %3733 = vst.msk [vmem:[%s172 + $0x3c8] sm:$0xff] %vm3611, %v3604
      %3734 = vst.msk [vmem:[%s172 + $0x3d0] sm:$0xff] %vm3611, %v3605
      %3735 = vst.msk [vmem:[%s172 + $0x3d8] sm:$0xff] %vm3611, %v3606
      %3736 = vst.msk [vmem:[%s172 + $0x3e0] sm:$0xff] %vm3611, %v3607
      %3737 = vst.msk [vmem:[%s172 + $0x3e8] sm:$0xff] %vm3611, %v3608
      %3738 = vst.msk [vmem:[%s172 + $0x3f0] sm:$0xff] %vm3611, %v3609
      %3739 = vst.msk [vmem:[%s172 + $0x3f8] sm:$0xff] %vm3611, %v3610
      %s3740 = smul.u32 128, %s14
      %p3741 = scmp.lt.s32.totalorder %s3740, 255
      %s3742 = scalar_select %p3741, %s3740, 255
      %s3743 = smul.addr %s3742, 8
      %s3744 = scalar_lea.vmem %s3, %s3743
      // Predicated region
      $region33: #{tpu_custom_call.1} parent=31 // pred_check
        %p3745 = pneg %p100
      $region34: #{tpu_custom_call.1} parent=31 // pred_check_branch
        %3747 = sbr.rel (%p3745) target = $region36
      $region35: #{tpu_custom_call.1} parent=31 // pred_region
        %s3748 = smul.u32 128, %s14
      $region36: #{tpu_custom_call.1} parent=31 // pred_fallthru
        _
    $region32: #{tpu_custom_call.1} parent=5 // pred_fallthru
      _
    %p3749 = scmp.le.s32.totalorder 2, %s9
    // Predicated region
    $region37: #{tpu_custom_call.1} parent=5 // pred_check
      %p3750 = pneg %p3749
    $region38: #{tpu_custom_call.1} parent=5 // pred_check_branch
      %3752 = sbr.rel (%p3750) target = $region40
    $region39: #{tpu_custom_call.1} parent=5 // pred_region
      %s3753 = ssub.s32 %s9, 2
      // Predicated region
      $region41: #{tpu_custom_call.1} parent=39 // pred_check
        %p3754 = pneg %p106
      $region42: #{tpu_custom_call.1} parent=39 // pred_check_branch
        %3756 = sbr.rel (%p3754) target = $region44
      $region43: #{tpu_custom_call.1} parent=39 // pred_region
        %s3757 = smul.u32 128, %s15
        %p3758 = scmp.lt.s32.totalorder %s3757, 255
        %s3759 = scalar_select %p3758, %s3757, 255
        %s3760 = smul.addr %s3759, 8
        %s3761 = scalar_lea.vmem %s3, %s3760
      $region44: #{tpu_custom_call.1} parent=39 // pred_fallthru
        _
    $region40: #{tpu_custom_call.1} parent=5 // pred_fallthru
      _
  $region6: #{tpu_custom_call.1} parent=0 // loop_footer
    %s13 = sadd.s32 1, %s9
  $region7: #{tpu_custom_call.1} parent=0 // loop_footer_branch
    %8 = sbr.rel target = $region3
  $region8: #{tpu_custom_call.1} parent=0 // loop_exit
    _

</llo_original>
